<compile_context>
chip_gen: v5e
topology: v5e:2x2
jax: 0.10.0
libtpu: 0.0.40
codegen_flags: <defaults>
</compile_context>

<pallas_src>
import functools

import jax
import jax.numpy as jnp
import numpy as np
from jax.experimental import pallas as pl
from jax.experimental.pallas import tpu as pltpu


# ---------------------------------------------------------------------------
# Fused inner-loop kernel (one grid step == one batch element)
# ---------------------------------------------------------------------------
# Layout conventions inside the kernel (per batch element):
#   activations      : (channels, P) with P = Hf*Wf on lanes
#   conv-T stage 1   : rows = (di*2+dj)*C4 + c4                (4*C4, P)
#   conv-T stage 2   : rows = c8*16 + (di*2+dj)*4 + (ei*2+ej)  (16*C8, P)
#   masks (blocked)  : (Ncls, 16, P), s = (di*2+dj)*4 + (ei*2+ej)
#   raster pixel     : (4i+2di+ei, 4j+2dj+ej)  <->  (s, p=i*Wf+j)

def _fused_inner_kernel(
    masks_ref,   # (1, Ncls, 16, P)  blocked low-res masks (previous iteration)
    fp_ref,      # (1, C, P)         image_embeddings + image_pe
    tokT_ref,    # (C, Ncls)         cls token embeddings (transposed)
    mprojT_ref,  # (C, Ncls)         prompt-enc mask projection (transposed)   [stub]
    wsrc_ref,    # (C, C)            transformer src projection (transposed)   [stub]
    bsrc_ref,    # (C, 1)
    wtok_ref,    # (C, C)            transformer token projection (transposed) [stub]
    btok_ref,    # (C, 1)
    wup1_ref,    # (4*C4, C)         ConvT1 as matmul
    bup1_ref,    # (4*C4, 1)
    aln_ref,     # (4*C4, 4*C4)      block-diag averaging matrix for LayerNorm2d
    gln_ref,     # (4*C4, 1)
    bln_ref,     # (4*C4, 1)
    wup2_ref,    # (16*C8, 4*C4)     ConvT2 as block-diagonal matmul
    bup2_ref,    # (16*C8, 1)
    w1s_ref,     # (Ncls, C, C)      stacked hypernetwork MLP weights (transposed)
    b1s_ref,     # (Ncls, C, 1)
    w2s_ref,     # (Ncls, C, C)
    b2s_ref,     # (Ncls, C, 1)
    w3s_ref,     # (Ncls, C8, C)
    b3s_ref,     # (Ncls, C8, 1)
    out_ref,     # (1, Ncls, 16, P)  updated blocked masks
    hyp_ref,     # VMEM scratch (C8, 1)
):
    f32 = jnp.float32
    Ncls = masks_ref.shape[1]
    C8 = w3s_ref.shape[1]

    # ---- src = feats + pe + dense mask embedding --------------------------
    # 4x4 avg-pool of blocked masks == mean over the 16 sub-positions.
    # K = Ncls is tiny -> VPU outer-product MAC, not an MXU matmul.
    x = fp_ref[0]                                               # (C, P)
    for n in range(Ncls):
        pooled_n = jnp.mean(masks_ref[0, n], axis=0, keepdims=True)   # (1, P)
        x = x + mprojT_ref[:, n:n + 1] * pooled_n                     # (C,1)*(1,P)

    # ---- transformer stub: src projection (MXU, lane-dense) ---------------
    # TODO(synk): real SAM TwoWayTransformer is an external module; stubbed with
    # deterministic linear projections.
    s = jnp.dot(wsrc_ref[...], x, preferred_element_type=f32) + bsrc_ref[...]
    s = jnp.maximum(s, 0.0)                                     # (C, P)

    # ---- output_upscaling stage 1: ConvT(2,2) C->C4 as one matmul ---------
    y1 = jnp.dot(wup1_ref[...], s, preferred_element_type=f32) + bup1_ref[...]
    # LayerNorm2d (eps=1e-6, biased var) over each C4-channel group, fused as two
    # block-diagonal averaging matmuls -> stays lane-dense, no sub-vreg reductions.
    mu = jnp.dot(aln_ref[...], y1, preferred_element_type=f32)
    d = y1 - mu
    var = jnp.dot(aln_ref[...], d * d, preferred_element_type=f32)
    y2 = d * jax.lax.rsqrt(var + 1e-6) * gln_ref[...] + bln_ref[...]
    # TODO(synk): PyTorch nn.GELU default is exact erf; tanh approx (Mosaic-safe).
    y2 = jax.nn.gelu(y2, approximate=True)                      # (4*C4, P)

    # ---- output_upscaling stage 2: ConvT(2,2) C4->C8 (block-diag) + GELU --
    z = jnp.dot(wup2_ref[...], y2, preferred_element_type=f32) + bup2_ref[...]
    z = jax.nn.gelu(z, approximate=True)                        # (16*C8, P)

    # ---- token path + hypernetwork MLPs + mask residual update ------------
    xmean = jnp.mean(x, axis=1, keepdims=True)                  # (C, 1) spatial mean
    for n in range(Ncls):
        # transformer token stub (src-dependent so the iteration is non-degenerate)
        t = tokT_ref[:, n:n + 1] + xmean                        # (C, 1)
        h = jnp.dot(wtok_ref[...], t, preferred_element_type=f32) + btok_ref[...]
        h = jnp.maximum(h, 0.0)
        # 3-layer hypernetwork MLP for token n (stacked weights)
        h = jnp.dot(w1s_ref[n], h, preferred_element_type=f32) + b1s_ref[n]
        h = jnp.maximum(h, 0.0)
        h = jnp.dot(w2s_ref[n], h, preferred_element_type=f32) + b2s_ref[n]
        h = jnp.maximum(h, 0.0)
        h = jnp.dot(w3s_ref[n], h, preferred_element_type=f32) + b3s_ref[n]  # (C8,1)
        hyp_ref[...] = h

        # updated_masks[n] = sum_k hyper[n,k] * upscaled[k] + masks[n]
        # K = C8 is tiny -> VPU broadcast-MAC over lane-dense (16, P) planes.
        acc = masks_ref[0, n]                                   # (16, P)
        for k in range(C8):
            acc = acc + hyp_ref[k:k + 1, :] * z[k * 16:(k + 1) * 16, :]
        out_ref[0, n] = acc.astype(out_ref.dtype)


def fused_inner_loop(kp, masks_blk, fp):
    """One full inner_loop iteration as a single pallas_call (grid over batch)."""
    B, Ncls, _, P = masks_blk.shape
    C = fp.shape[1]
    C4, C8 = C // 4, C // 8

    rep2 = lambda b: (0, 0)
    rep3 = lambda b: (0, 0, 0)
    in_specs = [
        pl.BlockSpec((1, Ncls, 16, P), lambda b: (b, 0, 0, 0)),
        pl.BlockSpec((1, C, P), lambda b: (b, 0, 0)),
        pl.BlockSpec((C, Ncls), rep2),
        pl.BlockSpec((C, Ncls), rep2),
        pl.BlockSpec((C, C), rep2),
        pl.BlockSpec((C, 1), rep2),
        pl.BlockSpec((C, C), rep2),
        pl.BlockSpec((C, 1), rep2),
        pl.BlockSpec((4 * C4, C), rep2),
        pl.BlockSpec((4 * C4, 1), rep2),
        pl.BlockSpec((4 * C4, 4 * C4), rep2),
        pl.BlockSpec((4 * C4, 1), rep2),
        pl.BlockSpec((4 * C4, 1), rep2),
        pl.BlockSpec((16 * C8, 4 * C4), rep2),
        pl.BlockSpec((16 * C8, 1), rep2),
        pl.BlockSpec((Ncls, C, C), rep3),
        pl.BlockSpec((Ncls, C, 1), rep3),
        pl.BlockSpec((Ncls, C, C), rep3),
        pl.BlockSpec((Ncls, C, 1), rep3),
        pl.BlockSpec((Ncls, C8, C), rep3),
        pl.BlockSpec((Ncls, C8, 1), rep3),
    ]
    return pl.pallas_call(
        _fused_inner_kernel,
        out_shape=jax.ShapeDtypeStruct((B, Ncls, 16, P), jnp.float32),
        grid=(B,),
        in_specs=in_specs,
        out_specs=pl.BlockSpec((1, Ncls, 16, P), lambda b: (b, 0, 0, 0)),
        scratch_shapes=[pltpu.VMEM((C8, 1), jnp.float32)],
        compiler_params=pltpu.CompilerParams(dimension_semantics=("parallel",)),
    )(masks_blk, fp, kp["tokT"], kp["mprojT"], kp["wsrc"], kp["bsrc"],
      kp["wtok"], kp["btok"], kp["wup1"], kp["bup1"], kp["aln"], kp["gln"],
      kp["bln"], kp["wup2"], kp["bup2"], kp["w1s"], kp["b1s"], kp["w2s"],
      kp["b2s"], kp["w3s"], kp["b3s"])


# ---------------------------------------------------------------------------
# Blocked <-> raster layout glue (plain JAX; only touched for the output logits)
#   blocked: (B, Ncls, 16, Hf*Wf) with s = (di*2+dj)*4 + (ei*2+ej), p = i*Wf + j
#   raster : (B, Ncls, 4Hf, 4Wf)  with (4i+2di+ei, 4j+2dj+ej)
# ---------------------------------------------------------------------------

def raster_to_blocked(m, Hf, Wf):
    B, N = m.shape[:2]
    m = m.reshape(B, N, Hf, 2, 2, Wf, 2, 2)            # (b,n,i,di,ei,j,dj,ej)
    m = jnp.transpose(m, (0, 1, 3, 6, 4, 7, 2, 5))     # (b,n,di,dj,ei,ej,i,j)
    return m.reshape(B, N, 16, Hf * Wf)


def blocked_to_raster(m, Hf, Wf):
    B, N = m.shape[:2]
    m = m.reshape(B, N, 2, 2, 2, 2, Hf, Wf)            # (b,n,di,dj,ei,ej,i,j)
    m = jnp.transpose(m, (0, 1, 6, 2, 4, 7, 3, 5))     # (b,n,i,di,ei,j,dj,ej)
    return m.reshape(B, N, 4 * Hf, 4 * Wf)


# ---------------------------------------------------------------------------
# Parameters (deterministic, synthetic) + kernel-layout preprocessing
# ---------------------------------------------------------------------------

def make_params(key, C, Ncls):
    C4, C8 = C // 4, C // 8
    ks = jax.random.split(key, 16)
    n = lambda k, shape, s=0.2: jax.random.normal(k, shape, jnp.float32) * s
    params = {
        # prompt_enc stubs
        "cls_emb": n(ks[0], (Ncls, C)),
        "mask_proj": n(ks[1], (Ncls, C)),
        # transformer stub (external module -> simple linear projections)
        "tok_w": n(ks[2], (C, C)), "tok_b": n(ks[3], (C,)),
        "src_w": n(ks[4], (C, C)), "src_b": n(ks[5], (C,)),
        # output_upscaling
        "up1_w": n(ks[6], (C, C4, 2, 2)), "up1_b": n(ks[7], (C4,)),
        "ln_g": jnp.ones((C4,), jnp.float32), "ln_b": jnp.zeros((C4,), jnp.float32),
        "up2_w": n(ks[8], (C4, C8, 2, 2)), "up2_b": n(ks[9], (C8,)),
        # per-token hypernetwork MLPs: C -> C -> C -> C8
        "mlps": [],
    }
    for i in range(Ncls):
        km = jax.random.split(jax.random.fold_in(ks[10], i), 6)
        params["mlps"].append({
            "w1": n(km[0], (C, C)), "b1": n(km[1], (C,)),
            "w2": n(km[2], (C, C)), "b2": n(km[3], (C,)),
            "w3": n(km[4], (C, C // 8)), "b3": n(km[5], (C // 8,)),
        })
    return params


def prepare_kernel_params(params):
    """Build the transposed / flattened / block-diagonal weight forms the fused
    kernel consumes (computed once per forward, plain JAX)."""
    C = params["src_w"].shape[0]
    Ncls = params["cls_emb"].shape[0]
    C4, C8 = C // 4, C // 8

    # ConvT1 as matmul: row = (di*2+dj)*C4 + c4
    wup1 = jnp.transpose(params["up1_w"], (2, 3, 1, 0)).reshape(4 * C4, C)
    bup1 = jnp.tile(params["up1_b"], 4).reshape(4 * C4, 1)
    # LayerNorm2d averaging matrix (block-diag of 1/C4) and per-row affine
    aln = jnp.kron(jnp.eye(4, dtype=jnp.float32),
                   jnp.full((C4, C4), 1.0 / C4, jnp.float32))
    gln = jnp.tile(params["ln_g"], 4).reshape(4 * C4, 1)
    bln = jnp.tile(params["ln_b"], 4).reshape(4 * C4, 1)
    # ConvT2 as block-diagonal matmul: row = c8*16 + d1*4 + d2, col = d1*C4 + c4
    w2t = jnp.transpose(params["up2_w"], (1, 2, 3, 0)).reshape(C8, 4, C4)
    wup2 = jnp.einsum("ksc,de->kdsec", w2t,
                      jnp.eye(4, dtype=jnp.float32)).reshape(16 * C8, 4 * C4)
    bup2 = jnp.repeat(params["up2_b"], 16).reshape(16 * C8, 1)
    # stacked hypernetwork MLP weights (transposed for column-activation layout)
    w1s = jnp.stack([jnp.transpose(m["w1"]) for m in params["mlps"]])
    b1s = jnp.stack([m["b1"] for m in params["mlps"]])[:, :, None]
    w2s = jnp.stack([jnp.transpose(m["w2"]) for m in params["mlps"]])
    b2s = jnp.stack([m["b2"] for m in params["mlps"]])[:, :, None]
    w3s = jnp.stack([jnp.transpose(m["w3"]) for m in params["mlps"]])
    b3s = jnp.stack([m["b3"] for m in params["mlps"]])[:, :, None]

    return dict(
        tokT=params["cls_emb"].T, mprojT=params["mask_proj"].T,
        wsrc=params["src_w"].T, bsrc=params["src_b"][:, None],
        wtok=params["tok_w"].T, btok=params["tok_b"][:, None],
        wup1=wup1, bup1=bup1, aln=aln, gln=gln, bln=bln,
        wup2=wup2, bup2=bup2,
        w1s=w1s, b1s=b1s, w2s=w2s, b2s=b2s, w3s=w3s, b3s=b3s,
    )


# ---------------------------------------------------------------------------
# Forward pass (MaskDecoder_IterSimple.predict_masks_iter)
# ---------------------------------------------------------------------------

@functools.partial(jax.jit, static_argnames=("num_iter",))
def mask_decoder_iter_forward(params, image_embeddings, image_pe, sem_mask, num_iter):
    """image_embeddings:(B,C,Hf,Wf), image_pe:(1,C,Hf,Wf), sem_mask:(B,Ncls,16Hf,16Wf)."""
    B, C, Hf, Wf = image_embeddings.shape
    Ncls = params["cls_emb"].shape[0]
    Hm, Wm = sem_mask.shape[2] // 4, sem_mask.shape[3] // 4
    assert Hm == 4 * Hf and Wm == 4 * Wf

    kp = prepare_kernel_params(params)
    # feats + positional encoding (repeat_interleave over batch), channels-on-rows slab
    fp = (image_embeddings + image_pe).reshape(B, C, Hf * Wf)
    # init_masks: prompt_enc.obtain_init_masks(b, h//4, w//4)
    # TODO(synk): external prompt encoder init; stubbed as zeros of the correct shape.
    masks_blk = raster_to_blocked(jnp.zeros((B, Ncls, Hm, Wm), jnp.float32), Hf, Wf)

    low_res_logits_list = []
    for _ in range(num_iter):
        masks_blk = jax.lax.stop_gradient(masks_blk)            # masks.detach()
        masks_blk = fused_inner_loop(kp, masks_blk, fp)
        low_res_logits_list.append(blocked_to_raster(masks_blk, Hf, Wf))
    return {"low_res_logits_list": low_res_logits_list}


# ---------------------------------------------------------------------------
# Pure-JAX reference of the same (stubbed) forward, in the PyTorch NCHW formulation
# ---------------------------------------------------------------------------

def _reference_forward(params, image_embeddings, image_pe, num_iter):
    B, C, Hf, Wf = image_embeddings.shape
    Ncls = params["cls_emb"].shape[0]
    Hm, Wm = 4 * Hf, 4 * Wf
    fp = image_embeddings + image_pe
    masks = jnp.zeros((B, Ncls, Hm, Wm), jnp.float32)

    def conv_t(x, w, b):                                        # NCHW ConvT(k=2, s=2)
        y = jnp.einsum("bihw,iodk->bohdwk", x, w)
        Bc, Co, H, _, W, _ = y.shape
        return y.reshape(Bc, Co, 2 * H, 2 * W) + b[None, :, None, None]

    outs = []
    for _ in range(num_iter):
        pooled = masks.reshape(B, Ncls, Hf, 4, Wf, 4).mean(axis=(3, 5))
        dense = jnp.einsum("bnhw,nc->bchw", pooled, params["mask_proj"])
        x = fp + dense
        xr = jnp.transpose(x, (0, 2, 3, 1)).reshape(B * Hf * Wf, C)
        s = jax.nn.relu(xr @ params["src_w"] + params["src_b"])
        s = jnp.transpose(s.reshape(B, Hf, Wf, C), (0, 3, 1, 2))
        xmean = x.mean(axis=(2, 3))
        tok_in = params["cls_emb"][None, :, :] + xmean[:, None, :]
        hs = jax.nn.relu(tok_in @ params["tok_w"] + params["tok_b"])
        y = conv_t(s, params["up1_w"], params["up1_b"])
        mu = y.mean(axis=1, keepdims=True)
        var = ((y - mu) ** 2).mean(axis=1, keepdims=True)
        y = (y - mu) / jnp.sqrt(var + 1e-6)
        y = y * params["ln_g"][None, :, None, None] + params["ln_b"][None, :, None, None]
        y = jax.nn.gelu(y, approximate=True)
        z = jax.nn.gelu(conv_t(y, params["up2_w"], params["up2_b"]), approximate=True)
        hyper = []
        for i in range(Ncls):
            p = params["mlps"][i]
            t = hs[:, i, :]
            t = jax.nn.relu(t @ p["w1"] + p["b1"])
            t = jax.nn.relu(t @ p["w2"] + p["b2"])
            t = t @ p["w3"] + p["b3"]
            hyper.append(t)
        hyper = jnp.stack(hyper, axis=1)                        # (B,Ncls,C8)
        masks = jnp.einsum("bnk,bkhw->bnhw", hyper, z) + masks
        outs.append(masks)
    return outs


# ---------------------------------------------------------------------------
# Example run
# ---------------------------------------------------------------------------

if __name__ == "__main__":
    key = jax.random.PRNGKey(0)
    # Small shapes: transformer_dim C=32 (C/4=8, C/8=4), Ncls=4 mask tokens,
    # B=2, image-embedding spatial 8x8 -> low-res masks 32x32, sem_mask 128x128.
    B, C, Hf, Wf, Ncls = 2, 32, 8, 8, 4
    num_iter = 2

    k_p, k_feat, k_pe, k_gt = jax.random.split(key, 4)
    params = make_params(k_p, C, Ncls)
    image_embeddings = jax.random.normal(k_feat, (B, C, Hf, Wf), jnp.float32)
    image_pe = jax.random.normal(k_pe, (1, C, Hf, Wf), jnp.float32)
    sem_mask = (jax.random.uniform(k_gt, (B, Ncls, 4 * 4 * Hf, 4 * 4 * Wf)) > 0.5
                ).astype(jnp.float32)

    out = mask_decoder_iter_forward(params, image_embeddings, image_pe, sem_mask, num_iter)
    logits = [jax.block_until_ready(m) for m in out["low_res_logits_list"]]

    assert len(logits) == num_iter
    assert logits[0].shape == (B, Ncls, 4 * Hf, 4 * Wf)
    assert all(bool(jnp.all(jnp.isfinite(m))) for m in logits)

    # parity against the plain-JAX reference of the same (stubbed) forward
    with jax.default_matmul_precision("highest"):
        ref = _reference_forward(params, image_embeddings, image_pe, num_iter)
    for got, want in zip(logits, ref):
        np.testing.assert_allclose(np.asarray(got), np.asarray(want),
                                   rtol=0.1, atol=3e-3)

    print("KERNEL_OK")
</pallas_src>

<mosaic_0001>
module attributes {stable_mosaic.version = 11 : i64} {
  func.func @_fused_inner_kernel(%arg0: i32, %arg1: memref<1x4x16x64xf32, #tpu.memory_space<vmem>>, %arg2: memref<1x32x64xf32, #tpu.memory_space<vmem>>, %arg3: memref<32x4xf32, #tpu.memory_space<vmem>>, %arg4: memref<32x4xf32, #tpu.memory_space<vmem>>, %arg5: memref<32x32xf32, #tpu.memory_space<vmem>>, %arg6: memref<32x1xf32, #tpu.memory_space<vmem>>, %arg7: memref<32x32xf32, #tpu.memory_space<vmem>>, %arg8: memref<32x1xf32, #tpu.memory_space<vmem>>, %arg9: memref<32x32xf32, #tpu.memory_space<vmem>>, %arg10: memref<32x1xf32, #tpu.memory_space<vmem>>, %arg11: memref<32x32xf32, #tpu.memory_space<vmem>>, %arg12: memref<32x1xf32, #tpu.memory_space<vmem>>, %arg13: memref<32x1xf32, #tpu.memory_space<vmem>>, %arg14: memref<64x32xf32, #tpu.memory_space<vmem>>, %arg15: memref<64x1xf32, #tpu.memory_space<vmem>>, %arg16: memref<4x32x32xf32, #tpu.memory_space<vmem>>, %arg17: memref<4x32x1xf32, #tpu.memory_space<vmem>>, %arg18: memref<4x32x32xf32, #tpu.memory_space<vmem>>, %arg19: memref<4x32x1xf32, #tpu.memory_space<vmem>>, %arg20: memref<4x4x32xf32, #tpu.memory_space<vmem>>, %arg21: memref<4x4x1xf32, #tpu.memory_space<vmem>>, %arg22: memref<1x4x16x64xf32, #tpu.memory_space<vmem>>, %arg23: memref<4x1xf32, #tpu.memory_space<vmem>>) attributes {dimension_semantics = [#tpu.dimension_semantics<parallel>], iteration_bounds = array<i64: 2>, scalar_prefetch = 0 : i64, scratch_operands = 1 : i64, tpu.core_type = #tpu.core_type<tc>, window_params = [{transform_indices = @transform_0, window_bounds = array<i64: 1, 4, 16, 64>}, {transform_indices = @transform_1, window_bounds = array<i64: 1, 32, 64>}, {pipeline_mode = #tpu.pipeline_mode<synchronous>, transform_indices = @transform_2, window_bounds = array<i64: 32, 4>}, {pipeline_mode = #tpu.pipeline_mode<synchronous>, transform_indices = @transform_3, window_bounds = array<i64: 32, 4>}, {pipeline_mode = #tpu.pipeline_mode<synchronous>, transform_indices = @transform_4, window_bounds = array<i64: 32, 32>}, {pipeline_mode = #tpu.pipeline_mode<synchronous>, transform_indices = @transform_5, window_bounds = array<i64: 32, 1>}, {pipeline_mode = #tpu.pipeline_mode<synchronous>, transform_indices = @transform_6, window_bounds = array<i64: 32, 32>}, {pipeline_mode = #tpu.pipeline_mode<synchronous>, transform_indices = @transform_7, window_bounds = array<i64: 32, 1>}, {pipeline_mode = #tpu.pipeline_mode<synchronous>, transform_indices = @transform_8, window_bounds = array<i64: 32, 32>}, {pipeline_mode = #tpu.pipeline_mode<synchronous>, transform_indices = @transform_9, window_bounds = array<i64: 32, 1>}, {pipeline_mode = #tpu.pipeline_mode<synchronous>, transform_indices = @transform_10, window_bounds = array<i64: 32, 32>}, {pipeline_mode = #tpu.pipeline_mode<synchronous>, transform_indices = @transform_11, window_bounds = array<i64: 32, 1>}, {pipeline_mode = #tpu.pipeline_mode<synchronous>, transform_indices = @transform_12, window_bounds = array<i64: 32, 1>}, {pipeline_mode = #tpu.pipeline_mode<synchronous>, transform_indices = @transform_13, window_bounds = array<i64: 64, 32>}, {pipeline_mode = #tpu.pipeline_mode<synchronous>, transform_indices = @transform_14, window_bounds = array<i64: 64, 1>}, {pipeline_mode = #tpu.pipeline_mode<synchronous>, transform_indices = @transform_15, window_bounds = array<i64: 4, 32, 32>}, {pipeline_mode = #tpu.pipeline_mode<synchronous>, transform_indices = @transform_16, window_bounds = array<i64: 4, 32, 1>}, {pipeline_mode = #tpu.pipeline_mode<synchronous>, transform_indices = @transform_17, window_bounds = array<i64: 4, 32, 32>}, {pipeline_mode = #tpu.pipeline_mode<synchronous>, transform_indices = @transform_18, window_bounds = array<i64: 4, 32, 1>}, {pipeline_mode = #tpu.pipeline_mode<synchronous>, transform_indices = @transform_19, window_bounds = array<i64: 4, 4, 32>}, {pipeline_mode = #tpu.pipeline_mode<synchronous>, transform_indices = @transform_20, window_bounds = array<i64: 4, 4, 1>}, {transform_indices = @transform_21, window_bounds = array<i64: 1, 4, 16, 64>}]} {
    %c0 = arith.constant 0 : index
    %c0_0 = arith.constant 0 : index
    %c0_1 = arith.constant 0 : index
    %0 = vector.load %arg2[%c0, %c0_0, %c0_1] : memref<1x32x64xf32, #tpu.memory_space<vmem>>, vector<1x32x64xf32>
    %1 = vector.shape_cast %0 : vector<1x32x64xf32> to vector<32x64xf32>
    %c0_2 = arith.constant 0 : index
    %c0_3 = arith.constant 0 : index
    %c0_4 = arith.constant 0 : index
    %c0_5 = arith.constant 0 : index
    %2 = vector.load %arg1[%c0_2, %c0_3, %c0_4, %c0_5] : memref<1x4x16x64xf32, #tpu.memory_space<vmem>>, vector<1x1x16x64xf32>
    %3 = vector.shape_cast %2 : vector<1x1x16x64xf32> to vector<16x64xf32>
    %cst = arith.constant dense<0.000000e+00> : vector<64xf32>
    %4 = vector.multi_reduction <add>, %3, %cst [0] : vector<16x64xf32> to vector<64xf32>
    %5 = vector.shape_cast %4 : vector<64xf32> to vector<1x64xf32>
    %cst_6 = arith.constant 1.600000e+01 : f32
    %6 = vector.broadcast %cst_6 : f32 to vector<1x64xf32>
    %7 = arith.divf %5, %6 : vector<1x64xf32>
    %c0_7 = arith.constant 0 : index
    %c0_8 = arith.constant 0 : index
    %8 = vector.load %arg4[%c0_7, %c0_8] : memref<32x4xf32, #tpu.memory_space<vmem>>, vector<32x1xf32>
    %9 = vector.broadcast %8 : vector<32x1xf32> to vector<32x64xf32>
    %10 = vector.broadcast %7 : vector<1x64xf32> to vector<32x64xf32>
    %11 = arith.mulf %9, %10 : vector<32x64xf32>
    %12 = arith.addf %1, %11 : vector<32x64xf32>
    %c0_9 = arith.constant 0 : index
    %c1 = arith.constant 1 : index
    %c0_10 = arith.constant 0 : index
    %c0_11 = arith.constant 0 : index
    %13 = vector.load %arg1[%c0_9, %c1, %c0_10, %c0_11] : memref<1x4x16x64xf32, #tpu.memory_space<vmem>>, vector<1x1x16x64xf32>
    %14 = vector.shape_cast %13 : vector<1x1x16x64xf32> to vector<16x64xf32>
    %cst_12 = arith.constant dense<0.000000e+00> : vector<64xf32>
    %15 = vector.multi_reduction <add>, %14, %cst_12 [0] : vector<16x64xf32> to vector<64xf32>
    %16 = vector.shape_cast %15 : vector<64xf32> to vector<1x64xf32>
    %cst_13 = arith.constant 1.600000e+01 : f32
    %17 = vector.broadcast %cst_13 : f32 to vector<1x64xf32>
    %18 = arith.divf %16, %17 : vector<1x64xf32>
    %c0_14 = arith.constant 0 : index
    %c1_15 = arith.constant 1 : index
    %19 = vector.load %arg4[%c0_14, %c1_15] : memref<32x4xf32, #tpu.memory_space<vmem>>, vector<32x1xf32>
    %20 = vector.broadcast %19 : vector<32x1xf32> to vector<32x64xf32>
    %21 = vector.broadcast %18 : vector<1x64xf32> to vector<32x64xf32>
    %22 = arith.mulf %20, %21 : vector<32x64xf32>
    %23 = arith.addf %12, %22 : vector<32x64xf32>
    %c0_16 = arith.constant 0 : index
    %c2 = arith.constant 2 : index
    %c0_17 = arith.constant 0 : index
    %c0_18 = arith.constant 0 : index
    %24 = vector.load %arg1[%c0_16, %c2, %c0_17, %c0_18] : memref<1x4x16x64xf32, #tpu.memory_space<vmem>>, vector<1x1x16x64xf32>
    %25 = vector.shape_cast %24 : vector<1x1x16x64xf32> to vector<16x64xf32>
    %cst_19 = arith.constant dense<0.000000e+00> : vector<64xf32>
    %26 = vector.multi_reduction <add>, %25, %cst_19 [0] : vector<16x64xf32> to vector<64xf32>
    %27 = vector.shape_cast %26 : vector<64xf32> to vector<1x64xf32>
    %cst_20 = arith.constant 1.600000e+01 : f32
    %28 = vector.broadcast %cst_20 : f32 to vector<1x64xf32>
    %29 = arith.divf %27, %28 : vector<1x64xf32>
    %c0_21 = arith.constant 0 : index
    %c2_22 = arith.constant 2 : index
    %30 = vector.load %arg4[%c0_21, %c2_22] : memref<32x4xf32, #tpu.memory_space<vmem>>, vector<32x1xf32>
    %31 = vector.broadcast %30 : vector<32x1xf32> to vector<32x64xf32>
    %32 = vector.broadcast %29 : vector<1x64xf32> to vector<32x64xf32>
    %33 = arith.mulf %31, %32 : vector<32x64xf32>
    %34 = arith.addf %23, %33 : vector<32x64xf32>
    %c0_23 = arith.constant 0 : index
    %c3 = arith.constant 3 : index
    %c0_24 = arith.constant 0 : index
    %c0_25 = arith.constant 0 : index
    %35 = vector.load %arg1[%c0_23, %c3, %c0_24, %c0_25] : memref<1x4x16x64xf32, #tpu.memory_space<vmem>>, vector<1x1x16x64xf32>
    %36 = vector.shape_cast %35 : vector<1x1x16x64xf32> to vector<16x64xf32>
    %cst_26 = arith.constant dense<0.000000e+00> : vector<64xf32>
    %37 = vector.multi_reduction <add>, %36, %cst_26 [0] : vector<16x64xf32> to vector<64xf32>
    %38 = vector.shape_cast %37 : vector<64xf32> to vector<1x64xf32>
    %cst_27 = arith.constant 1.600000e+01 : f32
    %39 = vector.broadcast %cst_27 : f32 to vector<1x64xf32>
    %40 = arith.divf %38, %39 : vector<1x64xf32>
    %c0_28 = arith.constant 0 : index
    %c3_29 = arith.constant 3 : index
    %41 = vector.load %arg4[%c0_28, %c3_29] : memref<32x4xf32, #tpu.memory_space<vmem>>, vector<32x1xf32>
    %42 = vector.broadcast %41 : vector<32x1xf32> to vector<32x64xf32>
    %43 = vector.broadcast %40 : vector<1x64xf32> to vector<32x64xf32>
    %44 = arith.mulf %42, %43 : vector<32x64xf32>
    %45 = arith.addf %34, %44 : vector<32x64xf32>
    %c0_30 = arith.constant 0 : index
    %c0_31 = arith.constant 0 : index
    %46 = vector.load %arg5[%c0_30, %c0_31] : memref<32x32xf32, #tpu.memory_space<vmem>>, vector<32x32xf32>
    %cst_32 = arith.constant dense<0.000000e+00> : vector<32x64xf32>
    %47 = tpu.matmul %46, %45, %cst_32 {dimension_numbers = #tpu.dot_dimension_numbers<[1], [0], [0], [1], [0, 0, 1, 1], [], []>} : vector<32x32xf32>, vector<32x64xf32>, vector<32x64xf32> -> vector<32x64xf32>
    %c0_33 = arith.constant 0 : index
    %c0_34 = arith.constant 0 : index
    %48 = vector.load %arg6[%c0_33, %c0_34] : memref<32x1xf32, #tpu.memory_space<vmem>>, vector<32x1xf32>
    %49 = vector.broadcast %48 : vector<32x1xf32> to vector<32x64xf32>
    %50 = arith.addf %47, %49 : vector<32x64xf32>
    %cst_35 = arith.constant 0.000000e+00 : f32
    %51 = vector.broadcast %cst_35 : f32 to vector<32x64xf32>
    %52 = arith.maximumf %50, %51 : vector<32x64xf32>
    %c0_36 = arith.constant 0 : index
    %c0_37 = arith.constant 0 : index
    %53 = vector.load %arg9[%c0_36, %c0_37] : memref<32x32xf32, #tpu.memory_space<vmem>>, vector<32x32xf32>
    %cst_38 = arith.constant dense<0.000000e+00> : vector<32x64xf32>
    %54 = tpu.matmul %53, %52, %cst_38 {dimension_numbers = #tpu.dot_dimension_numbers<[1], [0], [0], [1], [0, 0, 1, 1], [], []>} : vector<32x32xf32>, vector<32x64xf32>, vector<32x64xf32> -> vector<32x64xf32>
    %c0_39 = arith.constant 0 : index
    %c0_40 = arith.constant 0 : index
    %55 = vector.load %arg10[%c0_39, %c0_40] : memref<32x1xf32, #tpu.memory_space<vmem>>, vector<32x1xf32>
    %56 = vector.broadcast %55 : vector<32x1xf32> to vector<32x64xf32>
    %57 = arith.addf %54, %56 : vector<32x64xf32>
    %c0_41 = arith.constant 0 : index
    %c0_42 = arith.constant 0 : index
    %58 = vector.load %arg11[%c0_41, %c0_42] : memref<32x32xf32, #tpu.memory_space<vmem>>, vector<32x32xf32>
    %cst_43 = arith.constant dense<0.000000e+00> : vector<32x64xf32>
    %59 = tpu.matmul %58, %57, %cst_43 {dimension_numbers = #tpu.dot_dimension_numbers<[1], [0], [0], [1], [0, 0, 1, 1], [], []>} : vector<32x32xf32>, vector<32x64xf32>, vector<32x64xf32> -> vector<32x64xf32>
    %60 = arith.subf %57, %59 : vector<32x64xf32>
    %c0_44 = arith.constant 0 : index
    %c0_45 = arith.constant 0 : index
    %61 = vector.load %arg11[%c0_44, %c0_45] : memref<32x32xf32, #tpu.memory_space<vmem>>, vector<32x32xf32>
    %62 = arith.mulf %60, %60 : vector<32x64xf32>
    %cst_46 = arith.constant dense<0.000000e+00> : vector<32x64xf32>
    %63 = tpu.matmul %61, %62, %cst_46 {dimension_numbers = #tpu.dot_dimension_numbers<[1], [0], [0], [1], [0, 0, 1, 1], [], []>} : vector<32x32xf32>, vector<32x64xf32>, vector<32x64xf32> -> vector<32x64xf32>
    %cst_47 = arith.constant 9.99999997E-7 : f32
    %64 = vector.broadcast %cst_47 : f32 to vector<32x64xf32>
    %65 = arith.addf %63, %64 : vector<32x64xf32>
    %66 = math.rsqrt %65 : vector<32x64xf32>
    %67 = arith.mulf %60, %66 : vector<32x64xf32>
    %c0_48 = arith.constant 0 : index
    %c0_49 = arith.constant 0 : index
    %68 = vector.load %arg12[%c0_48, %c0_49] : memref<32x1xf32, #tpu.memory_space<vmem>>, vector<32x1xf32>
    %69 = vector.broadcast %68 : vector<32x1xf32> to vector<32x64xf32>
    %70 = arith.mulf %67, %69 : vector<32x64xf32>
    %c0_50 = arith.constant 0 : index
    %c0_51 = arith.constant 0 : index
    %71 = vector.load %arg13[%c0_50, %c0_51] : memref<32x1xf32, #tpu.memory_space<vmem>>, vector<32x1xf32>
    %72 = vector.broadcast %71 : vector<32x1xf32> to vector<32x64xf32>
    %73 = arith.addf %70, %72 : vector<32x64xf32>
    %74 = arith.mulf %73, %73 : vector<32x64xf32>
    %75 = arith.mulf %73, %74 : vector<32x64xf32>
    %cst_52 = arith.constant 4.471500e-02 : f32
    %76 = vector.broadcast %cst_52 : f32 to vector<32x64xf32>
    %77 = arith.mulf %76, %75 : vector<32x64xf32>
    %78 = arith.addf %73, %77 : vector<32x64xf32>
    %cst_53 = arith.constant 0.797884583 : f32
    %79 = vector.broadcast %cst_53 : f32 to vector<32x64xf32>
    %80 = arith.mulf %79, %78 : vector<32x64xf32>
    %81 = math.tanh %80 : vector<32x64xf32>
    %cst_54 = arith.constant 1.000000e+00 : f32
    %82 = vector.broadcast %cst_54 : f32 to vector<32x64xf32>
    %83 = arith.addf %82, %81 : vector<32x64xf32>
    %cst_55 = arith.constant 5.000000e-01 : f32
    %84 = vector.broadcast %cst_55 : f32 to vector<32x64xf32>
    %85 = arith.mulf %84, %83 : vector<32x64xf32>
    %86 = arith.mulf %73, %85 : vector<32x64xf32>
    %c0_56 = arith.constant 0 : index
    %c0_57 = arith.constant 0 : index
    %87 = vector.load %arg14[%c0_56, %c0_57] : memref<64x32xf32, #tpu.memory_space<vmem>>, vector<64x32xf32>
    %cst_58 = arith.constant dense<0.000000e+00> : vector<64x64xf32>
    %88 = tpu.matmul %87, %86, %cst_58 {dimension_numbers = #tpu.dot_dimension_numbers<[1], [0], [0], [1], [0, 0, 1, 1], [], []>} : vector<64x32xf32>, vector<32x64xf32>, vector<64x64xf32> -> vector<64x64xf32>
    %c0_59 = arith.constant 0 : index
    %c0_60 = arith.constant 0 : index
    %89 = vector.load %arg15[%c0_59, %c0_60] : memref<64x1xf32, #tpu.memory_space<vmem>>, vector<64x1xf32>
    %90 = vector.broadcast %89 : vector<64x1xf32> to vector<64x64xf32>
    %91 = arith.addf %88, %90 : vector<64x64xf32>
    %92 = arith.mulf %91, %91 : vector<64x64xf32>
    %93 = arith.mulf %91, %92 : vector<64x64xf32>
    %cst_61 = arith.constant 4.471500e-02 : f32
    %94 = vector.broadcast %cst_61 : f32 to vector<64x64xf32>
    %95 = arith.mulf %94, %93 : vector<64x64xf32>
    %96 = arith.addf %91, %95 : vector<64x64xf32>
    %cst_62 = arith.constant 0.797884583 : f32
    %97 = vector.broadcast %cst_62 : f32 to vector<64x64xf32>
    %98 = arith.mulf %97, %96 : vector<64x64xf32>
    %99 = math.tanh %98 : vector<64x64xf32>
    %cst_63 = arith.constant 1.000000e+00 : f32
    %100 = vector.broadcast %cst_63 : f32 to vector<64x64xf32>
    %101 = arith.addf %100, %99 : vector<64x64xf32>
    %cst_64 = arith.constant 5.000000e-01 : f32
    %102 = vector.broadcast %cst_64 : f32 to vector<64x64xf32>
    %103 = arith.mulf %102, %101 : vector<64x64xf32>
    %104 = arith.mulf %91, %103 : vector<64x64xf32>
    %cst_65 = arith.constant dense<0.000000e+00> : vector<32xf32>
    %105 = vector.multi_reduction <add>, %45, %cst_65 [1] : vector<32x64xf32> to vector<32xf32>
    %106 = vector.shape_cast %105 : vector<32xf32> to vector<32x1xf32>
    %cst_66 = arith.constant 6.400000e+01 : f32
    %107 = vector.broadcast %cst_66 : f32 to vector<32x1xf32>
    %108 = arith.divf %106, %107 : vector<32x1xf32>
    %c0_67 = arith.constant 0 : index
    %c0_68 = arith.constant 0 : index
    %109 = vector.load %arg3[%c0_67, %c0_68] : memref<32x4xf32, #tpu.memory_space<vmem>>, vector<32x1xf32>
    %110 = arith.addf %109, %108 : vector<32x1xf32>
    %c0_69 = arith.constant 0 : index
    %c0_70 = arith.constant 0 : index
    %111 = vector.load %arg7[%c0_69, %c0_70] : memref<32x32xf32, #tpu.memory_space<vmem>>, vector<32x32xf32>
    %cst_71 = arith.constant dense<0.000000e+00> : vector<32x1xf32>
    %112 = tpu.matmul %111, %110, %cst_71 {dimension_numbers = #tpu.dot_dimension_numbers<[1], [0], [0], [1], [0, 0, 1, 1], [], []>} : vector<32x32xf32>, vector<32x1xf32>, vector<32x1xf32> -> vector<32x1xf32>
    %c0_72 = arith.constant 0 : index
    %c0_73 = arith.constant 0 : index
    %113 = vector.load %arg8[%c0_72, %c0_73] : memref<32x1xf32, #tpu.memory_space<vmem>>, vector<32x1xf32>
    %114 = arith.addf %112, %113 : vector<32x1xf32>
    %cst_74 = arith.constant 0.000000e+00 : f32
    %115 = vector.broadcast %cst_74 : f32 to vector<32x1xf32>
    %116 = arith.maximumf %114, %115 : vector<32x1xf32>
    %c0_75 = arith.constant 0 : index
    %c0_76 = arith.constant 0 : index
    %c0_77 = arith.constant 0 : index
    %117 = vector.load %arg16[%c0_75, %c0_76, %c0_77] : memref<4x32x32xf32, #tpu.memory_space<vmem>>, vector<1x32x32xf32>
    %118 = vector.shape_cast %117 : vector<1x32x32xf32> to vector<32x32xf32>
    %cst_78 = arith.constant dense<0.000000e+00> : vector<32x1xf32>
    %119 = tpu.matmul %118, %116, %cst_78 {dimension_numbers = #tpu.dot_dimension_numbers<[1], [0], [0], [1], [0, 0, 1, 1], [], []>} : vector<32x32xf32>, vector<32x1xf32>, vector<32x1xf32> -> vector<32x1xf32>
    %c0_79 = arith.constant 0 : index
    %c0_80 = arith.constant 0 : index
    %c0_81 = arith.constant 0 : index
    %120 = vector.load %arg17[%c0_79, %c0_80, %c0_81] : memref<4x32x1xf32, #tpu.memory_space<vmem>>, vector<1x32x1xf32>
    %121 = vector.shape_cast %120 : vector<1x32x1xf32> to vector<32x1xf32>
    %122 = arith.addf %119, %121 : vector<32x1xf32>
    %cst_82 = arith.constant 0.000000e+00 : f32
    %123 = vector.broadcast %cst_82 : f32 to vector<32x1xf32>
    %124 = arith.maximumf %122, %123 : vector<32x1xf32>
    %c0_83 = arith.constant 0 : index
    %c0_84 = arith.constant 0 : index
    %c0_85 = arith.constant 0 : index
    %125 = vector.load %arg18[%c0_83, %c0_84, %c0_85] : memref<4x32x32xf32, #tpu.memory_space<vmem>>, vector<1x32x32xf32>
    %126 = vector.shape_cast %125 : vector<1x32x32xf32> to vector<32x32xf32>
    %cst_86 = arith.constant dense<0.000000e+00> : vector<32x1xf32>
    %127 = tpu.matmul %126, %124, %cst_86 {dimension_numbers = #tpu.dot_dimension_numbers<[1], [0], [0], [1], [0, 0, 1, 1], [], []>} : vector<32x32xf32>, vector<32x1xf32>, vector<32x1xf32> -> vector<32x1xf32>
    %c0_87 = arith.constant 0 : index
    %c0_88 = arith.constant 0 : index
    %c0_89 = arith.constant 0 : index
    %128 = vector.load %arg19[%c0_87, %c0_88, %c0_89] : memref<4x32x1xf32, #tpu.memory_space<vmem>>, vector<1x32x1xf32>
    %129 = vector.shape_cast %128 : vector<1x32x1xf32> to vector<32x1xf32>
    %130 = arith.addf %127, %129 : vector<32x1xf32>
    %cst_90 = arith.constant 0.000000e+00 : f32
    %131 = vector.broadcast %cst_90 : f32 to vector<32x1xf32>
    %132 = arith.maximumf %130, %131 : vector<32x1xf32>
    %c0_91 = arith.constant 0 : index
    %c0_92 = arith.constant 0 : index
    %c0_93 = arith.constant 0 : index
    %133 = vector.load %arg20[%c0_91, %c0_92, %c0_93] : memref<4x4x32xf32, #tpu.memory_space<vmem>>, vector<1x4x32xf32>
    %134 = vector.shape_cast %133 : vector<1x4x32xf32> to vector<4x32xf32>
    %cst_94 = arith.constant dense<0.000000e+00> : vector<4x1xf32>
    %135 = tpu.matmul %134, %132, %cst_94 {dimension_numbers = #tpu.dot_dimension_numbers<[1], [0], [0], [1], [0, 0, 1, 1], [], []>} : vector<4x32xf32>, vector<32x1xf32>, vector<4x1xf32> -> vector<4x1xf32>
    %c0_95 = arith.constant 0 : index
    %c0_96 = arith.constant 0 : index
    %c0_97 = arith.constant 0 : index
    %136 = vector.load %arg21[%c0_95, %c0_96, %c0_97] : memref<4x4x1xf32, #tpu.memory_space<vmem>>, vector<1x4x1xf32>
    %137 = vector.shape_cast %136 : vector<1x4x1xf32> to vector<4x1xf32>
    %138 = arith.addf %135, %137 : vector<4x1xf32>
    %c0_98 = arith.constant 0 : index
    %c0_99 = arith.constant 0 : index
    %139 = vector.load %arg23[%c0_98, %c0_99] : memref<4x1xf32, #tpu.memory_space<vmem>>, vector<4x1xf32>
    tpu.vector_store %arg23[%c0_98, %c0_99], %138 {strides = array<i32>} : memref<4x1xf32, #tpu.memory_space<vmem>>, vector<4x1xf32>,
    %c0_100 = arith.constant 0 : index
    %c0_101 = arith.constant 0 : index
    %c0_102 = arith.constant 0 : index
    %c0_103 = arith.constant 0 : index
    %140 = vector.load %arg1[%c0_100, %c0_101, %c0_102, %c0_103] : memref<1x4x16x64xf32, #tpu.memory_space<vmem>>, vector<1x1x16x64xf32>
    %141 = vector.shape_cast %140 : vector<1x1x16x64xf32> to vector<16x64xf32>
    %c0_104 = arith.constant 0 : index
    %c0_105 = arith.constant 0 : index
    %142 = vector.load %arg23[%c0_104, %c0_105] : memref<4x1xf32, #tpu.memory_space<vmem>>, vector<1x1xf32>
    %143 = vector.extract_strided_slice %104 {offsets = [0, 0], sizes = [16, 64], strides = [1, 1]} : vector<64x64xf32> to vector<16x64xf32>
    %144 = vector.broadcast %142 : vector<1x1xf32> to vector<16x64xf32>
    %145 = arith.mulf %144, %143 : vector<16x64xf32>
    %146 = arith.addf %141, %145 : vector<16x64xf32>
    %c1_106 = arith.constant 1 : index
    %c0_107 = arith.constant 0 : index
    %147 = vector.load %arg23[%c1_106, %c0_107] : memref<4x1xf32, #tpu.memory_space<vmem>>, vector<1x1xf32>
    %148 = vector.extract_strided_slice %104 {offsets = [16, 0], sizes = [16, 64], strides = [1, 1]} : vector<64x64xf32> to vector<16x64xf32>
    %149 = vector.broadcast %147 : vector<1x1xf32> to vector<16x64xf32>
    %150 = arith.mulf %149, %148 : vector<16x64xf32>
    %151 = arith.addf %146, %150 : vector<16x64xf32>
    %c2_108 = arith.constant 2 : index
    %c0_109 = arith.constant 0 : index
    %152 = vector.load %arg23[%c2_108, %c0_109] : memref<4x1xf32, #tpu.memory_space<vmem>>, vector<1x1xf32>
    %153 = vector.extract_strided_slice %104 {offsets = [32, 0], sizes = [16, 64], strides = [1, 1]} : vector<64x64xf32> to vector<16x64xf32>
    %154 = vector.broadcast %152 : vector<1x1xf32> to vector<16x64xf32>
    %155 = arith.mulf %154, %153 : vector<16x64xf32>
    %156 = arith.addf %151, %155 : vector<16x64xf32>
    %c3_110 = arith.constant 3 : index
    %c0_111 = arith.constant 0 : index
    %157 = vector.load %arg23[%c3_110, %c0_111] : memref<4x1xf32, #tpu.memory_space<vmem>>, vector<1x1xf32>
    %158 = vector.extract_strided_slice %104 {offsets = [48, 0], sizes = [16, 64], strides = [1, 1]} : vector<64x64xf32> to vector<16x64xf32>
    %159 = vector.broadcast %157 : vector<1x1xf32> to vector<16x64xf32>
    %160 = arith.mulf %159, %158 : vector<16x64xf32>
    %161 = arith.addf %156, %160 : vector<16x64xf32>
    %c0_112 = arith.constant 0 : index
    %c0_113 = arith.constant 0 : index
    %c0_114 = arith.constant 0 : index
    %c0_115 = arith.constant 0 : index
    %162 = vector.load %arg22[%c0_112, %c0_113, %c0_114, %c0_115] : memref<1x4x16x64xf32, #tpu.memory_space<vmem>>, vector<1x1x16x64xf32>
    %163 = vector.shape_cast %162 : vector<1x1x16x64xf32> to vector<16x64xf32>
    %164 = vector.shape_cast %161 : vector<16x64xf32> to vector<1x1x16x64xf32>
    tpu.vector_store %arg22[%c0_112, %c0_113, %c0_114, %c0_115], %164 {strides = array<i32>} : memref<1x4x16x64xf32, #tpu.memory_space<vmem>>, vector<1x1x16x64xf32>,
    %c0_116 = arith.constant 0 : index
    %c1_117 = arith.constant 1 : index
    %165 = vector.load %arg3[%c0_116, %c1_117] : memref<32x4xf32, #tpu.memory_space<vmem>>, vector<32x1xf32>
    %166 = arith.addf %165, %108 : vector<32x1xf32>
    %c0_118 = arith.constant 0 : index
    %c0_119 = arith.constant 0 : index
    %167 = vector.load %arg7[%c0_118, %c0_119] : memref<32x32xf32, #tpu.memory_space<vmem>>, vector<32x32xf32>
    %cst_120 = arith.constant dense<0.000000e+00> : vector<32x1xf32>
    %168 = tpu.matmul %167, %166, %cst_120 {dimension_numbers = #tpu.dot_dimension_numbers<[1], [0], [0], [1], [0, 0, 1, 1], [], []>} : vector<32x32xf32>, vector<32x1xf32>, vector<32x1xf32> -> vector<32x1xf32>
    %c0_121 = arith.constant 0 : index
    %c0_122 = arith.constant 0 : index
    %169 = vector.load %arg8[%c0_121, %c0_122] : memref<32x1xf32, #tpu.memory_space<vmem>>, vector<32x1xf32>
    %170 = arith.addf %168, %169 : vector<32x1xf32>
    %cst_123 = arith.constant 0.000000e+00 : f32
    %171 = vector.broadcast %cst_123 : f32 to vector<32x1xf32>
    %172 = arith.maximumf %170, %171 : vector<32x1xf32>
    %c1_124 = arith.constant 1 : index
    %c0_125 = arith.constant 0 : index
    %c0_126 = arith.constant 0 : index
    %173 = vector.load %arg16[%c1_124, %c0_125, %c0_126] : memref<4x32x32xf32, #tpu.memory_space<vmem>>, vector<1x32x32xf32>
    %174 = vector.shape_cast %173 : vector<1x32x32xf32> to vector<32x32xf32>
    %cst_127 = arith.constant dense<0.000000e+00> : vector<32x1xf32>
    %175 = tpu.matmul %174, %172, %cst_127 {dimension_numbers = #tpu.dot_dimension_numbers<[1], [0], [0], [1], [0, 0, 1, 1], [], []>} : vector<32x32xf32>, vector<32x1xf32>, vector<32x1xf32> -> vector<32x1xf32>
    %c1_128 = arith.constant 1 : index
    %c0_129 = arith.constant 0 : index
    %c0_130 = arith.constant 0 : index
    %176 = vector.load %arg17[%c1_128, %c0_129, %c0_130] : memref<4x32x1xf32, #tpu.memory_space<vmem>>, vector<1x32x1xf32>
    %177 = vector.shape_cast %176 : vector<1x32x1xf32> to vector<32x1xf32>
    %178 = arith.addf %175, %177 : vector<32x1xf32>
    %cst_131 = arith.constant 0.000000e+00 : f32
    %179 = vector.broadcast %cst_131 : f32 to vector<32x1xf32>
    %180 = arith.maximumf %178, %179 : vector<32x1xf32>
    %c1_132 = arith.constant 1 : index
    %c0_133 = arith.constant 0 : index
    %c0_134 = arith.constant 0 : index
    %181 = vector.load %arg18[%c1_132, %c0_133, %c0_134] : memref<4x32x32xf32, #tpu.memory_space<vmem>>, vector<1x32x32xf32>
    %182 = vector.shape_cast %181 : vector<1x32x32xf32> to vector<32x32xf32>
    %cst_135 = arith.constant dense<0.000000e+00> : vector<32x1xf32>
    %183 = tpu.matmul %182, %180, %cst_135 {dimension_numbers = #tpu.dot_dimension_numbers<[1], [0], [0], [1], [0, 0, 1, 1], [], []>} : vector<32x32xf32>, vector<32x1xf32>, vector<32x1xf32> -> vector<32x1xf32>
    %c1_136 = arith.constant 1 : index
    %c0_137 = arith.constant 0 : index
    %c0_138 = arith.constant 0 : index
    %184 = vector.load %arg19[%c1_136, %c0_137, %c0_138] : memref<4x32x1xf32, #tpu.memory_space<vmem>>, vector<1x32x1xf32>
    %185 = vector.shape_cast %184 : vector<1x32x1xf32> to vector<32x1xf32>
    %186 = arith.addf %183, %185 : vector<32x1xf32>
    %cst_139 = arith.constant 0.000000e+00 : f32
    %187 = vector.broadcast %cst_139 : f32 to vector<32x1xf32>
    %188 = arith.maximumf %186, %187 : vector<32x1xf32>
    %c1_140 = arith.constant 1 : index
    %c0_141 = arith.constant 0 : index
    %c0_142 = arith.constant 0 : index
    %189 = vector.load %arg20[%c1_140, %c0_141, %c0_142] : memref<4x4x32xf32, #tpu.memory_space<vmem>>, vector<1x4x32xf32>
    %190 = vector.shape_cast %189 : vector<1x4x32xf32> to vector<4x32xf32>
    %cst_143 = arith.constant dense<0.000000e+00> : vector<4x1xf32>
    %191 = tpu.matmul %190, %188, %cst_143 {dimension_numbers = #tpu.dot_dimension_numbers<[1], [0], [0], [1], [0, 0, 1, 1], [], []>} : vector<4x32xf32>, vector<32x1xf32>, vector<4x1xf32> -> vector<4x1xf32>
    %c1_144 = arith.constant 1 : index
    %c0_145 = arith.constant 0 : index
    %c0_146 = arith.constant 0 : index
    %192 = vector.load %arg21[%c1_144, %c0_145, %c0_146] : memref<4x4x1xf32, #tpu.memory_space<vmem>>, vector<1x4x1xf32>
    %193 = vector.shape_cast %192 : vector<1x4x1xf32> to vector<4x1xf32>
    %194 = arith.addf %191, %193 : vector<4x1xf32>
    %c0_147 = arith.constant 0 : index
    %c0_148 = arith.constant 0 : index
    %195 = vector.load %arg23[%c0_147, %c0_148] : memref<4x1xf32, #tpu.memory_space<vmem>>, vector<4x1xf32>
    tpu.vector_store %arg23[%c0_147, %c0_148], %194 {strides = array<i32>} : memref<4x1xf32, #tpu.memory_space<vmem>>, vector<4x1xf32>,
    %c0_149 = arith.constant 0 : index
    %c1_150 = arith.constant 1 : index
    %c0_151 = arith.constant 0 : index
    %c0_152 = arith.constant 0 : index
    %196 = vector.load %arg1[%c0_149, %c1_150, %c0_151, %c0_152] : memref<1x4x16x64xf32, #tpu.memory_space<vmem>>, vector<1x1x16x64xf32>
    %197 = vector.shape_cast %196 : vector<1x1x16x64xf32> to vector<16x64xf32>
    %c0_153 = arith.constant 0 : index
    %c0_154 = arith.constant 0 : index
    %198 = vector.load %arg23[%c0_153, %c0_154] : memref<4x1xf32, #tpu.memory_space<vmem>>, vector<1x1xf32>
    %199 = vector.extract_strided_slice %104 {offsets = [0, 0], sizes = [16, 64], strides = [1, 1]} : vector<64x64xf32> to vector<16x64xf32>
    %200 = vector.broadcast %198 : vector<1x1xf32> to vector<16x64xf32>
    %201 = arith.mulf %200, %199 : vector<16x64xf32>
    %202 = arith.addf %197, %201 : vector<16x64xf32>
    %c1_155 = arith.constant 1 : index
    %c0_156 = arith.constant 0 : index
    %203 = vector.load %arg23[%c1_155, %c0_156] : memref<4x1xf32, #tpu.memory_space<vmem>>, vector<1x1xf32>
    %204 = vector.extract_strided_slice %104 {offsets = [16, 0], sizes = [16, 64], strides = [1, 1]} : vector<64x64xf32> to vector<16x64xf32>
    %205 = vector.broadcast %203 : vector<1x1xf32> to vector<16x64xf32>
    %206 = arith.mulf %205, %204 : vector<16x64xf32>
    %207 = arith.addf %202, %206 : vector<16x64xf32>
    %c2_157 = arith.constant 2 : index
    %c0_158 = arith.constant 0 : index
    %208 = vector.load %arg23[%c2_157, %c0_158] : memref<4x1xf32, #tpu.memory_space<vmem>>, vector<1x1xf32>
    %209 = vector.extract_strided_slice %104 {offsets = [32, 0], sizes = [16, 64], strides = [1, 1]} : vector<64x64xf32> to vector<16x64xf32>
    %210 = vector.broadcast %208 : vector<1x1xf32> to vector<16x64xf32>
    %211 = arith.mulf %210, %209 : vector<16x64xf32>
    %212 = arith.addf %207, %211 : vector<16x64xf32>
    %c3_159 = arith.constant 3 : index
    %c0_160 = arith.constant 0 : index
    %213 = vector.load %arg23[%c3_159, %c0_160] : memref<4x1xf32, #tpu.memory_space<vmem>>, vector<1x1xf32>
    %214 = vector.extract_strided_slice %104 {offsets = [48, 0], sizes = [16, 64], strides = [1, 1]} : vector<64x64xf32> to vector<16x64xf32>
    %215 = vector.broadcast %213 : vector<1x1xf32> to vector<16x64xf32>
    %216 = arith.mulf %215, %214 : vector<16x64xf32>
    %217 = arith.addf %212, %216 : vector<16x64xf32>
    %c0_161 = arith.constant 0 : index
    %c1_162 = arith.constant 1 : index
    %c0_163 = arith.constant 0 : index
    %c0_164 = arith.constant 0 : index
    %218 = vector.load %arg22[%c0_161, %c1_162, %c0_163, %c0_164] : memref<1x4x16x64xf32, #tpu.memory_space<vmem>>, vector<1x1x16x64xf32>
    %219 = vector.shape_cast %218 : vector<1x1x16x64xf32> to vector<16x64xf32>
    %220 = vector.shape_cast %217 : vector<16x64xf32> to vector<1x1x16x64xf32>
    tpu.vector_store %arg22[%c0_161, %c1_162, %c0_163, %c0_164], %220 {strides = array<i32>} : memref<1x4x16x64xf32, #tpu.memory_space<vmem>>, vector<1x1x16x64xf32>,
    %c0_165 = arith.constant 0 : index
    %c2_166 = arith.constant 2 : index
    %221 = vector.load %arg3[%c0_165, %c2_166] : memref<32x4xf32, #tpu.memory_space<vmem>>, vector<32x1xf32>
    %222 = arith.addf %221, %108 : vector<32x1xf32>
    %c0_167 = arith.constant 0 : index
    %c0_168 = arith.constant 0 : index
    %223 = vector.load %arg7[%c0_167, %c0_168] : memref<32x32xf32, #tpu.memory_space<vmem>>, vector<32x32xf32>
    %cst_169 = arith.constant dense<0.000000e+00> : vector<32x1xf32>
    %224 = tpu.matmul %223, %222, %cst_169 {dimension_numbers = #tpu.dot_dimension_numbers<[1], [0], [0], [1], [0, 0, 1, 1], [], []>} : vector<32x32xf32>, vector<32x1xf32>, vector<32x1xf32> -> vector<32x1xf32>
    %c0_170 = arith.constant 0 : index
    %c0_171 = arith.constant 0 : index
    %225 = vector.load %arg8[%c0_170, %c0_171] : memref<32x1xf32, #tpu.memory_space<vmem>>, vector<32x1xf32>
    %226 = arith.addf %224, %225 : vector<32x1xf32>
    %cst_172 = arith.constant 0.000000e+00 : f32
    %227 = vector.broadcast %cst_172 : f32 to vector<32x1xf32>
    %228 = arith.maximumf %226, %227 : vector<32x1xf32>
    %c2_173 = arith.constant 2 : index
    %c0_174 = arith.constant 0 : index
    %c0_175 = arith.constant 0 : index
    %229 = vector.load %arg16[%c2_173, %c0_174, %c0_175] : memref<4x32x32xf32, #tpu.memory_space<vmem>>, vector<1x32x32xf32>
    %230 = vector.shape_cast %229 : vector<1x32x32xf32> to vector<32x32xf32>
    %cst_176 = arith.constant dense<0.000000e+00> : vector<32x1xf32>
    %231 = tpu.matmul %230, %228, %cst_176 {dimension_numbers = #tpu.dot_dimension_numbers<[1], [0], [0], [1], [0, 0, 1, 1], [], []>} : vector<32x32xf32>, vector<32x1xf32>, vector<32x1xf32> -> vector<32x1xf32>
    %c2_177 = arith.constant 2 : index
    %c0_178 = arith.constant 0 : index
    %c0_179 = arith.constant 0 : index
    %232 = vector.load %arg17[%c2_177, %c0_178, %c0_179] : memref<4x32x1xf32, #tpu.memory_space<vmem>>, vector<1x32x1xf32>
    %233 = vector.shape_cast %232 : vector<1x32x1xf32> to vector<32x1xf32>
    %234 = arith.addf %231, %233 : vector<32x1xf32>
    %cst_180 = arith.constant 0.000000e+00 : f32
    %235 = vector.broadcast %cst_180 : f32 to vector<32x1xf32>
    %236 = arith.maximumf %234, %235 : vector<32x1xf32>
    %c2_181 = arith.constant 2 : index
    %c0_182 = arith.constant 0 : index
    %c0_183 = arith.constant 0 : index
    %237 = vector.load %arg18[%c2_181, %c0_182, %c0_183] : memref<4x32x32xf32, #tpu.memory_space<vmem>>, vector<1x32x32xf32>
    %238 = vector.shape_cast %237 : vector<1x32x32xf32> to vector<32x32xf32>
    %cst_184 = arith.constant dense<0.000000e+00> : vector<32x1xf32>
    %239 = tpu.matmul %238, %236, %cst_184 {dimension_numbers = #tpu.dot_dimension_numbers<[1], [0], [0], [1], [0, 0, 1, 1], [], []>} : vector<32x32xf32>, vector<32x1xf32>, vector<32x1xf32> -> vector<32x1xf32>
    %c2_185 = arith.constant 2 : index
    %c0_186 = arith.constant 0 : index
    %c0_187 = arith.constant 0 : index
    %240 = vector.load %arg19[%c2_185, %c0_186, %c0_187] : memref<4x32x1xf32, #tpu.memory_space<vmem>>, vector<1x32x1xf32>
    %241 = vector.shape_cast %240 : vector<1x32x1xf32> to vector<32x1xf32>
    %242 = arith.addf %239, %241 : vector<32x1xf32>
    %cst_188 = arith.constant 0.000000e+00 : f32
    %243 = vector.broadcast %cst_188 : f32 to vector<32x1xf32>
    %244 = arith.maximumf %242, %243 : vector<32x1xf32>
    %c2_189 = arith.constant 2 : index
    %c0_190 = arith.constant 0 : index
    %c0_191 = arith.constant 0 : index
    %245 = vector.load %arg20[%c2_189, %c0_190, %c0_191] : memref<4x4x32xf32, #tpu.memory_space<vmem>>, vector<1x4x32xf32>
    %246 = vector.shape_cast %245 : vector<1x4x32xf32> to vector<4x32xf32>
    %cst_192 = arith.constant dense<0.000000e+00> : vector<4x1xf32>
    %247 = tpu.matmul %246, %244, %cst_192 {dimension_numbers = #tpu.dot_dimension_numbers<[1], [0], [0], [1], [0, 0, 1, 1], [], []>} : vector<4x32xf32>, vector<32x1xf32>, vector<4x1xf32> -> vector<4x1xf32>
    %c2_193 = arith.constant 2 : index
    %c0_194 = arith.constant 0 : index
    %c0_195 = arith.constant 0 : index
    %248 = vector.load %arg21[%c2_193, %c0_194, %c0_195] : memref<4x4x1xf32, #tpu.memory_space<vmem>>, vector<1x4x1xf32>
    %249 = vector.shape_cast %248 : vector<1x4x1xf32> to vector<4x1xf32>
    %250 = arith.addf %247, %249 : vector<4x1xf32>
    %c0_196 = arith.constant 0 : index
    %c0_197 = arith.constant 0 : index
    %251 = vector.load %arg23[%c0_196, %c0_197] : memref<4x1xf32, #tpu.memory_space<vmem>>, vector<4x1xf32>
    tpu.vector_store %arg23[%c0_196, %c0_197], %250 {strides = array<i32>} : memref<4x1xf32, #tpu.memory_space<vmem>>, vector<4x1xf32>,
    %c0_198 = arith.constant 0 : index
    %c2_199 = arith.constant 2 : index
    %c0_200 = arith.constant 0 : index
    %c0_201 = arith.constant 0 : index
    %252 = vector.load %arg1[%c0_198, %c2_199, %c0_200, %c0_201] : memref<1x4x16x64xf32, #tpu.memory_space<vmem>>, vector<1x1x16x64xf32>
    %253 = vector.shape_cast %252 : vector<1x1x16x64xf32> to vector<16x64xf32>
    %c0_202 = arith.constant 0 : index
    %c0_203 = arith.constant 0 : index
    %254 = vector.load %arg23[%c0_202, %c0_203] : memref<4x1xf32, #tpu.memory_space<vmem>>, vector<1x1xf32>
    %255 = vector.extract_strided_slice %104 {offsets = [0, 0], sizes = [16, 64], strides = [1, 1]} : vector<64x64xf32> to vector<16x64xf32>
    %256 = vector.broadcast %254 : vector<1x1xf32> to vector<16x64xf32>
    %257 = arith.mulf %256, %255 : vector<16x64xf32>
    %258 = arith.addf %253, %257 : vector<16x64xf32>
    %c1_204 = arith.constant 1 : index
    %c0_205 = arith.constant 0 : index
    %259 = vector.load %arg23[%c1_204, %c0_205] : memref<4x1xf32, #tpu.memory_space<vmem>>, vector<1x1xf32>
    %260 = vector.extract_strided_slice %104 {offsets = [16, 0], sizes = [16, 64], strides = [1, 1]} : vector<64x64xf32> to vector<16x64xf32>
    %261 = vector.broadcast %259 : vector<1x1xf32> to vector<16x64xf32>
    %262 = arith.mulf %261, %260 : vector<16x64xf32>
    %263 = arith.addf %258, %262 : vector<16x64xf32>
    %c2_206 = arith.constant 2 : index
    %c0_207 = arith.constant 0 : index
    %264 = vector.load %arg23[%c2_206, %c0_207] : memref<4x1xf32, #tpu.memory_space<vmem>>, vector<1x1xf32>
    %265 = vector.extract_strided_slice %104 {offsets = [32, 0], sizes = [16, 64], strides = [1, 1]} : vector<64x64xf32> to vector<16x64xf32>
    %266 = vector.broadcast %264 : vector<1x1xf32> to vector<16x64xf32>
    %267 = arith.mulf %266, %265 : vector<16x64xf32>
    %268 = arith.addf %263, %267 : vector<16x64xf32>
    %c3_208 = arith.constant 3 : index
    %c0_209 = arith.constant 0 : index
    %269 = vector.load %arg23[%c3_208, %c0_209] : memref<4x1xf32, #tpu.memory_space<vmem>>, vector<1x1xf32>
    %270 = vector.extract_strided_slice %104 {offsets = [48, 0], sizes = [16, 64], strides = [1, 1]} : vector<64x64xf32> to vector<16x64xf32>
    %271 = vector.broadcast %269 : vector<1x1xf32> to vector<16x64xf32>
    %272 = arith.mulf %271, %270 : vector<16x64xf32>
    %273 = arith.addf %268, %272 : vector<16x64xf32>
    %c0_210 = arith.constant 0 : index
    %c2_211 = arith.constant 2 : index
    %c0_212 = arith.constant 0 : index
    %c0_213 = arith.constant 0 : index
    %274 = vector.load %arg22[%c0_210, %c2_211, %c0_212, %c0_213] : memref<1x4x16x64xf32, #tpu.memory_space<vmem>>, vector<1x1x16x64xf32>
    %275 = vector.shape_cast %274 : vector<1x1x16x64xf32> to vector<16x64xf32>
    %276 = vector.shape_cast %273 : vector<16x64xf32> to vector<1x1x16x64xf32>
    tpu.vector_store %arg22[%c0_210, %c2_211, %c0_212, %c0_213], %276 {strides = array<i32>} : memref<1x4x16x64xf32, #tpu.memory_space<vmem>>, vector<1x1x16x64xf32>,
    %c0_214 = arith.constant 0 : index
    %c3_215 = arith.constant 3 : index
    %277 = vector.load %arg3[%c0_214, %c3_215] : memref<32x4xf32, #tpu.memory_space<vmem>>, vector<32x1xf32>
    %278 = arith.addf %277, %108 : vector<32x1xf32>
    %c0_216 = arith.constant 0 : index
    %c0_217 = arith.constant 0 : index
    %279 = vector.load %arg7[%c0_216, %c0_217] : memref<32x32xf32, #tpu.memory_space<vmem>>, vector<32x32xf32>
    %cst_218 = arith.constant dense<0.000000e+00> : vector<32x1xf32>
    %280 = tpu.matmul %279, %278, %cst_218 {dimension_numbers = #tpu.dot_dimension_numbers<[1], [0], [0], [1], [0, 0, 1, 1], [], []>} : vector<32x32xf32>, vector<32x1xf32>, vector<32x1xf32> -> vector<32x1xf32>
    %c0_219 = arith.constant 0 : index
    %c0_220 = arith.constant 0 : index
    %281 = vector.load %arg8[%c0_219, %c0_220] : memref<32x1xf32, #tpu.memory_space<vmem>>, vector<32x1xf32>
    %282 = arith.addf %280, %281 : vector<32x1xf32>
    %cst_221 = arith.constant 0.000000e+00 : f32
    %283 = vector.broadcast %cst_221 : f32 to vector<32x1xf32>
    %284 = arith.maximumf %282, %283 : vector<32x1xf32>
    %c3_222 = arith.constant 3 : index
    %c0_223 = arith.constant 0 : index
    %c0_224 = arith.constant 0 : index
    %285 = vector.load %arg16[%c3_222, %c0_223, %c0_224] : memref<4x32x32xf32, #tpu.memory_space<vmem>>, vector<1x32x32xf32>
    %286 = vector.shape_cast %285 : vector<1x32x32xf32> to vector<32x32xf32>
    %cst_225 = arith.constant dense<0.000000e+00> : vector<32x1xf32>
    %287 = tpu.matmul %286, %284, %cst_225 {dimension_numbers = #tpu.dot_dimension_numbers<[1], [0], [0], [1], [0, 0, 1, 1], [], []>} : vector<32x32xf32>, vector<32x1xf32>, vector<32x1xf32> -> vector<32x1xf32>
    %c3_226 = arith.constant 3 : index
    %c0_227 = arith.constant 0 : index
    %c0_228 = arith.constant 0 : index
    %288 = vector.load %arg17[%c3_226, %c0_227, %c0_228] : memref<4x32x1xf32, #tpu.memory_space<vmem>>, vector<1x32x1xf32>
    %289 = vector.shape_cast %288 : vector<1x32x1xf32> to vector<32x1xf32>
    %290 = arith.addf %287, %289 : vector<32x1xf32>
    %cst_229 = arith.constant 0.000000e+00 : f32
    %291 = vector.broadcast %cst_229 : f32 to vector<32x1xf32>
    %292 = arith.maximumf %290, %291 : vector<32x1xf32>
    %c3_230 = arith.constant 3 : index
    %c0_231 = arith.constant 0 : index
    %c0_232 = arith.constant 0 : index
    %293 = vector.load %arg18[%c3_230, %c0_231, %c0_232] : memref<4x32x32xf32, #tpu.memory_space<vmem>>, vector<1x32x32xf32>
    %294 = vector.shape_cast %293 : vector<1x32x32xf32> to vector<32x32xf32>
    %cst_233 = arith.constant dense<0.000000e+00> : vector<32x1xf32>
    %295 = tpu.matmul %294, %292, %cst_233 {dimension_numbers = #tpu.dot_dimension_numbers<[1], [0], [0], [1], [0, 0, 1, 1], [], []>} : vector<32x32xf32>, vector<32x1xf32>, vector<32x1xf32> -> vector<32x1xf32>
    %c3_234 = arith.constant 3 : index
    %c0_235 = arith.constant 0 : index
    %c0_236 = arith.constant 0 : index
    %296 = vector.load %arg19[%c3_234, %c0_235, %c0_236] : memref<4x32x1xf32, #tpu.memory_space<vmem>>, vector<1x32x1xf32>
    %297 = vector.shape_cast %296 : vector<1x32x1xf32> to vector<32x1xf32>
    %298 = arith.addf %295, %297 : vector<32x1xf32>
    %cst_237 = arith.constant 0.000000e+00 : f32
    %299 = vector.broadcast %cst_237 : f32 to vector<32x1xf32>
    %300 = arith.maximumf %298, %299 : vector<32x1xf32>
    %c3_238 = arith.constant 3 : index
    %c0_239 = arith.constant 0 : index
    %c0_240 = arith.constant 0 : index
    %301 = vector.load %arg20[%c3_238, %c0_239, %c0_240] : memref<4x4x32xf32, #tpu.memory_space<vmem>>, vector<1x4x32xf32>
    %302 = vector.shape_cast %301 : vector<1x4x32xf32> to vector<4x32xf32>
    %cst_241 = arith.constant dense<0.000000e+00> : vector<4x1xf32>
    %303 = tpu.matmul %302, %300, %cst_241 {dimension_numbers = #tpu.dot_dimension_numbers<[1], [0], [0], [1], [0, 0, 1, 1], [], []>} : vector<4x32xf32>, vector<32x1xf32>, vector<4x1xf32> -> vector<4x1xf32>
    %c3_242 = arith.constant 3 : index
    %c0_243 = arith.constant 0 : index
    %c0_244 = arith.constant 0 : index
    %304 = vector.load %arg21[%c3_242, %c0_243, %c0_244] : memref<4x4x1xf32, #tpu.memory_space<vmem>>, vector<1x4x1xf32>
    %305 = vector.shape_cast %304 : vector<1x4x1xf32> to vector<4x1xf32>
    %306 = arith.addf %303, %305 : vector<4x1xf32>
    %c0_245 = arith.constant 0 : index
    %c0_246 = arith.constant 0 : index
    %307 = vector.load %arg23[%c0_245, %c0_246] : memref<4x1xf32, #tpu.memory_space<vmem>>, vector<4x1xf32>
    tpu.vector_store %arg23[%c0_245, %c0_246], %306 {strides = array<i32>} : memref<4x1xf32, #tpu.memory_space<vmem>>, vector<4x1xf32>,
    %c0_247 = arith.constant 0 : index
    %c3_248 = arith.constant 3 : index
    %c0_249 = arith.constant 0 : index
    %c0_250 = arith.constant 0 : index
    %308 = vector.load %arg1[%c0_247, %c3_248, %c0_249, %c0_250] : memref<1x4x16x64xf32, #tpu.memory_space<vmem>>, vector<1x1x16x64xf32>
    %309 = vector.shape_cast %308 : vector<1x1x16x64xf32> to vector<16x64xf32>
    %c0_251 = arith.constant 0 : index
    %c0_252 = arith.constant 0 : index
    %310 = vector.load %arg23[%c0_251, %c0_252] : memref<4x1xf32, #tpu.memory_space<vmem>>, vector<1x1xf32>
    %311 = vector.extract_strided_slice %104 {offsets = [0, 0], sizes = [16, 64], strides = [1, 1]} : vector<64x64xf32> to vector<16x64xf32>
    %312 = vector.broadcast %310 : vector<1x1xf32> to vector<16x64xf32>
    %313 = arith.mulf %312, %311 : vector<16x64xf32>
    %314 = arith.addf %309, %313 : vector<16x64xf32>
    %c1_253 = arith.constant 1 : index
    %c0_254 = arith.constant 0 : index
    %315 = vector.load %arg23[%c1_253, %c0_254] : memref<4x1xf32, #tpu.memory_space<vmem>>, vector<1x1xf32>
    %316 = vector.extract_strided_slice %104 {offsets = [16, 0], sizes = [16, 64], strides = [1, 1]} : vector<64x64xf32> to vector<16x64xf32>
    %317 = vector.broadcast %315 : vector<1x1xf32> to vector<16x64xf32>
    %318 = arith.mulf %317, %316 : vector<16x64xf32>
    %319 = arith.addf %314, %318 : vector<16x64xf32>
    %c2_255 = arith.constant 2 : index
    %c0_256 = arith.constant 0 : index
    %320 = vector.load %arg23[%c2_255, %c0_256] : memref<4x1xf32, #tpu.memory_space<vmem>>, vector<1x1xf32>
    %321 = vector.extract_strided_slice %104 {offsets = [32, 0], sizes = [16, 64], strides = [1, 1]} : vector<64x64xf32> to vector<16x64xf32>
    %322 = vector.broadcast %320 : vector<1x1xf32> to vector<16x64xf32>
    %323 = arith.mulf %322, %321 : vector<16x64xf32>
    %324 = arith.addf %319, %323 : vector<16x64xf32>
    %c3_257 = arith.constant 3 : index
    %c0_258 = arith.constant 0 : index
    %325 = vector.load %arg23[%c3_257, %c0_258] : memref<4x1xf32, #tpu.memory_space<vmem>>, vector<1x1xf32>
    %326 = vector.extract_strided_slice %104 {offsets = [48, 0], sizes = [16, 64], strides = [1, 1]} : vector<64x64xf32> to vector<16x64xf32>
    %327 = vector.broadcast %325 : vector<1x1xf32> to vector<16x64xf32>
    %328 = arith.mulf %327, %326 : vector<16x64xf32>
    %329 = arith.addf %324, %328 : vector<16x64xf32>
    %c0_259 = arith.constant 0 : index
    %c3_260 = arith.constant 3 : index
    %c0_261 = arith.constant 0 : index
    %c0_262 = arith.constant 0 : index
    %330 = vector.load %arg22[%c0_259, %c3_260, %c0_261, %c0_262] : memref<1x4x16x64xf32, #tpu.memory_space<vmem>>, vector<1x1x16x64xf32>
    %331 = vector.shape_cast %330 : vector<1x1x16x64xf32> to vector<16x64xf32>
    %332 = vector.shape_cast %329 : vector<16x64xf32> to vector<1x1x16x64xf32>
    tpu.vector_store %arg22[%c0_259, %c3_260, %c0_261, %c0_262], %332 {strides = array<i32>} : memref<1x4x16x64xf32, #tpu.memory_space<vmem>>, vector<1x1x16x64xf32>,
    return
  }
  func.func @transform_0(%arg0: i32) -> (i32, i32, i32, i32) {
    %c0_i32 = arith.constant 0 : i32
    %c0_i32_0 = arith.constant 0 : i32
    %c0_i32_1 = arith.constant 0 : i32
    %c0_i32_2 = arith.constant 0 : i32
    return %arg0, %c0_i32, %c0_i32_0, %c0_i32_1 : i32, i32, i32, i32
  }
  func.func @transform_1(%arg0: i32) -> (i32, i32, i32) {
    %c0_i32 = arith.constant 0 : i32
    %c0_i32_0 = arith.constant 0 : i32
    %c0_i32_1 = arith.constant 0 : i32
    return %arg0, %c0_i32, %c0_i32_0 : i32, i32, i32
  }
  func.func @transform_2(%arg0: i32) -> (i32, i32) {
    %c0_i32 = arith.constant 0 : i32
    %c0_i32_0 = arith.constant 0 : i32
    %c0_i32_1 = arith.constant 0 : i32
    return %c0_i32, %c0_i32_0 : i32, i32
  }
  func.func @transform_3(%arg0: i32) -> (i32, i32) {
    %c0_i32 = arith.constant 0 : i32
    %c0_i32_0 = arith.constant 0 : i32
    %c0_i32_1 = arith.constant 0 : i32
    return %c0_i32, %c0_i32_0 : i32, i32
  }
  func.func @transform_4(%arg0: i32) -> (i32, i32) {
    %c0_i32 = arith.constant 0 : i32
    %c0_i32_0 = arith.constant 0 : i32
    %c0_i32_1 = arith.constant 0 : i32
    return %c0_i32, %c0_i32_0 : i32, i32
  }
  func.func @transform_5(%arg0: i32) -> (i32, i32) {
    %c0_i32 = arith.constant 0 : i32
    %c0_i32_0 = arith.constant 0 : i32
    %c0_i32_1 = arith.constant 0 : i32
    return %c0_i32, %c0_i32_0 : i32, i32
  }
  func.func @transform_6(%arg0: i32) -> (i32, i32) {
    %c0_i32 = arith.constant 0 : i32
    %c0_i32_0 = arith.constant 0 : i32
    %c0_i32_1 = arith.constant 0 : i32
    return %c0_i32, %c0_i32_0 : i32, i32
  }
  func.func @transform_7(%arg0: i32) -> (i32, i32) {
    %c0_i32 = arith.constant 0 : i32
    %c0_i32_0 = arith.constant 0 : i32
    %c0_i32_1 = arith.constant 0 : i32
    return %c0_i32, %c0_i32_0 : i32, i32
  }
  func.func @transform_8(%arg0: i32) -> (i32, i32) {
    %c0_i32 = arith.constant 0 : i32
    %c0_i32_0 = arith.constant 0 : i32
    %c0_i32_1 = arith.constant 0 : i32
    return %c0_i32, %c0_i32_0 : i32, i32
  }
  func.func @transform_9(%arg0: i32) -> (i32, i32) {
    %c0_i32 = arith.constant 0 : i32
    %c0_i32_0 = arith.constant 0 : i32
    %c0_i32_1 = arith.constant 0 : i32
    return %c0_i32, %c0_i32_0 : i32, i32
  }
  func.func @transform_10(%arg0: i32) -> (i32, i32) {
    %c0_i32 = arith.constant 0 : i32
    %c0_i32_0 = arith.constant 0 : i32
    %c0_i32_1 = arith.constant 0 : i32
    return %c0_i32, %c0_i32_0 : i32, i32
  }
  func.func @transform_11(%arg0: i32) -> (i32, i32) {
    %c0_i32 = arith.constant 0 : i32
    %c0_i32_0 = arith.constant 0 : i32
    %c0_i32_1 = arith.constant 0 : i32
    return %c0_i32, %c0_i32_0 : i32, i32
  }
  func.func @transform_12(%arg0: i32) -> (i32, i32) {
    %c0_i32 = arith.constant 0 : i32
    %c0_i32_0 = arith.constant 0 : i32
    %c0_i32_1 = arith.constant 0 : i32
    return %c0_i32, %c0_i32_0 : i32, i32
  }
  func.func @transform_13(%arg0: i32) -> (i32, i32) {
    %c0_i32 = arith.constant 0 : i32
    %c0_i32_0 = arith.constant 0 : i32
    %c0_i32_1 = arith.constant 0 : i32
    return %c0_i32, %c0_i32_0 : i32, i32
  }
  func.func @transform_14(%arg0: i32) -> (i32, i32) {
    %c0_i32 = arith.constant 0 : i32
    %c0_i32_0 = arith.constant 0 : i32
    %c0_i32_1 = arith.constant 0 : i32
    return %c0_i32, %c0_i32_0 : i32, i32
  }
  func.func @transform_15(%arg0: i32) -> (i32, i32, i32) {
    %c0_i32 = arith.constant 0 : i32
    %c0_i32_0 = arith.constant 0 : i32
    %c0_i32_1 = arith.constant 0 : i32
    %c0_i32_2 = arith.constant 0 : i32
    return %c0_i32, %c0_i32_0, %c0_i32_1 : i32, i32, i32
  }
  func.func @transform_16(%arg0: i32) -> (i32, i32, i32) {
    %c0_i32 = arith.constant 0 : i32
    %c0_i32_0 = arith.constant 0 : i32
    %c0_i32_1 = arith.constant 0 : i32
    %c0_i32_2 = arith.constant 0 : i32
    return %c0_i32, %c0_i32_0, %c0_i32_1 : i32, i32, i32
  }
  func.func @transform_17(%arg0: i32) -> (i32, i32, i32) {
    %c0_i32 = arith.constant 0 : i32
    %c0_i32_0 = arith.constant 0 : i32
    %c0_i32_1 = arith.constant 0 : i32
    %c0_i32_2 = arith.constant 0 : i32
    return %c0_i32, %c0_i32_0, %c0_i32_1 : i32, i32, i32
  }
  func.func @transform_18(%arg0: i32) -> (i32, i32, i32) {
    %c0_i32 = arith.constant 0 : i32
    %c0_i32_0 = arith.constant 0 : i32
    %c0_i32_1 = arith.constant 0 : i32
    %c0_i32_2 = arith.constant 0 : i32
    return %c0_i32, %c0_i32_0, %c0_i32_1 : i32, i32, i32
  }
  func.func @transform_19(%arg0: i32) -> (i32, i32, i32) {
    %c0_i32 = arith.constant 0 : i32
    %c0_i32_0 = arith.constant 0 : i32
    %c0_i32_1 = arith.constant 0 : i32
    %c0_i32_2 = arith.constant 0 : i32
    return %c0_i32, %c0_i32_0, %c0_i32_1 : i32, i32, i32
  }
  func.func @transform_20(%arg0: i32) -> (i32, i32, i32) {
    %c0_i32 = arith.constant 0 : i32
    %c0_i32_0 = arith.constant 0 : i32
    %c0_i32_1 = arith.constant 0 : i32
    %c0_i32_2 = arith.constant 0 : i32
    return %c0_i32, %c0_i32_0, %c0_i32_1 : i32, i32, i32
  }
  func.func @transform_21(%arg0: i32) -> (i32, i32, i32, i32) {
    %c0_i32 = arith.constant 0 : i32
    %c0_i32_0 = arith.constant 0 : i32
    %c0_i32_1 = arith.constant 0 : i32
    %c0_i32_2 = arith.constant 0 : i32
    return %arg0, %c0_i32, %c0_i32_0, %c0_i32_1 : i32, i32, i32, i32
  }
}

</mosaic_0001>

<llo_original>
// kernel: tile.18
$region0: #{tile.18}
  #allocation0 [shape = 's32[1]{0}', space=sflag, size = 0x4, scoped, tag = 'scoped memory for tile.18']
  %s0 = inlined_call_operand.vmem [shape: f32[8], index: 0, kind: input, shape index: {}]
  %s1 = inlined_call_operand.vmem [shape: f32[4,8], index: 1, kind: output, shape index: {}]
  // Predicated region
  $region2: #{tile.18} parent=0 // pred_check
    _
  $region3: #{tile.18} parent=0 // pred_check_branch
    %3 = sbr.rel (0) target = $region5
  $region4: #{tile.18} parent=0 // pred_region
    _
  $region5: #{tile.18} parent=0 // pred_fallthru
    _
  %v4 = vld [vmem:[%s0] ss:$0 sm:$0xff]
  %5 = vst [vmem:[%s1] sm:$0xf] %v4

// kernel: tile.0
$region0: #{tile.0}
  %s0 = inlined_call_operand.vmem [shape: f32[4,8], index: 0, kind: input, shape index: {}]
  %s1 = inlined_call_operand.vmem [shape: f32[32,1], index: 1, kind: output, shape index: {}]
  $region1: #{tile.0} parent=0
    #allocation0 [shape = 'u8[4096]{0}', space=vmem, size = 0x1000, scoped, tag = 'scoped mem for input reshape']
    %s3 = ssub.s32 16, 1
    %v4 = vld [vmem:[%s0] sm:%s3]
    %5 = vst [vmem:[#allocation0] sm:%s3] %v4
    %v6 = vld [vmem:[#allocation0] sm:$0xf]
    %vm7 = vcmask 7168
    %8 = vst.msk [vmem:[%s1] ss:$8 sm:$0xf] %vm7, %v6
    %v9 = vld [vmem:[#allocation0] sm:$0xf]
    %10 = vrot.lane.b32.xlu0 %v9, 127
    %v11 = vpop.permute.xlu0 %10
    %vm12 = vcmask 7168
    %s13 = scalar_lea.vmem %s1, 1
    %14 = vst.msk [vmem:[%s13] ss:$8 sm:$0xf] %vm12, %v11
    %v15 = vld [vmem:[#allocation0] sm:$0xf]
    %16 = vrot.lane.b32.xlu0 %v15, 126
    %v17 = vpop.permute.xlu0 %16
    %vm18 = vcmask 7168
    %s19 = scalar_lea.vmem %s1, 2
    %20 = vst.msk [vmem:[%s19] ss:$8 sm:$0xf] %vm18, %v17
    %v21 = vld [vmem:[#allocation0] sm:$0xf]
    %22 = vrot.lane.b32.xlu0 %v21, 125
    %v23 = vpop.permute.xlu0 %22
    %vm24 = vcmask 7168
    %s25 = scalar_lea.vmem %s1, 3
    %26 = vst.msk [vmem:[%s25] ss:$8 sm:$0xf] %vm24, %v23
    %v27 = vld [vmem:[#allocation0] sm:$0xf]
    %28 = vrot.lane.b32.xlu0 %v27, 124
    %v29 = vpop.permute.xlu0 %28
    %vm30 = vcmask 7168
    %s31 = scalar_lea.vmem %s1, 4
    %32 = vst.msk [vmem:[%s31] ss:$8 sm:$0xf] %vm30, %v29
    %v33 = vld [vmem:[#allocation0] sm:$0xf]
    %34 = vrot.lane.b32.xlu0 %v33, 123
    %v35 = vpop.permute.xlu0 %34
    %vm36 = vcmask 7168
    %s37 = scalar_lea.vmem %s1, 5
    %38 = vst.msk [vmem:[%s37] ss:$8 sm:$0xf] %vm36, %v35
    %v39 = vld [vmem:[#allocation0] sm:$0xf]
    %40 = vrot.lane.b32.xlu0 %v39, 122
    %v41 = vpop.permute.xlu0 %40
    %vm42 = vcmask 7168
    %s43 = scalar_lea.vmem %s1, 6
    %44 = vst.msk [vmem:[%s43] ss:$8 sm:$0xf] %vm42, %v41
    %v45 = vld [vmem:[#allocation0] sm:$0xf]
    %46 = vrot.lane.b32.xlu0 %v45, 121
    %v47 = vpop.permute.xlu0 %46
    %vm48 = vcmask 7168
    %s49 = scalar_lea.vmem %s1, 7
    %50 = vst.msk [vmem:[%s49] ss:$8 sm:$0xf] %vm48, %v47

// kernel: mask_decoder_iter_forward.2
$region0: #{mask_decoder_iter_forward.2}
  #allocation0 [shape = 'u32[]', space=smem, size = 0x4, offset = 0x4, fixed_abs, tag = 'smem constant byte address 0x4 - core index']
  #allocation1 [shape = 'u32[72,128]{1,0:T(1,128)}', space=vmem, size = 0x9000, scoped, tag = 'internal scratch']
  #allocation2 [shape = 'f32[4,1]{1,0:T(4,128)}', space=vmem, size = 0x800, scoped, tag = 'scratch operand']
  %s0 = inlined_call_operand.vmem [shape: f32[2,4,16,64], index: 0, kind: input, shape index: {}]
  %s1 = inlined_call_operand.vmem [shape: f32[2,32,64], index: 1, kind: input, shape index: {}]
  %s2 = inlined_call_operand.vmem [shape: f32[32,4], index: 2, kind: input, shape index: {}]
  %s3 = inlined_call_operand.vmem [shape: f32[32,4], index: 3, kind: input, shape index: {}]
  %s4 = inlined_call_operand.vmem [shape: f32[32,32], index: 4, kind: input, shape index: {}]
  %s5 = inlined_call_operand.vmem [shape: f32[32,1], index: 5, kind: input, shape index: {}]
  %s6 = inlined_call_operand.vmem [shape: f32[32,32], index: 6, kind: input, shape index: {}]
  %s7 = inlined_call_operand.vmem [shape: f32[32,1], index: 7, kind: input, shape index: {}]
  %s8 = inlined_call_operand.vmem [shape: f32[32,32], index: 8, kind: input, shape index: {}]
  %s9 = inlined_call_operand.vmem [shape: f32[32,1], index: 9, kind: input, shape index: {}]
  %s10 = inlined_call_operand.vmem [shape: f32[32,32], index: 10, kind: input, shape index: {}]
  %s11 = inlined_call_operand.vmem [shape: f32[32,1], index: 11, kind: input, shape index: {}]
  %s12 = inlined_call_operand.vmem [shape: f32[32,1], index: 12, kind: input, shape index: {}]
  %s13 = inlined_call_operand.vmem [shape: f32[64,32], index: 13, kind: input, shape index: {}]
  %s14 = inlined_call_operand.vmem [shape: f32[64,1], index: 14, kind: input, shape index: {}]
  %s15 = inlined_call_operand.vmem [shape: f32[4,32,32], index: 15, kind: input, shape index: {}]
  %s16 = inlined_call_operand.vmem [shape: f32[4,32,1], index: 16, kind: input, shape index: {}]
  %s17 = inlined_call_operand.vmem [shape: f32[4,32,32], index: 17, kind: input, shape index: {}]
  %s18 = inlined_call_operand.vmem [shape: f32[4,32,1], index: 18, kind: input, shape index: {}]
  %s19 = inlined_call_operand.vmem [shape: f32[4,4,32], index: 19, kind: input, shape index: {}]
  %s20 = inlined_call_operand.vmem [shape: f32[4,4,1], index: 20, kind: input, shape index: {}]
  %s21 = inlined_call_operand.vmem [shape: f32[2,4,16,64], index: 21, kind: output, shape index: {}]
  %s22 = sld [smem:[#allocation0]]
  $region117: #{mask_decoder_iter_forward.2} parent=0
    _
  %s24 = ssub.s32 1, %s22
  %s25 = scalar_select 0, %s24, %s22
  loop: start=0, step=1, limit=4
  $region2: #{mask_decoder_iter_forward.2} parent=0 // loop_pre_header
    _
  $region3: #{mask_decoder_iter_forward.2} parent=0 // loop_header
    %s27 = sphi 0, %s31
    %p28 = scmp.ge.s32.totalorder %s27, 4
    %s37 = sphi 0, %s39
    %s40 = sphi 0, %s37
    %s41 = sphi 0, %s40
    %s57 = sphi 0, %s41
    %s63 = sphi 0, %s65
    %s66 = sphi 0, %s63
    %s67 = sphi 0, %s66
    %s83 = sphi 0, %s67
    %s87 = sphi 0, %s87
    %s89 = sphi 0, %s87
    %s90 = sphi 0, %s89
    %s104 = sphi 0, %s90
    %s108 = sphi 0, %s108
    %s110 = sphi 0, %s108
    %s111 = sphi 0, %s110
    %s125 = sphi 0, %s111
    %s129 = sphi 0, %s129
    %s131 = sphi 0, %s129
    %s132 = sphi 0, %s131
    %s146 = sphi 0, %s132
    %s150 = sphi 0, %s150
    %s152 = sphi 0, %s150
    %s153 = sphi 0, %s152
    %s167 = sphi 0, %s153
    %s171 = sphi 0, %s171
    %s173 = sphi 0, %s171
    %s174 = sphi 0, %s173
    %s188 = sphi 0, %s174
    %s192 = sphi 0, %s192
    %s194 = sphi 0, %s192
    %s195 = sphi 0, %s194
    %s209 = sphi 0, %s195
    %s213 = sphi 0, %s213
    %s215 = sphi 0, %s213
    %s216 = sphi 0, %s215
    %s230 = sphi 0, %s216
    %s234 = sphi 0, %s234
    %s236 = sphi 0, %s234
    %s237 = sphi 0, %s236
    %s251 = sphi 0, %s237
    %s255 = sphi 0, %s255
    %s257 = sphi 0, %s255
    %s258 = sphi 0, %s257
    %s272 = sphi 0, %s258
    %s276 = sphi 0, %s276
    %s278 = sphi 0, %s276
    %s279 = sphi 0, %s278
    %s293 = sphi 0, %s279
    %s297 = sphi 0, %s297
    %s299 = sphi 0, %s297
    %s300 = sphi 0, %s299
    %s314 = sphi 0, %s300
    %s318 = sphi 0, %s318
    %s320 = sphi 0, %s318
    %s321 = sphi 0, %s320
    %s335 = sphi 0, %s321
    %s339 = sphi 0, %s339
    %s341 = sphi 0, %s339
    %s342 = sphi 0, %s341
    %s356 = sphi 0, %s342
    %s360 = sphi 0, %s360
    %s362 = sphi 0, %s360
    %s363 = sphi 0, %s362
    %s377 = sphi 0, %s363
    %s381 = sphi 0, %s381
    %s383 = sphi 0, %s381
    %s384 = sphi 0, %s383
    %s398 = sphi 0, %s384
    %s402 = sphi 0, %s402
    %s404 = sphi 0, %s402
    %s405 = sphi 0, %s404
    %s419 = sphi 0, %s405
    %s423 = sphi 0, %s423
    %s425 = sphi 0, %s423
    %s426 = sphi 0, %s425
    %s440 = sphi 0, %s426
    %s444 = sphi 0, %s444
    %s446 = sphi 0, %s444
    %s447 = sphi 0, %s446
    %s461 = sphi 0, %s447
    %s465 = sphi 0, %s465
    %s467 = sphi 0, %s465
    %s468 = sphi 0, %s467
    %s482 = sphi 0, %s468
    %s488 = sphi 0, %s490
    %s491 = sphi 0, %s488
    %s492 = sphi 0, %s491
    %s508 = sphi 0, %s492
  $region4: #{mask_decoder_iter_forward.2} parent=0 // loop_header_branch
    %30 = sbr.rel (%p28) target = $region8
  $region5: #{mask_decoder_iter_forward.2} parent=0 // loop_body
    %s32 = ssub.s32 %s27, 1
    %s33 = ssub.s32 %s27, 2
    %s34 = sadd.s32 %s27, 1
    %s35 = ssub.s32 %s27, %s34
    %p36 = scmp.eq.s32.totalorder %s35, 0
    %s38 = sadd.s32 %s37, 1
    %s39 = scalar_select %p36, %s37, %s38
    %p42 = pneg %p36
    %p43 = scmp.eq.s32.totalorder %s27, 1
    %p44 = por %p42, %p43
    %p45 = scmp.ne.s32.totalorder %s37, %s40
    %p46 = scmp.eq.s32.totalorder %s27, 0
    %p47 = por %p45, %p46
    %p48 = scmp.ne.s32.totalorder %s37, %s40
    %p49 = scmp.eq.s32.totalorder %s32, 1
    %p50 = por %p48, %p49
    %p51 = scmp.ne.s32.totalorder %s40, %s41
    %p52 = scmp.eq.s32.totalorder %s32, 0
    %p53 = por %p51, %p52
    %p54 = scmp.ne.s32.totalorder %s40, %s41
    %p55 = scmp.eq.s32.totalorder %s33, 1
    %p56 = por %p54, %p55
    %p58 = scmp.ne.s32.totalorder %s41, %s57
    %p59 = scmp.eq.s32.totalorder %s33, 0
    %p60 = por %p58, %p59
    %s61 = ssub.s32 %s27, %s34
    %p62 = scmp.eq.s32.totalorder %s61, 0
    %s64 = sadd.s32 %s63, 1
    %s65 = scalar_select %p62, %s63, %s64
    %p68 = pneg %p62
    %p69 = scmp.eq.s32.totalorder %s27, 1
    %p70 = por %p68, %p69
    %p71 = scmp.ne.s32.totalorder %s63, %s66
    %p72 = scmp.eq.s32.totalorder %s27, 0
    %p73 = por %p71, %p72
    %p74 = scmp.ne.s32.totalorder %s63, %s66
    %p75 = scmp.eq.s32.totalorder %s32, 1
    %p76 = por %p74, %p75
    %p77 = scmp.ne.s32.totalorder %s66, %s67
    %p78 = scmp.eq.s32.totalorder %s32, 0
    %p79 = por %p77, %p78
    %p80 = scmp.ne.s32.totalorder %s66, %s67
    %p81 = scmp.eq.s32.totalorder %s33, 1
    %p82 = por %p80, %p81
    %p84 = scmp.ne.s32.totalorder %s67, %s83
    %p85 = scmp.eq.s32.totalorder %s33, 0
    %p86 = por %p84, %p85
    %s88 = sadd.s32 %s87, 1
    %p91 = scmp.eq.s32.totalorder %s27, 1
    %p92 = scmp.ne.s32.totalorder %s87, %s89
    %p93 = scmp.eq.s32.totalorder %s27, 0
    %p94 = por %p92, %p93
    %p95 = scmp.ne.s32.totalorder %s87, %s89
    %p96 = scmp.eq.s32.totalorder %s32, 1
    %p97 = por %p95, %p96
    %p98 = scmp.ne.s32.totalorder %s89, %s90
    %p99 = scmp.eq.s32.totalorder %s32, 0
    %p100 = por %p98, %p99
    %p101 = scmp.ne.s32.totalorder %s89, %s90
    %p102 = scmp.eq.s32.totalorder %s33, 1
    %p103 = por %p101, %p102
    %p105 = scmp.ne.s32.totalorder %s90, %s104
    %p106 = scmp.eq.s32.totalorder %s33, 0
    %p107 = por %p105, %p106
    %s109 = sadd.s32 %s108, 1
    %p112 = scmp.eq.s32.totalorder %s27, 1
    %p113 = scmp.ne.s32.totalorder %s108, %s110
    %p114 = scmp.eq.s32.totalorder %s27, 0
    %p115 = por %p113, %p114
    %p116 = scmp.ne.s32.totalorder %s108, %s110
    %p117 = scmp.eq.s32.totalorder %s32, 1
    %p118 = por %p116, %p117
    %p119 = scmp.ne.s32.totalorder %s110, %s111
    %p120 = scmp.eq.s32.totalorder %s32, 0
    %p121 = por %p119, %p120
    %p122 = scmp.ne.s32.totalorder %s110, %s111
    %p123 = scmp.eq.s32.totalorder %s33, 1
    %p124 = por %p122, %p123
    %p126 = scmp.ne.s32.totalorder %s111, %s125
    %p127 = scmp.eq.s32.totalorder %s33, 0
    %p128 = por %p126, %p127
    %s130 = sadd.s32 %s129, 1
    %p133 = scmp.eq.s32.totalorder %s27, 1
    %p134 = scmp.ne.s32.totalorder %s129, %s131
    %p135 = scmp.eq.s32.totalorder %s27, 0
    %p136 = por %p134, %p135
    %p137 = scmp.ne.s32.totalorder %s129, %s131
    %p138 = scmp.eq.s32.totalorder %s32, 1
    %p139 = por %p137, %p138
    %p140 = scmp.ne.s32.totalorder %s131, %s132
    %p141 = scmp.eq.s32.totalorder %s32, 0
    %p142 = por %p140, %p141
    %p143 = scmp.ne.s32.totalorder %s131, %s132
    %p144 = scmp.eq.s32.totalorder %s33, 1
    %p145 = por %p143, %p144
    %p147 = scmp.ne.s32.totalorder %s132, %s146
    %p148 = scmp.eq.s32.totalorder %s33, 0
    %p149 = por %p147, %p148
    %s151 = sadd.s32 %s150, 1
    %p154 = scmp.eq.s32.totalorder %s27, 1
    %p155 = scmp.ne.s32.totalorder %s150, %s152
    %p156 = scmp.eq.s32.totalorder %s27, 0
    %p157 = por %p155, %p156
    %p158 = scmp.ne.s32.totalorder %s150, %s152
    %p159 = scmp.eq.s32.totalorder %s32, 1
    %p160 = por %p158, %p159
    %p161 = scmp.ne.s32.totalorder %s152, %s153
    %p162 = scmp.eq.s32.totalorder %s32, 0
    %p163 = por %p161, %p162
    %p164 = scmp.ne.s32.totalorder %s152, %s153
    %p165 = scmp.eq.s32.totalorder %s33, 1
    %p166 = por %p164, %p165
    %p168 = scmp.ne.s32.totalorder %s153, %s167
    %p169 = scmp.eq.s32.totalorder %s33, 0
    %p170 = por %p168, %p169
    %s172 = sadd.s32 %s171, 1
    %p175 = scmp.eq.s32.totalorder %s27, 1
    %p176 = scmp.ne.s32.totalorder %s171, %s173
    %p177 = scmp.eq.s32.totalorder %s27, 0
    %p178 = por %p176, %p177
    %p179 = scmp.ne.s32.totalorder %s171, %s173
    %p180 = scmp.eq.s32.totalorder %s32, 1
    %p181 = por %p179, %p180
    %p182 = scmp.ne.s32.totalorder %s173, %s174
    %p183 = scmp.eq.s32.totalorder %s32, 0
    %p184 = por %p182, %p183
    %p185 = scmp.ne.s32.totalorder %s173, %s174
    %p186 = scmp.eq.s32.totalorder %s33, 1
    %p187 = por %p185, %p186
    %p189 = scmp.ne.s32.totalorder %s174, %s188
    %p190 = scmp.eq.s32.totalorder %s33, 0
    %p191 = por %p189, %p190
    %s193 = sadd.s32 %s192, 1
    %p196 = scmp.eq.s32.totalorder %s27, 1
    %p197 = scmp.ne.s32.totalorder %s192, %s194
    %p198 = scmp.eq.s32.totalorder %s27, 0
    %p199 = por %p197, %p198
    %p200 = scmp.ne.s32.totalorder %s192, %s194
    %p201 = scmp.eq.s32.totalorder %s32, 1
    %p202 = por %p200, %p201
    %p203 = scmp.ne.s32.totalorder %s194, %s195
    %p204 = scmp.eq.s32.totalorder %s32, 0
    %p205 = por %p203, %p204
    %p206 = scmp.ne.s32.totalorder %s194, %s195
    %p207 = scmp.eq.s32.totalorder %s33, 1
    %p208 = por %p206, %p207
    %p210 = scmp.ne.s32.totalorder %s195, %s209
    %p211 = scmp.eq.s32.totalorder %s33, 0
    %p212 = por %p210, %p211
    %s214 = sadd.s32 %s213, 1
    %p217 = scmp.eq.s32.totalorder %s27, 1
    %p218 = scmp.ne.s32.totalorder %s213, %s215
    %p219 = scmp.eq.s32.totalorder %s27, 0
    %p220 = por %p218, %p219
    %p221 = scmp.ne.s32.totalorder %s213, %s215
    %p222 = scmp.eq.s32.totalorder %s32, 1
    %p223 = por %p221, %p222
    %p224 = scmp.ne.s32.totalorder %s215, %s216
    %p225 = scmp.eq.s32.totalorder %s32, 0
    %p226 = por %p224, %p225
    %p227 = scmp.ne.s32.totalorder %s215, %s216
    %p228 = scmp.eq.s32.totalorder %s33, 1
    %p229 = por %p227, %p228
    %p231 = scmp.ne.s32.totalorder %s216, %s230
    %p232 = scmp.eq.s32.totalorder %s33, 0
    %p233 = por %p231, %p232
    %s235 = sadd.s32 %s234, 1
    %p238 = scmp.eq.s32.totalorder %s27, 1
    %p239 = scmp.ne.s32.totalorder %s234, %s236
    %p240 = scmp.eq.s32.totalorder %s27, 0
    %p241 = por %p239, %p240
    %p242 = scmp.ne.s32.totalorder %s234, %s236
    %p243 = scmp.eq.s32.totalorder %s32, 1
    %p244 = por %p242, %p243
    %p245 = scmp.ne.s32.totalorder %s236, %s237
    %p246 = scmp.eq.s32.totalorder %s32, 0
    %p247 = por %p245, %p246
    %p248 = scmp.ne.s32.totalorder %s236, %s237
    %p249 = scmp.eq.s32.totalorder %s33, 1
    %p250 = por %p248, %p249
    %p252 = scmp.ne.s32.totalorder %s237, %s251
    %p253 = scmp.eq.s32.totalorder %s33, 0
    %p254 = por %p252, %p253
    %s256 = sadd.s32 %s255, 1
    %p259 = scmp.eq.s32.totalorder %s27, 1
    %p260 = scmp.ne.s32.totalorder %s255, %s257
    %p261 = scmp.eq.s32.totalorder %s27, 0
    %p262 = por %p260, %p261
    %p263 = scmp.ne.s32.totalorder %s255, %s257
    %p264 = scmp.eq.s32.totalorder %s32, 1
    %p265 = por %p263, %p264
    %p266 = scmp.ne.s32.totalorder %s257, %s258
    %p267 = scmp.eq.s32.totalorder %s32, 0
    %p268 = por %p266, %p267
    %p269 = scmp.ne.s32.totalorder %s257, %s258
    %p270 = scmp.eq.s32.totalorder %s33, 1
    %p271 = por %p269, %p270
    %p273 = scmp.ne.s32.totalorder %s258, %s272
    %p274 = scmp.eq.s32.totalorder %s33, 0
    %p275 = por %p273, %p274
    %s277 = sadd.s32 %s276, 1
    %p280 = scmp.eq.s32.totalorder %s27, 1
    %p281 = scmp.ne.s32.totalorder %s276, %s278
    %p282 = scmp.eq.s32.totalorder %s27, 0
    %p283 = por %p281, %p282
    %p284 = scmp.ne.s32.totalorder %s276, %s278
    %p285 = scmp.eq.s32.totalorder %s32, 1
    %p286 = por %p284, %p285
    %p287 = scmp.ne.s32.totalorder %s278, %s279
    %p288 = scmp.eq.s32.totalorder %s32, 0
    %p289 = por %p287, %p288
    %p290 = scmp.ne.s32.totalorder %s278, %s279
    %p291 = scmp.eq.s32.totalorder %s33, 1
    %p292 = por %p290, %p291
    %p294 = scmp.ne.s32.totalorder %s279, %s293
    %p295 = scmp.eq.s32.totalorder %s33, 0
    %p296 = por %p294, %p295
    %s298 = sadd.s32 %s297, 1
    %p301 = scmp.eq.s32.totalorder %s27, 1
    %p302 = scmp.ne.s32.totalorder %s297, %s299
    %p303 = scmp.eq.s32.totalorder %s27, 0
    %p304 = por %p302, %p303
    %p305 = scmp.ne.s32.totalorder %s297, %s299
    %p306 = scmp.eq.s32.totalorder %s32, 1
    %p307 = por %p305, %p306
    %p308 = scmp.ne.s32.totalorder %s299, %s300
    %p309 = scmp.eq.s32.totalorder %s32, 0
    %p310 = por %p308, %p309
    %p311 = scmp.ne.s32.totalorder %s299, %s300
    %p312 = scmp.eq.s32.totalorder %s33, 1
    %p313 = por %p311, %p312
    %p315 = scmp.ne.s32.totalorder %s300, %s314
    %p316 = scmp.eq.s32.totalorder %s33, 0
    %p317 = por %p315, %p316
    %s319 = sadd.s32 %s318, 1
    %p322 = scmp.eq.s32.totalorder %s27, 1
    %p323 = scmp.ne.s32.totalorder %s318, %s320
    %p324 = scmp.eq.s32.totalorder %s27, 0
    %p325 = por %p323, %p324
    %p326 = scmp.ne.s32.totalorder %s318, %s320
    %p327 = scmp.eq.s32.totalorder %s32, 1
    %p328 = por %p326, %p327
    %p329 = scmp.ne.s32.totalorder %s320, %s321
    %p330 = scmp.eq.s32.totalorder %s32, 0
    %p331 = por %p329, %p330
    %p332 = scmp.ne.s32.totalorder %s320, %s321
    %p333 = scmp.eq.s32.totalorder %s33, 1
    %p334 = por %p332, %p333
    %p336 = scmp.ne.s32.totalorder %s321, %s335
    %p337 = scmp.eq.s32.totalorder %s33, 0
    %p338 = por %p336, %p337
    %s340 = sadd.s32 %s339, 1
    %p343 = scmp.eq.s32.totalorder %s27, 1
    %p344 = scmp.ne.s32.totalorder %s339, %s341
    %p345 = scmp.eq.s32.totalorder %s27, 0
    %p346 = por %p344, %p345
    %p347 = scmp.ne.s32.totalorder %s339, %s341
    %p348 = scmp.eq.s32.totalorder %s32, 1
    %p349 = por %p347, %p348
    %p350 = scmp.ne.s32.totalorder %s341, %s342
    %p351 = scmp.eq.s32.totalorder %s32, 0
    %p352 = por %p350, %p351
    %p353 = scmp.ne.s32.totalorder %s341, %s342
    %p354 = scmp.eq.s32.totalorder %s33, 1
    %p355 = por %p353, %p354
    %p357 = scmp.ne.s32.totalorder %s342, %s356
    %p358 = scmp.eq.s32.totalorder %s33, 0
    %p359 = por %p357, %p358
    %s361 = sadd.s32 %s360, 1
    %p364 = scmp.eq.s32.totalorder %s27, 1
    %p365 = scmp.ne.s32.totalorder %s360, %s362
    %p366 = scmp.eq.s32.totalorder %s27, 0
    %p367 = por %p365, %p366
    %p368 = scmp.ne.s32.totalorder %s360, %s362
    %p369 = scmp.eq.s32.totalorder %s32, 1
    %p370 = por %p368, %p369
    %p371 = scmp.ne.s32.totalorder %s362, %s363
    %p372 = scmp.eq.s32.totalorder %s32, 0
    %p373 = por %p371, %p372
    %p374 = scmp.ne.s32.totalorder %s362, %s363
    %p375 = scmp.eq.s32.totalorder %s33, 1
    %p376 = por %p374, %p375
    %p378 = scmp.ne.s32.totalorder %s363, %s377
    %p379 = scmp.eq.s32.totalorder %s33, 0
    %p380 = por %p378, %p379
    %s382 = sadd.s32 %s381, 1
    %p385 = scmp.eq.s32.totalorder %s27, 1
    %p386 = scmp.ne.s32.totalorder %s381, %s383
    %p387 = scmp.eq.s32.totalorder %s27, 0
    %p388 = por %p386, %p387
    %p389 = scmp.ne.s32.totalorder %s381, %s383
    %p390 = scmp.eq.s32.totalorder %s32, 1
    %p391 = por %p389, %p390
    %p392 = scmp.ne.s32.totalorder %s383, %s384
    %p393 = scmp.eq.s32.totalorder %s32, 0
    %p394 = por %p392, %p393
    %p395 = scmp.ne.s32.totalorder %s383, %s384
    %p396 = scmp.eq.s32.totalorder %s33, 1
    %p397 = por %p395, %p396
    %p399 = scmp.ne.s32.totalorder %s384, %s398
    %p400 = scmp.eq.s32.totalorder %s33, 0
    %p401 = por %p399, %p400
    %s403 = sadd.s32 %s402, 1
    %p406 = scmp.eq.s32.totalorder %s27, 1
    %p407 = scmp.ne.s32.totalorder %s402, %s404
    %p408 = scmp.eq.s32.totalorder %s27, 0
    %p409 = por %p407, %p408
    %p410 = scmp.ne.s32.totalorder %s402, %s404
    %p411 = scmp.eq.s32.totalorder %s32, 1
    %p412 = por %p410, %p411
    %p413 = scmp.ne.s32.totalorder %s404, %s405
    %p414 = scmp.eq.s32.totalorder %s32, 0
    %p415 = por %p413, %p414
    %p416 = scmp.ne.s32.totalorder %s404, %s405
    %p417 = scmp.eq.s32.totalorder %s33, 1
    %p418 = por %p416, %p417
    %p420 = scmp.ne.s32.totalorder %s405, %s419
    %p421 = scmp.eq.s32.totalorder %s33, 0
    %p422 = por %p420, %p421
    %s424 = sadd.s32 %s423, 1
    %p427 = scmp.eq.s32.totalorder %s27, 1
    %p428 = scmp.ne.s32.totalorder %s423, %s425
    %p429 = scmp.eq.s32.totalorder %s27, 0
    %p430 = por %p428, %p429
    %p431 = scmp.ne.s32.totalorder %s423, %s425
    %p432 = scmp.eq.s32.totalorder %s32, 1
    %p433 = por %p431, %p432
    %p434 = scmp.ne.s32.totalorder %s425, %s426
    %p435 = scmp.eq.s32.totalorder %s32, 0
    %p436 = por %p434, %p435
    %p437 = scmp.ne.s32.totalorder %s425, %s426
    %p438 = scmp.eq.s32.totalorder %s33, 1
    %p439 = por %p437, %p438
    %p441 = scmp.ne.s32.totalorder %s426, %s440
    %p442 = scmp.eq.s32.totalorder %s33, 0
    %p443 = por %p441, %p442
    %s445 = sadd.s32 %s444, 1
    %p448 = scmp.eq.s32.totalorder %s27, 1
    %p449 = scmp.ne.s32.totalorder %s444, %s446
    %p450 = scmp.eq.s32.totalorder %s27, 0
    %p451 = por %p449, %p450
    %p452 = scmp.ne.s32.totalorder %s444, %s446
    %p453 = scmp.eq.s32.totalorder %s32, 1
    %p454 = por %p452, %p453
    %p455 = scmp.ne.s32.totalorder %s446, %s447
    %p456 = scmp.eq.s32.totalorder %s32, 0
    %p457 = por %p455, %p456
    %p458 = scmp.ne.s32.totalorder %s446, %s447
    %p459 = scmp.eq.s32.totalorder %s33, 1
    %p460 = por %p458, %p459
    %p462 = scmp.ne.s32.totalorder %s447, %s461
    %p463 = scmp.eq.s32.totalorder %s33, 0
    %p464 = por %p462, %p463
    %s466 = sadd.s32 %s465, 1
    %p469 = scmp.eq.s32.totalorder %s27, 1
    %p470 = scmp.ne.s32.totalorder %s465, %s467
    %p471 = scmp.eq.s32.totalorder %s27, 0
    %p472 = por %p470, %p471
    %p473 = scmp.ne.s32.totalorder %s465, %s467
    %p474 = scmp.eq.s32.totalorder %s32, 1
    %p475 = por %p473, %p474
    %p476 = scmp.ne.s32.totalorder %s467, %s468
    %p477 = scmp.eq.s32.totalorder %s32, 0
    %p478 = por %p476, %p477
    %p479 = scmp.ne.s32.totalorder %s467, %s468
    %p480 = scmp.eq.s32.totalorder %s33, 1
    %p481 = por %p479, %p480
    %p483 = scmp.ne.s32.totalorder %s468, %s482
    %p484 = scmp.eq.s32.totalorder %s33, 0
    %p485 = por %p483, %p484
    %s486 = ssub.s32 %s27, %s34
    %p487 = scmp.eq.s32.totalorder %s486, 0
    %s489 = sadd.s32 %s488, 1
    %s490 = scalar_select %p487, %s488, %s489
    %p493 = pneg %p487
    %p494 = scmp.eq.s32.totalorder %s27, 1
    %p495 = por %p493, %p494
    %p496 = scmp.ne.s32.totalorder %s488, %s491
    %p497 = scmp.eq.s32.totalorder %s27, 0
    %p498 = por %p496, %p497
    %p499 = scmp.ne.s32.totalorder %s488, %s491
    %p500 = scmp.eq.s32.totalorder %s32, 1
    %p501 = por %p499, %p500
    %p502 = scmp.ne.s32.totalorder %s491, %s492
    %p503 = scmp.eq.s32.totalorder %s32, 0
    %p504 = por %p502, %p503
    %p505 = scmp.ne.s32.totalorder %s491, %s492
    %p506 = scmp.eq.s32.totalorder %s33, 1
    %p507 = por %p505, %p506
    %p509 = scmp.ne.s32.totalorder %s492, %s508
    %p510 = scmp.eq.s32.totalorder %s33, 0
    %p511 = por %p509, %p510
    %p512 = scmp.le.s32.totalorder 1, %s27
    %p513 = scmp.lt.s32.totalorder %s27, 3
    %p514 = pnand %p512, %p513
    %p515 = pneg %p514
    // Predicated region
    $region9: #{mask_decoder_iter_forward.2} parent=5 // pred_check
      _
    $region10: #{mask_decoder_iter_forward.2} parent=5 // pred_check_branch
      %517 = sbr.rel (%p514) target = $region12
    $region11: #{mask_decoder_iter_forward.2} parent=5 // pred_region
      %s518 = ssub.s32 %s27, 1
      // Predicated region
      $region13: #{mask_decoder_iter_forward.2} parent=11 // pred_check
        %p519 = pneg %p100
      $region14: #{mask_decoder_iter_forward.2} parent=11 // pred_check_branch
        %521 = sbr.rel (%p519) target = $region16
      $region15: #{mask_decoder_iter_forward.2} parent=11 // pred_region
        _
      $region16: #{mask_decoder_iter_forward.2} parent=11 // pred_fallthru
        _
      // Predicated region
      $region17: #{mask_decoder_iter_forward.2} parent=11 // pred_check
        %p522 = pneg %p121
      $region18: #{mask_decoder_iter_forward.2} parent=11 // pred_check_branch
        %524 = sbr.rel (%p522) target = $region20
      $region19: #{mask_decoder_iter_forward.2} parent=11 // pred_region
        _
      $region20: #{mask_decoder_iter_forward.2} parent=11 // pred_fallthru
        _
      // Predicated region
      $region21: #{mask_decoder_iter_forward.2} parent=11 // pred_check
        %p525 = pneg %p142
      $region22: #{mask_decoder_iter_forward.2} parent=11 // pred_check_branch
        %527 = sbr.rel (%p525) target = $region24
      $region23: #{mask_decoder_iter_forward.2} parent=11 // pred_region
        _
      $region24: #{mask_decoder_iter_forward.2} parent=11 // pred_fallthru
        _
      // Predicated region
      $region25: #{mask_decoder_iter_forward.2} parent=11 // pred_check
        %p528 = pneg %p163
      $region26: #{mask_decoder_iter_forward.2} parent=11 // pred_check_branch
        %530 = sbr.rel (%p528) target = $region28
      $region27: #{mask_decoder_iter_forward.2} parent=11 // pred_region
        _
      $region28: #{mask_decoder_iter_forward.2} parent=11 // pred_fallthru
        _
      // Predicated region
      $region29: #{mask_decoder_iter_forward.2} parent=11 // pred_check
        %p531 = pneg %p184
      $region30: #{mask_decoder_iter_forward.2} parent=11 // pred_check_branch
        %533 = sbr.rel (%p531) target = $region32
      $region31: #{mask_decoder_iter_forward.2} parent=11 // pred_region
        _
      $region32: #{mask_decoder_iter_forward.2} parent=11 // pred_fallthru
        _
      // Predicated region
      $region33: #{mask_decoder_iter_forward.2} parent=11 // pred_check
        %p534 = pneg %p205
      $region34: #{mask_decoder_iter_forward.2} parent=11 // pred_check_branch
        %536 = sbr.rel (%p534) target = $region36
      $region35: #{mask_decoder_iter_forward.2} parent=11 // pred_region
        _
      $region36: #{mask_decoder_iter_forward.2} parent=11 // pred_fallthru
        _
      // Predicated region
      $region37: #{mask_decoder_iter_forward.2} parent=11 // pred_check
        %p537 = pneg %p226
      $region38: #{mask_decoder_iter_forward.2} parent=11 // pred_check_branch
        %539 = sbr.rel (%p537) target = $region40
      $region39: #{mask_decoder_iter_forward.2} parent=11 // pred_region
        _
      $region40: #{mask_decoder_iter_forward.2} parent=11 // pred_fallthru
        _
      // Predicated region
      $region41: #{mask_decoder_iter_forward.2} parent=11 // pred_check
        %p540 = pneg %p247
      $region42: #{mask_decoder_iter_forward.2} parent=11 // pred_check_branch
        %542 = sbr.rel (%p540) target = $region44
      $region43: #{mask_decoder_iter_forward.2} parent=11 // pred_region
        _
      $region44: #{mask_decoder_iter_forward.2} parent=11 // pred_fallthru
        _
      // Predicated region
      $region45: #{mask_decoder_iter_forward.2} parent=11 // pred_check
        %p543 = pneg %p268
      $region46: #{mask_decoder_iter_forward.2} parent=11 // pred_check_branch
        %545 = sbr.rel (%p543) target = $region48
      $region47: #{mask_decoder_iter_forward.2} parent=11 // pred_region
        _
      $region48: #{mask_decoder_iter_forward.2} parent=11 // pred_fallthru
        _
      // Predicated region
      $region49: #{mask_decoder_iter_forward.2} parent=11 // pred_check
        %p546 = pneg %p289
      $region50: #{mask_decoder_iter_forward.2} parent=11 // pred_check_branch
        %548 = sbr.rel (%p546) target = $region52
      $region51: #{mask_decoder_iter_forward.2} parent=11 // pred_region
        _
      $region52: #{mask_decoder_iter_forward.2} parent=11 // pred_fallthru
        _
      // Predicated region
      $region53: #{mask_decoder_iter_forward.2} parent=11 // pred_check
        %p549 = pneg %p310
      $region54: #{mask_decoder_iter_forward.2} parent=11 // pred_check_branch
        %551 = sbr.rel (%p549) target = $region56
      $region55: #{mask_decoder_iter_forward.2} parent=11 // pred_region
        _
      $region56: #{mask_decoder_iter_forward.2} parent=11 // pred_fallthru
        _
      // Predicated region
      $region57: #{mask_decoder_iter_forward.2} parent=11 // pred_check
        %p552 = pneg %p331
      $region58: #{mask_decoder_iter_forward.2} parent=11 // pred_check_branch
        %554 = sbr.rel (%p552) target = $region60
      $region59: #{mask_decoder_iter_forward.2} parent=11 // pred_region
        _
      $region60: #{mask_decoder_iter_forward.2} parent=11 // pred_fallthru
        _
      // Predicated region
      $region61: #{mask_decoder_iter_forward.2} parent=11 // pred_check
        %p555 = pneg %p352
      $region62: #{mask_decoder_iter_forward.2} parent=11 // pred_check_branch
        %557 = sbr.rel (%p555) target = $region64
      $region63: #{mask_decoder_iter_forward.2} parent=11 // pred_region
        _
      $region64: #{mask_decoder_iter_forward.2} parent=11 // pred_fallthru
        _
      // Predicated region
      $region65: #{mask_decoder_iter_forward.2} parent=11 // pred_check
        %p558 = pneg %p373
      $region66: #{mask_decoder_iter_forward.2} parent=11 // pred_check_branch
        %560 = sbr.rel (%p558) target = $region68
      $region67: #{mask_decoder_iter_forward.2} parent=11 // pred_region
        _
      $region68: #{mask_decoder_iter_forward.2} parent=11 // pred_fallthru
        _
      // Predicated region
      $region69: #{mask_decoder_iter_forward.2} parent=11 // pred_check
        %p561 = pneg %p394
      $region70: #{mask_decoder_iter_forward.2} parent=11 // pred_check_branch
        %563 = sbr.rel (%p561) target = $region72
      $region71: #{mask_decoder_iter_forward.2} parent=11 // pred_region
        _
      $region72: #{mask_decoder_iter_forward.2} parent=11 // pred_fallthru
        _
      // Predicated region
      $region73: #{mask_decoder_iter_forward.2} parent=11 // pred_check
        %p564 = pneg %p415
      $region74: #{mask_decoder_iter_forward.2} parent=11 // pred_check_branch
        %566 = sbr.rel (%p564) target = $region76
      $region75: #{mask_decoder_iter_forward.2} parent=11 // pred_region
        _
      $region76: #{mask_decoder_iter_forward.2} parent=11 // pred_fallthru
        _
      // Predicated region
      $region77: #{mask_decoder_iter_forward.2} parent=11 // pred_check
        %p567 = pneg %p436
      $region78: #{mask_decoder_iter_forward.2} parent=11 // pred_check_branch
        %569 = sbr.rel (%p567) target = $region80
      $region79: #{mask_decoder_iter_forward.2} parent=11 // pred_region
        _
      $region80: #{mask_decoder_iter_forward.2} parent=11 // pred_fallthru
        _
      // Predicated region
      $region81: #{mask_decoder_iter_forward.2} parent=11 // pred_check
        %p570 = pneg %p457
      $region82: #{mask_decoder_iter_forward.2} parent=11 // pred_check_branch
        %572 = sbr.rel (%p570) target = $region84
      $region83: #{mask_decoder_iter_forward.2} parent=11 // pred_region
        _
      $region84: #{mask_decoder_iter_forward.2} parent=11 // pred_fallthru
        _
      // Predicated region
      $region85: #{mask_decoder_iter_forward.2} parent=11 // pred_check
        %p573 = pneg %p478
      $region86: #{mask_decoder_iter_forward.2} parent=11 // pred_check_branch
        %575 = sbr.rel (%p573) target = $region88
      $region87: #{mask_decoder_iter_forward.2} parent=11 // pred_region
        _
      $region88: #{mask_decoder_iter_forward.2} parent=11 // pred_fallthru
        _
    $region12: #{mask_decoder_iter_forward.2} parent=5 // pred_fallthru
      _
    %p576 = scmp.lt.s32.totalorder %s27, 2
    // Predicated region
    $region89: #{mask_decoder_iter_forward.2} parent=5 // pred_check
      %p577 = pneg %p576
    $region90: #{mask_decoder_iter_forward.2} parent=5 // pred_check_branch
      %579 = sbr.rel (%p577) target = $region92
    $region91: #{mask_decoder_iter_forward.2} parent=5 // pred_region
      // Predicated region
      $region93: #{mask_decoder_iter_forward.2} parent=91 // pred_check
        %p580 = pneg %p47
      $region94: #{mask_decoder_iter_forward.2} parent=91 // pred_check_branch
        %582 = sbr.rel (%p580) target = $region96
      $region95: #{mask_decoder_iter_forward.2} parent=91 // pred_region
        %p583 = scmp.lt.s32.totalorder %s27, 1
        %s584 = scalar_select %p583, %s27, 1
        %s585 = smul.addr %s584, 8
        %s586 = smul.addr %s585, 8
        %s587 = scalar_lea.vmem %s0, %s586
      $region96: #{mask_decoder_iter_forward.2} parent=91 // pred_fallthru
        _
      // Predicated region
      $region97: #{mask_decoder_iter_forward.2} parent=91 // pred_check
        %p588 = pneg %p73
      $region98: #{mask_decoder_iter_forward.2} parent=91 // pred_check_branch
        %590 = sbr.rel (%p588) target = $region100
      $region99: #{mask_decoder_iter_forward.2} parent=91 // pred_region
        %p591 = scmp.lt.s32.totalorder %s27, 1
        %s592 = scalar_select %p591, %s27, 1
        %s593 = smul.addr %s592, 4
        %s594 = smul.addr %s593, 8
        %s595 = scalar_lea.vmem %s1, %s594
      $region100: #{mask_decoder_iter_forward.2} parent=91 // pred_fallthru
        _
    $region92: #{mask_decoder_iter_forward.2} parent=5 // pred_fallthru
      _
    %p596 = scmp.le.s32.totalorder 1, %s27
    %p597 = scmp.lt.s32.totalorder %s27, 3
    %p598 = pnand %p596, %p597
    %p599 = pneg %p598
    // Predicated region
    $region101: #{mask_decoder_iter_forward.2} parent=5 // pred_check
      _
    $region102: #{mask_decoder_iter_forward.2} parent=5 // pred_check_branch
      %601 = sbr.rel (%p598) target = $region104
    $region103: #{mask_decoder_iter_forward.2} parent=5 // pred_region
      %s602 = ssub.s32 %s27, 1
      %p603 = scmp.lt.s32.totalorder %s32, 1
      %s604 = scalar_select %p603, %s32, 1
      %s605 = smul.addr %s604, 8
      %s606 = smul.addr %s605, 8
      %s607 = scalar_lea.vmem %s0, %s606
      %p608 = pneg %p53
      %p609 = pneg %p50
      %p610 = scmp.lt.s32.totalorder %s32, 1
      %s611 = scalar_select %p610, %s32, 1
      %s612 = smul.addr %s611, 4
      %s613 = smul.addr %s612, 8
      %s614 = scalar_lea.vmem %s1, %s613
      %p615 = pneg %p79
      %p616 = pneg %p76
      %p617 = pneg %p100
      %p618 = pneg %p97
      %p619 = pneg %p121
      %p620 = pneg %p118
      %p621 = pneg %p142
      %p622 = pneg %p139
      %p623 = pneg %p163
      %p624 = pneg %p160
      %p625 = pneg %p184
      %p626 = pneg %p181
      %p627 = pneg %p205
      %p628 = pneg %p202
      %p629 = pneg %p226
      %p630 = pneg %p223
      %p631 = pneg %p247
      %p632 = pneg %p244
      %p633 = pneg %p268
      %p634 = pneg %p265
      %p635 = pneg %p289
      %p636 = pneg %p286
      %p637 = pneg %p310
      %p638 = pneg %p307
      %p639 = pneg %p331
      %p640 = pneg %p328
      %p641 = pneg %p352
      %p642 = pneg %p349
      %p643 = pneg %p373
      %p644 = pneg %p370
      %p645 = pneg %p394
      %p646 = pneg %p391
      %p647 = pneg %p415
      %p648 = pneg %p412
      %p649 = pneg %p436
      %p650 = pneg %p433
      %p651 = pneg %p457
      %p652 = pneg %p454
      %p653 = pneg %p478
      %p654 = pneg %p475
      %p655 = pneg %p504
      %p656 = pneg %p501
      %p657 = scmp.lt.s32.totalorder %s32, 1
      %s658 = scalar_select %p657, %s32, 1
      %s659 = smul.addr %s658, 8
      %s660 = smul.addr %s659, 8
      %s661 = scalar_lea.vmem %s21, %s660
      %p662 = scmp.lt.s32.totalorder %s32, 1
      %s663 = scalar_select %p662, %s32, 1
      %s664 = smul.addr %s663, 8
      %s665 = smul.addr %s664, 8
      %s666 = scalar_lea.vmem %s0, %s665
      %p667 = scmp.lt.s32.totalorder %s32, 1
      %s668 = scalar_select %p667, %s32, 1
      %s669 = smul.addr %s668, 4
      %s670 = smul.addr %s669, 8
      %s671 = scalar_lea.vmem %s1, %s670
      %p672 = scmp.lt.s32.totalorder %s32, 1
      %s673 = scalar_select %p672, %s32, 1
      %s674 = smul.addr %s673, 8
      %s675 = smul.addr %s674, 8
      %s676 = scalar_lea.vmem %s21, %s675
      %v677 = vld [vmem:[%s671] sm:$0xff]
      %v678 = vld [vmem:[%s671 + $0x8] sm:$0xff]
      %v679 = vld [vmem:[%s671 + $0x10] sm:$0xff]
      %v680 = vld [vmem:[%s671 + $0x18] sm:$0xff]
      %v681 = vld [vmem:[%s666] sm:$0xff]
      %v682 = vld [vmem:[%s666 + $0x8] sm:$0xff]
      %vm683 = vcmask 523264
      %v684 = vsel %vm683, %v681, 0.0
      %v685 = vsel %vm683, %v682, 0.0
      %v686 = vadd.f32 %v684, %v685
      %v687 = vrot.slane %v686, 4
      %v688 = vadd.f32 %v686, %v687
      %v689 = vrot.slane %v688, 2
      %v690 = vadd.f32 %v688, %v689
      %v691 = vrot.slane %v690, 1
      %v692 = vadd.f32 %v690, %v691
      %v693 = vrcp.pop 16.0
      %v694 = vmul.f32 16.0, %v693
      %v695 = vsub.f32 1.0, %v694
      %v696 = vmul.f32 %v693, %v695
      %v697 = vadd.f32 %v693, %v696
      %vm698 = vweird.f32 %v693
      %v699 = vsel %vm698, %v693, %v697
      %v700 = vmul.f32 %v692, %v699
      %v701 = vld [vmem:[%s3] sm:$0xff]
      %v702 = vld [vmem:[%s3 + $0x8] sm:$0xff]
      %v703 = vld [vmem:[%s3 + $0x10] sm:$0xff]
      %v704 = vld [vmem:[%s3 + $0x18] sm:$0xff]
      %706 = vset.pattern.permute.xlu0 0
      %707 = vperm.xlu0 %706, %v701
      %v708 = vpop.permute.xlu0 %707
      %711 = vset.pattern.permute.xlu0 0
      %712 = vperm.xlu0 %711, %v702
      %v713 = vpop.permute.xlu0 %712
      %716 = vset.pattern.permute.xlu0 0
      %717 = vperm.xlu0 %716, %v703
      %v718 = vpop.permute.xlu0 %717
      %721 = vset.pattern.permute.xlu0 0
      %722 = vperm.xlu0 %721, %v704
      %v723 = vpop.permute.xlu0 %722
      %v725 = vmul.f32 %v708, %v700
      %v726 = vmul.f32 %v713, %v700
      %v727 = vmul.f32 %v718, %v700
      %v728 = vmul.f32 %v723, %v700
      %v729 = vadd.f32 %v677, %v725
      %v730 = vadd.f32 %v678, %v726
      %v731 = vadd.f32 %v679, %v727
      %v732 = vadd.f32 %v680, %v728
      %s733 = scalar_lea.vmem %s666, 16
      %v734 = vld [vmem:[%s733] sm:$0xff]
      %v735 = vld [vmem:[%s733 + $0x8] sm:$0xff]
      %v736 = vsel %vm683, %v734, 0.0
      %v737 = vsel %vm683, %v735, 0.0
      %v738 = vadd.f32 %v736, %v737
      %v739 = vrot.slane %v738, 4
      %v740 = vadd.f32 %v738, %v739
      %v741 = vrot.slane %v740, 2
      %v742 = vadd.f32 %v740, %v741
      %v743 = vrot.slane %v742, 1
      %v744 = vadd.f32 %v742, %v743
      %v745 = vmul.f32 %v744, %v699
      %746 = vset.pattern.permute.xlu0 1
      %747 = vperm.xlu0 %746, %v701
      %v748 = vpop.permute.xlu0 %747
      %750 = vset.pattern.permute.xlu0 1
      %751 = vperm.xlu0 %750, %v702
      %v752 = vpop.permute.xlu0 %751
      %754 = vset.pattern.permute.xlu0 1
      %755 = vperm.xlu0 %754, %v703
      %v756 = vpop.permute.xlu0 %755
      %758 = vset.pattern.permute.xlu0 1
      %759 = vperm.xlu0 %758, %v704
      %v760 = vpop.permute.xlu0 %759
      %v762 = vmul.f32 %v748, %v745
      %v763 = vmul.f32 %v752, %v745
      %v764 = vmul.f32 %v756, %v745
      %v765 = vmul.f32 %v760, %v745
      %v766 = vadd.f32 %v729, %v762
      %v767 = vadd.f32 %v730, %v763
      %v768 = vadd.f32 %v731, %v764
      %v769 = vadd.f32 %v732, %v765
      %s770 = scalar_lea.vmem %s666, 32
      %v771 = vld [vmem:[%s770] sm:$0xff]
      %v772 = vld [vmem:[%s770 + $0x8] sm:$0xff]
      %v773 = vsel %vm683, %v771, 0.0
      %v774 = vsel %vm683, %v772, 0.0
      %v775 = vadd.f32 %v773, %v774
      %v776 = vrot.slane %v775, 4
      %v777 = vadd.f32 %v775, %v776
      %v778 = vrot.slane %v777, 2
      %v779 = vadd.f32 %v777, %v778
      %v780 = vrot.slane %v779, 1
      %v781 = vadd.f32 %v779, %v780
      %v782 = vmul.f32 %v781, %v699
      %783 = vset.pattern.permute.xlu0 2
      %784 = vperm.xlu0 %783, %v701
      %v785 = vpop.permute.xlu0 %784
      %787 = vset.pattern.permute.xlu0 2
      %788 = vperm.xlu0 %787, %v702
      %v789 = vpop.permute.xlu0 %788
      %791 = vset.pattern.permute.xlu0 2
      %792 = vperm.xlu0 %791, %v703
      %v793 = vpop.permute.xlu0 %792
      %795 = vset.pattern.permute.xlu0 2
      %796 = vperm.xlu0 %795, %v704
      %v797 = vpop.permute.xlu0 %796
      %v799 = vmul.f32 %v785, %v782
      %v800 = vmul.f32 %v789, %v782
      %v801 = vmul.f32 %v793, %v782
      %v802 = vmul.f32 %v797, %v782
      %v803 = vadd.f32 %v766, %v799
      %v804 = vadd.f32 %v767, %v800
      %v805 = vadd.f32 %v768, %v801
      %v806 = vadd.f32 %v769, %v802
      %s807 = scalar_lea.vmem %s666, 48
      %v808 = vld [vmem:[%s807] sm:$0xff]
      %v809 = vld [vmem:[%s807 + $0x8] sm:$0xff]
      %v810 = vsel %vm683, %v808, 0.0
      %v811 = vsel %vm683, %v809, 0.0
      %v812 = vadd.f32 %v810, %v811
      %v813 = vrot.slane %v812, 4
      %v814 = vadd.f32 %v812, %v813
      %v815 = vrot.slane %v814, 2
      %v816 = vadd.f32 %v814, %v815
      %v817 = vrot.slane %v816, 1
      %v818 = vadd.f32 %v816, %v817
      %v819 = vmul.f32 %v818, %v699
      %820 = vset.pattern.permute.xlu0 3
      %821 = vperm.xlu0 %820, %v701
      %v822 = vpop.permute.xlu0 %821
      %824 = vset.pattern.permute.xlu0 3
      %825 = vperm.xlu0 %824, %v702
      %v826 = vpop.permute.xlu0 %825
      %828 = vset.pattern.permute.xlu0 3
      %829 = vperm.xlu0 %828, %v703
      %v830 = vpop.permute.xlu0 %829
      %832 = vset.pattern.permute.xlu0 3
      %833 = vperm.xlu0 %832, %v704
      %v834 = vpop.permute.xlu0 %833
      %v836 = vmul.f32 %v822, %v819
      %v837 = vmul.f32 %v826, %v819
      %v838 = vmul.f32 %v830, %v819
      %v839 = vmul.f32 %v834, %v819
      %v840 = vadd.f32 %v803, %v836
      %v841 = vadd.f32 %v804, %v837
      %v842 = vadd.f32 %v805, %v838
      %v843 = vadd.f32 %v806, %v839
      %v844 = vld [vmem:[%s4] sm:$0xff]
      %v845 = vld [vmem:[%s4 + $0x8] sm:$0xff]
      %v846 = vld [vmem:[%s4 + $0x10] sm:$0xff]
      %v847 = vld [vmem:[%s4 + $0x18] sm:$0xff]
      %v848 = vld [vmem:[%s5] sm:$0xff]
      %v849 = vld [vmem:[%s5 + $0x8] sm:$0xff]
      %v850 = vld [vmem:[%s5 + $0x10] sm:$0xff]
      %v851 = vld [vmem:[%s5 + $0x18] sm:$0xff]
      %853 = vset.pattern.permute.xlu0 0
      %854 = vperm.xlu0 %853, %v848
      %v855 = vpop.permute.xlu0 %854
      %858 = vset.pattern.permute.xlu0 0
      %859 = vperm.xlu0 %858, %v849
      %v860 = vpop.permute.xlu0 %859
      %863 = vset.pattern.permute.xlu0 0
      %864 = vperm.xlu0 %863, %v850
      %v865 = vpop.permute.xlu0 %864
      %868 = vset.pattern.permute.xlu0 0
      %869 = vperm.xlu0 %868, %v851
      %v870 = vpop.permute.xlu0 %869
      %vm872 = vcmask 261120
      %v874 = vsel %vm872, %v844, 0
      %v877 = vsel %vm872, %v845, 0
      %v880 = vsel %vm872, %v846, 0
      %v883 = vsel %vm872, %v847, 0
      %885 = vmatpush.msra.mxu0 0.0
      %886 = vmatpush.msra.mxu0 0.0
      %887 = vmatpush.msra.mxu0 0.0
      %888 = vmatpush.msra.mxu0 0.0
      %889 = vmatpush.msra.mxu0 0.0
      %890 = vmatpush.msra.mxu0 0.0
      %891 = vmatpush.msra.mxu0 0.0
      %892 = vmatpush.msra.mxu0 0.0
      %893 = vmatpush.msra.mxu0 0.0
      %894 = vmatpush.msra.mxu0 0.0
      %895 = vmatpush.msra.mxu0 0.0
      %896 = vmatpush.msra.mxu0 0.0
      %897 = vmatpush.msra.mxu0 %v843
      %898 = vmatpush.msra.mxu0 %v842
      %899 = vmatpush.msra.mxu0 %v841
      %900 = vmatpush.msra.mxu0 %v840
      %901 = vmatmul.f32.gmra.mxu0 %v874
      %v902 = vpop.f32.mrf.mxu0
      %v903 = vadd.f32 %v855, %v902
      %904 = vmatmul.f32.gmra.mxu0 %v877
      %v905 = vpop.f32.mrf.mxu0
      %v906 = vadd.f32 %v860, %v905
      %907 = vmatmul.f32.gmra.mxu0 %v880
      %v908 = vpop.f32.mrf.mxu0
      %v909 = vadd.f32 %v865, %v908
      %910 = vmatmul.f32.gmra.mxu0 %v883
      %v911 = vpop.f32.mrf.mxu0
      %v912 = vadd.f32 %v870, %v911
      %913 = vdwg.mxu0
      %v914 = vmax.f32 %v903, 0.0
      %v915 = vmax.f32 %v906, 0.0
      %v916 = vmax.f32 %v909, 0.0
      %v917 = vmax.f32 %v912, 0.0
      %v918 = vld [vmem:[%s8] sm:$0xff]
      %v919 = vld [vmem:[%s8 + $0x8] sm:$0xff]
      %v920 = vld [vmem:[%s8 + $0x10] sm:$0xff]
      %v921 = vld [vmem:[%s8 + $0x18] sm:$0xff]
      %v922 = vld [vmem:[%s9] sm:$0xff]
      %v923 = vld [vmem:[%s9 + $0x8] sm:$0xff]
      %v924 = vld [vmem:[%s9 + $0x10] sm:$0xff]
      %v925 = vld [vmem:[%s9 + $0x18] sm:$0xff]
      %927 = vset.pattern.permute.xlu0 0
      %928 = vperm.xlu0 %927, %v922
      %v929 = vpop.permute.xlu0 %928
      %932 = vset.pattern.permute.xlu0 0
      %933 = vperm.xlu0 %932, %v923
      %v934 = vpop.permute.xlu0 %933
      %937 = vset.pattern.permute.xlu0 0
      %938 = vperm.xlu0 %937, %v924
      %v939 = vpop.permute.xlu0 %938
      %942 = vset.pattern.permute.xlu0 0
      %943 = vperm.xlu0 %942, %v925
      %v944 = vpop.permute.xlu0 %943
      %v947 = vsel %vm872, %v918, 0
      %v950 = vsel %vm872, %v919, 0
      %v953 = vsel %vm872, %v920, 0
      %v956 = vsel %vm872, %v921, 0
      %958 = vmatpush.msra.mxu0 0.0
      %959 = vmatpush.msra.mxu0 0.0
      %960 = vmatpush.msra.mxu0 0.0
      %961 = vmatpush.msra.mxu0 0.0
      %962 = vmatpush.msra.mxu0 0.0
      %963 = vmatpush.msra.mxu0 0.0
      %964 = vmatpush.msra.mxu0 0.0
      %965 = vmatpush.msra.mxu0 0.0
      %966 = vmatpush.msra.mxu0 0.0
      %967 = vmatpush.msra.mxu0 0.0
      %968 = vmatpush.msra.mxu0 0.0
      %969 = vmatpush.msra.mxu0 0.0
      %970 = vmatpush.msra.mxu0 %v917
      %971 = vmatpush.msra.mxu0 %v916
      %972 = vmatpush.msra.mxu0 %v915
      %973 = vmatpush.msra.mxu0 %v914
      %974 = vmatmul.f32.gmra.mxu0 %v947
      %v975 = vpop.f32.mrf.mxu0
      %v976 = vadd.f32 %v929, %v975
      %977 = vmatmul.f32.gmra.mxu0 %v950
      %v978 = vpop.f32.mrf.mxu0
      %v979 = vadd.f32 %v934, %v978
      %980 = vmatmul.f32.gmra.mxu0 %v953
      %v981 = vpop.f32.mrf.mxu0
      %v982 = vadd.f32 %v939, %v981
      %983 = vmatmul.f32.gmra.mxu0 %v956
      %v984 = vpop.f32.mrf.mxu0
      %v985 = vadd.f32 %v944, %v984
      %986 = vdwg.mxu0
      %v987 = vld [vmem:[%s10] sm:$0xff]
      %v988 = vld [vmem:[%s10 + $0x8] sm:$0xff]
      %v989 = vld [vmem:[%s10 + $0x10] sm:$0xff]
      %v990 = vld [vmem:[%s10 + $0x18] sm:$0xff]
      %v992 = vsel %vm872, %v987, 0
      %v995 = vsel %vm872, %v988, 0
      %v998 = vsel %vm872, %v989, 0
      %v1001 = vsel %vm872, %v990, 0
      %1003 = vmatpush.msra.mxu0 0.0
      %1004 = vmatpush.msra.mxu0 0.0
      %1005 = vmatpush.msra.mxu0 0.0
      %1006 = vmatpush.msra.mxu0 0.0
      %1007 = vmatpush.msra.mxu0 0.0
      %1008 = vmatpush.msra.mxu0 0.0
      %1009 = vmatpush.msra.mxu0 0.0
      %1010 = vmatpush.msra.mxu0 0.0
      %1011 = vmatpush.msra.mxu0 0.0
      %1012 = vmatpush.msra.mxu0 0.0
      %1013 = vmatpush.msra.mxu0 0.0
      %1014 = vmatpush.msra.mxu0 0.0
      %1015 = vmatpush.msra.mxu0 %v985
      %1016 = vmatpush.msra.mxu0 %v982
      %1017 = vmatpush.msra.mxu0 %v979
      %1018 = vmatpush.msra.mxu0 %v976
      %1019 = vmatmul.f32.gmra.mxu0 %v992
      %v1020 = vpop.f32.mrf.mxu0
      %v1021 = vadd.f32 0.0, %v1020
      %1022 = vmatmul.f32.gmra.mxu0 %v995
      %v1023 = vpop.f32.mrf.mxu0
      %v1024 = vadd.f32 0.0, %v1023
      %1025 = vmatmul.f32.gmra.mxu0 %v998
      %v1026 = vpop.f32.mrf.mxu0
      %v1027 = vadd.f32 0.0, %v1026
      %1028 = vmatmul.f32.gmra.mxu0 %v1001
      %v1029 = vpop.f32.mrf.mxu0
      %v1030 = vadd.f32 0.0, %v1029
      %1031 = vdwg.mxu0
      %v1032 = vsub.f32 %v976, %v1021
      %v1033 = vsub.f32 %v979, %v1024
      %v1034 = vsub.f32 %v982, %v1027
      %v1035 = vsub.f32 %v985, %v1030
      %v1036 = vmul.f32 %v1032, %v1032
      %v1037 = vmul.f32 %v1033, %v1033
      %v1038 = vmul.f32 %v1034, %v1034
      %v1039 = vmul.f32 %v1035, %v1035
      %1040 = vmatpush.msra.mxu0 0.0
      %1041 = vmatpush.msra.mxu0 0.0
      %1042 = vmatpush.msra.mxu0 0.0
      %1043 = vmatpush.msra.mxu0 0.0
      %1044 = vmatpush.msra.mxu0 0.0
      %1045 = vmatpush.msra.mxu0 0.0
      %1046 = vmatpush.msra.mxu0 0.0
      %1047 = vmatpush.msra.mxu0 0.0
      %1048 = vmatpush.msra.mxu0 0.0
      %1049 = vmatpush.msra.mxu0 0.0
      %1050 = vmatpush.msra.mxu0 0.0
      %1051 = vmatpush.msra.mxu0 0.0
      %1052 = vmatpush.msra.mxu0 %v1039
      %1053 = vmatpush.msra.mxu0 %v1038
      %1054 = vmatpush.msra.mxu0 %v1037
      %1055 = vmatpush.msra.mxu0 %v1036
      %1056 = vmatmul.f32.gmra.mxu0 %v992
      %v1057 = vpop.f32.mrf.mxu0
      %v1058 = vadd.f32 1e-06, %v1057
      %1059 = vmatmul.f32.gmra.mxu0 %v995
      %v1060 = vpop.f32.mrf.mxu0
      %v1061 = vadd.f32 1e-06, %v1060
      %1062 = vmatmul.f32.gmra.mxu0 %v998
      %v1063 = vpop.f32.mrf.mxu0
      %v1064 = vadd.f32 1e-06, %v1063
      %1065 = vmatmul.f32.gmra.mxu0 %v1001
      %v1066 = vpop.f32.mrf.mxu0
      %v1067 = vadd.f32 1e-06, %v1066
      %1068 = vdwg.mxu0
      %v1069 = vrsqrt.pop %v1058
      %v1070 = vmul.f32 %v1069, %v1058
      %v1071 = vmul.f32 %v1070, %v1069
      %v1072 = vmul.f32 0.5, %v1071
      %v1073 = vsub.f32 1.5, %v1072
      %v1074 = vmul.f32 %v1069, %v1073
      %vm1075 = vweird.f32 %v1058
      %vm1076 = vweird.f32 %v1069
      %vm1077 = vmor %vm1075, %vm1076
      %v1078 = vsel %vm1077, %v1069, %v1074
      %v1079 = vrsqrt.pop %v1061
      %v1080 = vmul.f32 %v1079, %v1061
      %v1081 = vmul.f32 %v1080, %v1079
      %v1082 = vmul.f32 0.5, %v1081
      %v1083 = vsub.f32 1.5, %v1082
      %v1084 = vmul.f32 %v1079, %v1083
      %vm1085 = vweird.f32 %v1061
      %vm1086 = vweird.f32 %v1079
      %vm1087 = vmor %vm1085, %vm1086
      %v1088 = vsel %vm1087, %v1079, %v1084
      %v1089 = vrsqrt.pop %v1064
      %v1090 = vmul.f32 %v1089, %v1064
      %v1091 = vmul.f32 %v1090, %v1089
      %v1092 = vmul.f32 0.5, %v1091
      %v1093 = vsub.f32 1.5, %v1092
      %v1094 = vmul.f32 %v1089, %v1093
      %vm1095 = vweird.f32 %v1064
      %vm1096 = vweird.f32 %v1089
      %vm1097 = vmor %vm1095, %vm1096
      %v1098 = vsel %vm1097, %v1089, %v1094
      %v1099 = vrsqrt.pop %v1067
      %v1100 = vmul.f32 %v1099, %v1067
      %v1101 = vmul.f32 %v1100, %v1099
      %v1102 = vmul.f32 0.5, %v1101
      %v1103 = vsub.f32 1.5, %v1102
      %v1104 = vmul.f32 %v1099, %v1103
      %vm1105 = vweird.f32 %v1067
      %vm1106 = vweird.f32 %v1099
      %vm1107 = vmor %vm1105, %vm1106
      %v1108 = vsel %vm1107, %v1099, %v1104
      %v1109 = vmul.f32 %v1032, %v1078
      %v1110 = vmul.f32 %v1033, %v1088
      %v1111 = vmul.f32 %v1034, %v1098
      %v1112 = vmul.f32 %v1035, %v1108
      %v1113 = vld [vmem:[%s11] sm:$0xff]
      %v1114 = vld [vmem:[%s11 + $0x8] sm:$0xff]
      %v1115 = vld [vmem:[%s11 + $0x10] sm:$0xff]
      %v1116 = vld [vmem:[%s11 + $0x18] sm:$0xff]
      %1118 = vset.pattern.permute.xlu0 0
      %1119 = vperm.xlu0 %1118, %v1113
      %v1120 = vpop.permute.xlu0 %1119
      %1123 = vset.pattern.permute.xlu0 0
      %1124 = vperm.xlu0 %1123, %v1114
      %v1125 = vpop.permute.xlu0 %1124
      %1128 = vset.pattern.permute.xlu0 0
      %1129 = vperm.xlu0 %1128, %v1115
      %v1130 = vpop.permute.xlu0 %1129
      %1133 = vset.pattern.permute.xlu0 0
      %1134 = vperm.xlu0 %1133, %v1116
      %v1135 = vpop.permute.xlu0 %1134
      %v1137 = vmul.f32 %v1109, %v1120
      %v1138 = vmul.f32 %v1110, %v1125
      %v1139 = vmul.f32 %v1111, %v1130
      %v1140 = vmul.f32 %v1112, %v1135
      %v1141 = vld [vmem:[%s12] sm:$0xff]
      %v1142 = vld [vmem:[%s12 + $0x8] sm:$0xff]
      %v1143 = vld [vmem:[%s12 + $0x10] sm:$0xff]
      %v1144 = vld [vmem:[%s12 + $0x18] sm:$0xff]
      %1146 = vset.pattern.permute.xlu0 0
      %1147 = vperm.xlu0 %1146, %v1141
      %v1148 = vpop.permute.xlu0 %1147
      %1151 = vset.pattern.permute.xlu0 0
      %1152 = vperm.xlu0 %1151, %v1142
      %v1153 = vpop.permute.xlu0 %1152
      %1156 = vset.pattern.permute.xlu0 0
      %1157 = vperm.xlu0 %1156, %v1143
      %v1158 = vpop.permute.xlu0 %1157
      %1161 = vset.pattern.permute.xlu0 0
      %1162 = vperm.xlu0 %1161, %v1144
      %v1163 = vpop.permute.xlu0 %1162
      %v1165 = vadd.f32 %v1137, %v1148
      %v1166 = vadd.f32 %v1138, %v1153
      %v1167 = vadd.f32 %v1139, %v1158
      %v1168 = vadd.f32 %v1140, %v1163
      %v1169 = vmul.f32 %v1165, %v1165
      %v1170 = vmul.f32 %v1166, %v1166
      %v1171 = vmul.f32 %v1167, %v1167
      %v1172 = vmul.f32 %v1168, %v1168
      %v1173 = vmul.f32 %v1165, %v1169
      %v1174 = vmul.f32 %v1166, %v1170
      %v1175 = vmul.f32 %v1167, %v1171
      %v1176 = vmul.f32 %v1168, %v1172
      %v1177 = vmul.f32 %v1173, 0.044715
      %v1178 = vmul.f32 %v1174, 0.044715
      %v1179 = vmul.f32 %v1175, 0.044715
      %v1180 = vmul.f32 %v1176, 0.044715
      %v1181 = vadd.f32 %v1165, %v1177
      %v1182 = vadd.f32 %v1166, %v1178
      %v1183 = vadd.f32 %v1167, %v1179
      %v1184 = vadd.f32 %v1168, %v1180
      %v1185 = vmul.f32 %v1181, 0.7978846
      %v1186 = vmul.f32 %v1182, 0.7978846
      %v1187 = vmul.f32 %v1183, 0.7978846
      %v1188 = vmul.f32 %v1184, 0.7978846
      %v1189 = vtanh.pop %v1185
      %v1190 = vtanh.pop %v1186
      %v1191 = vtanh.pop %v1187
      %v1192 = vtanh.pop %v1188
      %v1193 = vadd.f32 %v1189, 1.0
      %v1194 = vadd.f32 %v1190, 1.0
      %v1195 = vadd.f32 %v1191, 1.0
      %v1196 = vadd.f32 %v1192, 1.0
      %v1197 = vmul.f32 %v1193, 0.5
      %v1198 = vmul.f32 %v1194, 0.5
      %v1199 = vmul.f32 %v1195, 0.5
      %v1200 = vmul.f32 %v1196, 0.5
      %v1201 = vmul.f32 %v1165, %v1197
      %v1202 = vmul.f32 %v1166, %v1198
      %v1203 = vmul.f32 %v1167, %v1199
      %v1204 = vmul.f32 %v1168, %v1200
      %v1205 = vld [vmem:[%s13] sm:$0xff]
      %v1206 = vld [vmem:[%s13 + $0x8] sm:$0xff]
      %v1207 = vld [vmem:[%s13 + $0x10] sm:$0xff]
      %v1208 = vld [vmem:[%s13 + $0x18] sm:$0xff]
      %v1209 = vld [vmem:[%s13 + $0x20] sm:$0xff]
      %v1210 = vld [vmem:[%s13 + $0x28] sm:$0xff]
      %v1211 = vld [vmem:[%s13 + $0x30] sm:$0xff]
      %v1212 = vld [vmem:[%s13 + $0x38] sm:$0xff]
      %v1213 = vld [vmem:[%s14] sm:$0xff]
      %v1214 = vld [vmem:[%s14 + $0x8] sm:$0xff]
      %v1215 = vld [vmem:[%s14 + $0x10] sm:$0xff]
      %v1216 = vld [vmem:[%s14 + $0x18] sm:$0xff]
      %v1217 = vld [vmem:[%s14 + $0x20] sm:$0xff]
      %v1218 = vld [vmem:[%s14 + $0x28] sm:$0xff]
      %v1219 = vld [vmem:[%s14 + $0x30] sm:$0xff]
      %v1220 = vld [vmem:[%s14 + $0x38] sm:$0xff]
      %1222 = vset.pattern.permute.xlu0 0
      %1223 = vperm.xlu0 %1222, %v1213
      %v1224 = vpop.permute.xlu0 %1223
      %1227 = vset.pattern.permute.xlu0 0
      %1228 = vperm.xlu0 %1227, %v1214
      %v1229 = vpop.permute.xlu0 %1228
      %1232 = vset.pattern.permute.xlu0 0
      %1233 = vperm.xlu0 %1232, %v1215
      %v1234 = vpop.permute.xlu0 %1233
      %1237 = vset.pattern.permute.xlu0 0
      %1238 = vperm.xlu0 %1237, %v1216
      %v1239 = vpop.permute.xlu0 %1238
      %1242 = vset.pattern.permute.xlu0 0
      %1243 = vperm.xlu0 %1242, %v1217
      %v1244 = vpop.permute.xlu0 %1243
      %1247 = vset.pattern.permute.xlu0 0
      %1248 = vperm.xlu0 %1247, %v1218
      %v1249 = vpop.permute.xlu0 %1248
      %1252 = vset.pattern.permute.xlu0 0
      %1253 = vperm.xlu0 %1252, %v1219
      %v1254 = vpop.permute.xlu0 %1253
      %1257 = vset.pattern.permute.xlu0 0
      %1258 = vperm.xlu0 %1257, %v1220
      %v1259 = vpop.permute.xlu0 %1258
      %v1262 = vsel %vm872, %v1205, 0
      %v1265 = vsel %vm872, %v1206, 0
      %v1268 = vsel %vm872, %v1207, 0
      %v1271 = vsel %vm872, %v1208, 0
      %v1274 = vsel %vm872, %v1209, 0
      %v1277 = vsel %vm872, %v1210, 0
      %v1280 = vsel %vm872, %v1211, 0
      %v1283 = vsel %vm872, %v1212, 0
      %1285 = vmatpush.msra.mxu0 0.0
      %1286 = vmatpush.msra.mxu0 0.0
      %1287 = vmatpush.msra.mxu0 0.0
      %1288 = vmatpush.msra.mxu0 0.0
      %1289 = vmatpush.msra.mxu0 0.0
      %1290 = vmatpush.msra.mxu0 0.0
      %1291 = vmatpush.msra.mxu0 0.0
      %1292 = vmatpush.msra.mxu0 0.0
      %1293 = vmatpush.msra.mxu0 0.0
      %1294 = vmatpush.msra.mxu0 0.0
      %1295 = vmatpush.msra.mxu0 0.0
      %1296 = vmatpush.msra.mxu0 0.0
      %1297 = vmatpush.msra.mxu0 %v1204
      %1298 = vmatpush.msra.mxu0 %v1203
      %1299 = vmatpush.msra.mxu0 %v1202
      %1300 = vmatpush.msra.mxu0 %v1201
      %1301 = vmatmul.f32.gmra.mxu0 %v1262
      %v1302 = vpop.f32.mrf.mxu0
      %v1303 = vadd.f32 %v1224, %v1302
      %1304 = vmatmul.f32.gmra.mxu0 %v1265
      %v1305 = vpop.f32.mrf.mxu0
      %v1306 = vadd.f32 %v1229, %v1305
      %1307 = vmatmul.f32.gmra.mxu0 %v1268
      %v1308 = vpop.f32.mrf.mxu0
      %v1309 = vadd.f32 %v1234, %v1308
      %1310 = vmatmul.f32.gmra.mxu0 %v1271
      %v1311 = vpop.f32.mrf.mxu0
      %v1312 = vadd.f32 %v1239, %v1311
      %1313 = vmatmul.f32.gmra.mxu0 %v1274
      %v1314 = vpop.f32.mrf.mxu0
      %v1315 = vadd.f32 %v1244, %v1314
      %1316 = vmatmul.f32.gmra.mxu0 %v1277
      %v1317 = vpop.f32.mrf.mxu0
      %v1318 = vadd.f32 %v1249, %v1317
      %1319 = vmatmul.f32.gmra.mxu0 %v1280
      %v1320 = vpop.f32.mrf.mxu0
      %v1321 = vadd.f32 %v1254, %v1320
      %1322 = vmatmul.f32.gmra.mxu0 %v1283
      %v1323 = vpop.f32.mrf.mxu0
      %v1324 = vadd.f32 %v1259, %v1323
      %1325 = vdwg.mxu0
      %v1326 = vmul.f32 %v1303, %v1303
      %v1327 = vmul.f32 %v1306, %v1306
      %v1328 = vmul.f32 %v1309, %v1309
      %v1329 = vmul.f32 %v1312, %v1312
      %v1330 = vmul.f32 %v1315, %v1315
      %v1331 = vmul.f32 %v1318, %v1318
      %v1332 = vmul.f32 %v1321, %v1321
      %v1333 = vmul.f32 %v1324, %v1324
      %v1334 = vmul.f32 %v1303, %v1326
      %v1335 = vmul.f32 %v1306, %v1327
      %v1336 = vmul.f32 %v1309, %v1328
      %v1337 = vmul.f32 %v1312, %v1329
      %v1338 = vmul.f32 %v1315, %v1330
      %v1339 = vmul.f32 %v1318, %v1331
      %v1340 = vmul.f32 %v1321, %v1332
      %v1341 = vmul.f32 %v1324, %v1333
      %v1342 = vmul.f32 %v1334, 0.044715
      %v1343 = vmul.f32 %v1335, 0.044715
      %v1344 = vmul.f32 %v1336, 0.044715
      %v1345 = vmul.f32 %v1337, 0.044715
      %v1346 = vmul.f32 %v1338, 0.044715
      %v1347 = vmul.f32 %v1339, 0.044715
      %v1348 = vmul.f32 %v1340, 0.044715
      %v1349 = vmul.f32 %v1341, 0.044715
      %v1350 = vadd.f32 %v1303, %v1342
      %v1351 = vadd.f32 %v1306, %v1343
      %v1352 = vadd.f32 %v1309, %v1344
      %v1353 = vadd.f32 %v1312, %v1345
      %v1354 = vadd.f32 %v1315, %v1346
      %v1355 = vadd.f32 %v1318, %v1347
      %v1356 = vadd.f32 %v1321, %v1348
      %v1357 = vadd.f32 %v1324, %v1349
      %v1358 = vmul.f32 %v1350, 0.7978846
      %v1359 = vmul.f32 %v1351, 0.7978846
      %v1360 = vmul.f32 %v1352, 0.7978846
      %v1361 = vmul.f32 %v1353, 0.7978846
      %v1362 = vmul.f32 %v1354, 0.7978846
      %v1363 = vmul.f32 %v1355, 0.7978846
      %v1364 = vmul.f32 %v1356, 0.7978846
      %v1365 = vmul.f32 %v1357, 0.7978846
      %v1366 = vtanh.pop %v1358
      %v1367 = vtanh.pop %v1359
      %v1368 = vtanh.pop %v1360
      %v1369 = vtanh.pop %v1361
      %v1370 = vtanh.pop %v1362
      %v1371 = vtanh.pop %v1363
      %v1372 = vtanh.pop %v1364
      %v1373 = vtanh.pop %v1365
      %v1374 = vadd.f32 %v1366, 1.0
      %v1375 = vadd.f32 %v1367, 1.0
      %v1376 = vadd.f32 %v1368, 1.0
      %v1377 = vadd.f32 %v1369, 1.0
      %v1378 = vadd.f32 %v1370, 1.0
      %v1379 = vadd.f32 %v1371, 1.0
      %v1380 = vadd.f32 %v1372, 1.0
      %v1381 = vadd.f32 %v1373, 1.0
      %v1382 = vmul.f32 %v1374, 0.5
      %v1383 = vmul.f32 %v1375, 0.5
      %v1384 = vmul.f32 %v1376, 0.5
      %v1385 = vmul.f32 %v1377, 0.5
      %v1386 = vmul.f32 %v1378, 0.5
      %v1387 = vmul.f32 %v1379, 0.5
      %v1388 = vmul.f32 %v1380, 0.5
      %v1389 = vmul.f32 %v1381, 0.5
      %v1390 = vmul.f32 %v1303, %v1382
      %v1391 = vmul.f32 %v1306, %v1383
      %v1392 = vmul.f32 %v1309, %v1384
      %v1393 = vmul.f32 %v1312, %v1385
      %v1394 = vmul.f32 %v1315, %v1386
      %v1395 = vmul.f32 %v1318, %v1387
      %v1396 = vmul.f32 %v1321, %v1388
      %v1397 = vmul.f32 %v1324, %v1389
      %v1398 = vsel %vm683, %v840, 0.0
      %1399 = vadd.xlane.f32.xlu0 %v1398
      %v1400 = vpop.xlane.xlu0 %1399
      %v1401 = vsel %vm683, %v841, 0.0
      %1402 = vadd.xlane.f32.xlu0 %v1401
      %v1403 = vpop.xlane.xlu0 %1402
      %v1404 = vsel %vm683, %v842, 0.0
      %1405 = vadd.xlane.f32.xlu0 %v1404
      %v1406 = vpop.xlane.xlu0 %1405
      %v1407 = vsel %vm683, %v843, 0.0
      %1408 = vadd.xlane.f32.xlu0 %v1407
      %v1409 = vpop.xlane.xlu0 %1408
      %v1410 = vrcp.pop 64.0
      %v1411 = vmul.f32 64.0, %v1410
      %v1412 = vsub.f32 1.0, %v1411
      %v1413 = vmul.f32 %v1410, %v1412
      %v1414 = vadd.f32 %v1410, %v1413
      %vm1415 = vweird.f32 %v1410
      %v1416 = vsel %vm1415, %v1410, %v1414
      %v1417 = vmul.f32 %v1400, %v1416
      %v1418 = vmul.f32 %v1403, %v1416
      %v1419 = vmul.f32 %v1406, %v1416
      %v1420 = vmul.f32 %v1409, %v1416
      %v1421 = vld [vmem:[%s2] sm:$0xff]
      %v1422 = vld [vmem:[%s2 + $0x8] sm:$0xff]
      %v1423 = vld [vmem:[%s2 + $0x10] sm:$0xff]
      %v1424 = vld [vmem:[%s2 + $0x18] sm:$0xff]
      %v1425 = vadd.f32 %v1421, %v1417
      %v1426 = vadd.f32 %v1422, %v1418
      %v1427 = vadd.f32 %v1423, %v1419
      %v1428 = vadd.f32 %v1424, %v1420
      %v1429 = vld [vmem:[%s6] sm:$0xff]
      %v1430 = vld [vmem:[%s6 + $0x8] sm:$0xff]
      %v1431 = vld [vmem:[%s6 + $0x10] sm:$0xff]
      %v1432 = vld [vmem:[%s6 + $0x18] sm:$0xff]
      %v1433 = vld [vmem:[%s7] sm:$0xff]
      %v1434 = vld [vmem:[%s7 + $0x8] sm:$0xff]
      %v1435 = vld [vmem:[%s7 + $0x10] sm:$0xff]
      %v1436 = vld [vmem:[%s7 + $0x18] sm:$0xff]
      %v1438 = vsel %vm872, %v1429, 0
      %v1441 = vsel %vm872, %v1430, 0
      %v1444 = vsel %vm872, %v1431, 0
      %v1447 = vsel %vm872, %v1432, 0
      %1449 = vmatpush.msra.mxu0 0.0
      %1450 = vmatpush.msra.mxu0 0.0
      %1451 = vmatpush.msra.mxu0 0.0
      %1452 = vmatpush.msra.mxu0 0.0
      %1453 = vmatpush.msra.mxu0 0.0
      %1454 = vmatpush.msra.mxu0 0.0
      %1455 = vmatpush.msra.mxu0 0.0
      %1456 = vmatpush.msra.mxu0 0.0
      %1457 = vmatpush.msra.mxu0 0.0
      %1458 = vmatpush.msra.mxu0 0.0
      %1459 = vmatpush.msra.mxu0 0.0
      %1460 = vmatpush.msra.mxu0 0.0
      %1461 = vmatpush.msra.mxu0 %v1428
      %1462 = vmatpush.msra.mxu0 %v1427
      %1463 = vmatpush.msra.mxu0 %v1426
      %1464 = vmatpush.msra.mxu0 %v1425
      %1465 = vmatmul.f32.gmra.mxu0 %v1438
      %v1466 = vpop.f32.mrf.mxu0
      %v1467 = vadd.f32 %v1433, %v1466
      %1468 = vmatmul.f32.gmra.mxu0 %v1441
      %v1469 = vpop.f32.mrf.mxu0
      %v1470 = vadd.f32 %v1434, %v1469
      %1471 = vmatmul.f32.gmra.mxu0 %v1444
      %v1472 = vpop.f32.mrf.mxu0
      %v1473 = vadd.f32 %v1435, %v1472
      %1474 = vmatmul.f32.gmra.mxu0 %v1447
      %v1475 = vpop.f32.mrf.mxu0
      %v1476 = vadd.f32 %v1436, %v1475
      %1477 = vdwg.mxu0
      %v1478 = vmax.f32 %v1467, 0.0
      %v1479 = vmax.f32 %v1470, 0.0
      %v1480 = vmax.f32 %v1473, 0.0
      %v1481 = vmax.f32 %v1476, 0.0
      %v1482 = vld [vmem:[%s15] sm:$0xff]
      %v1483 = vld [vmem:[%s15 + $0x8] sm:$0xff]
      %v1484 = vld [vmem:[%s15 + $0x10] sm:$0xff]
      %v1485 = vld [vmem:[%s15 + $0x18] sm:$0xff]
      %v1486 = vld [vmem:[%s16] sm:$0xff]
      %v1487 = vld [vmem:[%s16 + $0x8] sm:$0xff]
      %v1488 = vld [vmem:[%s16 + $0x10] sm:$0xff]
      %v1489 = vld [vmem:[%s16 + $0x18] sm:$0xff]
      %v1491 = vsel %vm872, %v1482, 0
      %v1494 = vsel %vm872, %v1483, 0
      %v1497 = vsel %vm872, %v1484, 0
      %v1500 = vsel %vm872, %v1485, 0
      %1502 = vmatpush.msra.mxu0 0.0
      %1503 = vmatpush.msra.mxu0 0.0
      %1504 = vmatpush.msra.mxu0 0.0
      %1505 = vmatpush.msra.mxu0 0.0
      %1506 = vmatpush.msra.mxu0 0.0
      %1507 = vmatpush.msra.mxu0 0.0
      %1508 = vmatpush.msra.mxu0 0.0
      %1509 = vmatpush.msra.mxu0 0.0
      %1510 = vmatpush.msra.mxu0 0.0
      %1511 = vmatpush.msra.mxu0 0.0
      %1512 = vmatpush.msra.mxu0 0.0
      %1513 = vmatpush.msra.mxu0 0.0
      %1514 = vmatpush.msra.mxu0 %v1481
      %1515 = vmatpush.msra.mxu0 %v1480
      %1516 = vmatpush.msra.mxu0 %v1479
      %1517 = vmatpush.msra.mxu0 %v1478
      %1518 = vmatmul.f32.gmra.mxu0 %v1491
      %v1519 = vpop.f32.mrf.mxu0
      %v1520 = vadd.f32 %v1486, %v1519
      %1521 = vmatmul.f32.gmra.mxu0 %v1494
      %v1522 = vpop.f32.mrf.mxu0
      %v1523 = vadd.f32 %v1487, %v1522
      %1524 = vmatmul.f32.gmra.mxu0 %v1497
      %v1525 = vpop.f32.mrf.mxu0
      %v1526 = vadd.f32 %v1488, %v1525
      %1527 = vmatmul.f32.gmra.mxu0 %v1500
      %v1528 = vpop.f32.mrf.mxu0
      %v1529 = vadd.f32 %v1489, %v1528
      %1530 = vdwg.mxu0
      %v1531 = vmax.f32 %v1520, 0.0
      %v1532 = vmax.f32 %v1523, 0.0
      %v1533 = vmax.f32 %v1526, 0.0
      %v1534 = vmax.f32 %v1529, 0.0
      %v1535 = vld [vmem:[%s17] sm:$0xff]
      %v1536 = vld [vmem:[%s17 + $0x8] sm:$0xff]
      %v1537 = vld [vmem:[%s17 + $0x10] sm:$0xff]
      %v1538 = vld [vmem:[%s17 + $0x18] sm:$0xff]
      %v1539 = vld [vmem:[%s18] sm:$0xff]
      %v1540 = vld [vmem:[%s18 + $0x8] sm:$0xff]
      %v1541 = vld [vmem:[%s18 + $0x10] sm:$0xff]
      %v1542 = vld [vmem:[%s18 + $0x18] sm:$0xff]
      %v1544 = vsel %vm872, %v1535, 0
      %v1547 = vsel %vm872, %v1536, 0
      %v1550 = vsel %vm872, %v1537, 0
      %v1553 = vsel %vm872, %v1538, 0
      %1555 = vmatpush.msra.mxu0 0.0
      %1556 = vmatpush.msra.mxu0 0.0
      %1557 = vmatpush.msra.mxu0 0.0
      %1558 = vmatpush.msra.mxu0 0.0
      %1559 = vmatpush.msra.mxu0 0.0
      %1560 = vmatpush.msra.mxu0 0.0
      %1561 = vmatpush.msra.mxu0 0.0
      %1562 = vmatpush.msra.mxu0 0.0
      %1563 = vmatpush.msra.mxu0 0.0
      %1564 = vmatpush.msra.mxu0 0.0
      %1565 = vmatpush.msra.mxu0 0.0
      %1566 = vmatpush.msra.mxu0 0.0
      %1567 = vmatpush.msra.mxu0 %v1534
      %1568 = vmatpush.msra.mxu0 %v1533
      %1569 = vmatpush.msra.mxu0 %v1532
      %1570 = vmatpush.msra.mxu0 %v1531
      %1571 = vmatmul.f32.gmra.mxu0 %v1544
      %v1572 = vpop.f32.mrf.mxu0
      %v1573 = vadd.f32 %v1539, %v1572
      %1574 = vmatmul.f32.gmra.mxu0 %v1547
      %v1575 = vpop.f32.mrf.mxu0
      %v1576 = vadd.f32 %v1540, %v1575
      %1577 = vmatmul.f32.gmra.mxu0 %v1550
      %v1578 = vpop.f32.mrf.mxu0
      %v1579 = vadd.f32 %v1541, %v1578
      %1580 = vmatmul.f32.gmra.mxu0 %v1553
      %v1581 = vpop.f32.mrf.mxu0
      %v1582 = vadd.f32 %v1542, %v1581
      %1583 = vdwg.mxu0
      %v1584 = vmax.f32 %v1573, 0.0
      %v1585 = vmax.f32 %v1576, 0.0
      %v1586 = vmax.f32 %v1579, 0.0
      %v1587 = vmax.f32 %v1582, 0.0
      %v1588 = vld [vmem:[%s19] sm:$0xf]
      %v1589 = vld [vmem:[%s20] sm:$0xf]
      %v1591 = vsel %vm872, %v1588, 0
      %1593 = vmatpush.msra.mxu0 0.0
      %1594 = vmatpush.msra.mxu0 0.0
      %1595 = vmatpush.msra.mxu0 0.0
      %1596 = vmatpush.msra.mxu0 0.0
      %1597 = vmatpush.msra.mxu0 0.0
      %1598 = vmatpush.msra.mxu0 0.0
      %1599 = vmatpush.msra.mxu0 0.0
      %1600 = vmatpush.msra.mxu0 0.0
      %1601 = vmatpush.msra.mxu0 0.0
      %1602 = vmatpush.msra.mxu0 0.0
      %1603 = vmatpush.msra.mxu0 0.0
      %1604 = vmatpush.msra.mxu0 0.0
      %1605 = vmatpush.msra.mxu0 %v1587
      %1606 = vmatpush.msra.mxu0 %v1586
      %1607 = vmatpush.msra.mxu0 %v1585
      %1608 = vmatpush.msra.mxu0 %v1584
      %1609 = vmatmul.f32.gmra.mxu0 %v1591
      %v1610 = vpop.f32.mrf.mxu0
      %v1611 = vadd.f32 %v1589, %v1610
      %1612 = vdwg.mxu0
      %vm1613 = vcmask 3072
      %1614 = vst.msk [vmem:[#allocation2] sm:$0xf] %vm1613, %v1611
      %v1615 = vld [vmem:[%s666] sm:$0xff]
      %v1616 = vld [vmem:[%s666 + $0x8] sm:$0xff]
      %v1617 = vld [vmem:[#allocation2] sm:$0x1]
      %s1619 = vtos %v1617
      %v1620 = vstv %s1619
      %v1622 = vmul.f32 %v1620, %v1390
      %v1623 = vmul.f32 %v1620, %v1391
      %v1624 = vadd.f32 %v1615, %v1622
      %v1625 = vadd.f32 %v1616, %v1623
      %v1626 = vld [vmem:[#allocation2 + $0x1] sm:$0x1]
      %s1628 = vtos %v1626
      %v1629 = vstv %s1628
      %v1631 = vmul.f32 %v1629, %v1392
      %v1632 = vmul.f32 %v1629, %v1393
      %v1633 = vadd.f32 %v1624, %v1631
      %v1634 = vadd.f32 %v1625, %v1632
      %v1635 = vld [vmem:[#allocation2 + $0x2] sm:$0x1]
      %s1637 = vtos %v1635
      %v1638 = vstv %s1637
      %v1640 = vmul.f32 %v1638, %v1394
      %v1641 = vmul.f32 %v1638, %v1395
      %v1642 = vadd.f32 %v1633, %v1640
      %v1643 = vadd.f32 %v1634, %v1641
      %v1644 = vld [vmem:[#allocation2 + $0x3] sm:$0x1]
      %s1646 = vtos %v1644
      %v1647 = vstv %s1646
      %v1649 = vmul.f32 %v1647, %v1396
      %v1650 = vmul.f32 %v1647, %v1397
      %v1651 = vadd.f32 %v1642, %v1649
      %v1652 = vadd.f32 %v1643, %v1650
      %1653 = vst.msk [vmem:[%s676] sm:$0xff] %vm683, %v1651
      %1654 = vst.msk [vmem:[%s676 + $0x8] sm:$0xff] %vm683, %v1652
      %v1655 = vld [vmem:[%s2] sm:$0xff]
      %v1656 = vld [vmem:[%s2 + $0x8] sm:$0xff]
      %v1657 = vld [vmem:[%s2 + $0x10] sm:$0xff]
      %v1658 = vld [vmem:[%s2 + $0x18] sm:$0xff]
      %v1659 = vadd.f32 %v1655, %v1417
      %v1660 = vadd.f32 %v1656, %v1418
      %v1661 = vadd.f32 %v1657, %v1419
      %v1662 = vadd.f32 %v1658, %v1420
      %v1663 = vld [vmem:[%s6] sm:$0xff]
      %v1664 = vld [vmem:[%s6 + $0x8] sm:$0xff]
      %v1665 = vld [vmem:[%s6 + $0x10] sm:$0xff]
      %v1666 = vld [vmem:[%s6 + $0x18] sm:$0xff]
      %v1667 = vld [vmem:[%s7] sm:$0xff]
      %v1668 = vld [vmem:[%s7 + $0x8] sm:$0xff]
      %v1669 = vld [vmem:[%s7 + $0x10] sm:$0xff]
      %v1670 = vld [vmem:[%s7 + $0x18] sm:$0xff]
      %1675 = vrot.lane.b32.xlu0 %v1659, 127
      %v1676 = vpop.permute.xlu0 %1675
      %1677 = vrot.lane.b32.xlu0 %v1660, 127
      %v1678 = vpop.permute.xlu0 %1677
      %1679 = vrot.lane.b32.xlu0 %v1661, 127
      %v1680 = vpop.permute.xlu0 %1679
      %1681 = vrot.lane.b32.xlu0 %v1662, 127
      %v1682 = vpop.permute.xlu0 %1681
      %v1688 = vsel %vm872, %v1663, 0
      %v1691 = vsel %vm872, %v1664, 0
      %v1694 = vsel %vm872, %v1665, 0
      %v1697 = vsel %vm872, %v1666, 0
      %1699 = vmatpush.msra.mxu0 0.0
      %1700 = vmatpush.msra.mxu0 0.0
      %1701 = vmatpush.msra.mxu0 0.0
      %1702 = vmatpush.msra.mxu0 0.0
      %1703 = vmatpush.msra.mxu0 0.0
      %1704 = vmatpush.msra.mxu0 0.0
      %1705 = vmatpush.msra.mxu0 0.0
      %1706 = vmatpush.msra.mxu0 0.0
      %1707 = vmatpush.msra.mxu0 0.0
      %1708 = vmatpush.msra.mxu0 0.0
      %1709 = vmatpush.msra.mxu0 0.0
      %1710 = vmatpush.msra.mxu0 0.0
      %1711 = vmatpush.msra.mxu0 %v1682
      %1712 = vmatpush.msra.mxu0 %v1680
      %1713 = vmatpush.msra.mxu0 %v1678
      %1714 = vmatpush.msra.mxu0 %v1676
      %1715 = vmatmul.f32.gmra.mxu0 %v1688
      %v1716 = vpop.f32.mrf.mxu0
      %v1717 = vadd.f32 %v1667, %v1716
      %1718 = vmatmul.f32.gmra.mxu0 %v1691
      %v1719 = vpop.f32.mrf.mxu0
      %v1720 = vadd.f32 %v1668, %v1719
      %1721 = vmatmul.f32.gmra.mxu0 %v1694
      %v1722 = vpop.f32.mrf.mxu0
      %v1723 = vadd.f32 %v1669, %v1722
      %1724 = vmatmul.f32.gmra.mxu0 %v1697
      %v1725 = vpop.f32.mrf.mxu0
      %v1726 = vadd.f32 %v1670, %v1725
      %1727 = vdwg.mxu0
      %v1728 = vmax.f32 %v1717, 0.0
      %v1729 = vmax.f32 %v1720, 0.0
      %v1730 = vmax.f32 %v1723, 0.0
      %v1731 = vmax.f32 %v1726, 0.0
      %s1732 = scalar_lea.vmem %s15, 32
      %v1733 = vld [vmem:[%s1732] sm:$0xff]
      %v1734 = vld [vmem:[%s1732 + $0x8] sm:$0xff]
      %v1735 = vld [vmem:[%s1732 + $0x10] sm:$0xff]
      %v1736 = vld [vmem:[%s1732 + $0x18] sm:$0xff]
      %s1737 = scalar_lea.vmem %s16, 32
      %v1738 = vld [vmem:[%s1737] sm:$0xff]
      %v1739 = vld [vmem:[%s1737 + $0x8] sm:$0xff]
      %v1740 = vld [vmem:[%s1737 + $0x10] sm:$0xff]
      %v1741 = vld [vmem:[%s1737 + $0x18] sm:$0xff]
      %v1743 = vsel %vm872, %v1733, 0
      %v1746 = vsel %vm872, %v1734, 0
      %v1749 = vsel %vm872, %v1735, 0
      %v1752 = vsel %vm872, %v1736, 0
      %1754 = vmatpush.msra.mxu0 0.0
      %1755 = vmatpush.msra.mxu0 0.0
      %1756 = vmatpush.msra.mxu0 0.0
      %1757 = vmatpush.msra.mxu0 0.0
      %1758 = vmatpush.msra.mxu0 0.0
      %1759 = vmatpush.msra.mxu0 0.0
      %1760 = vmatpush.msra.mxu0 0.0
      %1761 = vmatpush.msra.mxu0 0.0
      %1762 = vmatpush.msra.mxu0 0.0
      %1763 = vmatpush.msra.mxu0 0.0
      %1764 = vmatpush.msra.mxu0 0.0
      %1765 = vmatpush.msra.mxu0 0.0
      %1766 = vmatpush.msra.mxu0 %v1731
      %1767 = vmatpush.msra.mxu0 %v1730
      %1768 = vmatpush.msra.mxu0 %v1729
      %1769 = vmatpush.msra.mxu0 %v1728
      %1770 = vmatmul.f32.gmra.mxu0 %v1743
      %v1771 = vpop.f32.mrf.mxu0
      %v1772 = vadd.f32 %v1738, %v1771
      %1773 = vmatmul.f32.gmra.mxu0 %v1746
      %v1774 = vpop.f32.mrf.mxu0
      %v1775 = vadd.f32 %v1739, %v1774
      %1776 = vmatmul.f32.gmra.mxu0 %v1749
      %v1777 = vpop.f32.mrf.mxu0
      %v1778 = vadd.f32 %v1740, %v1777
      %1779 = vmatmul.f32.gmra.mxu0 %v1752
      %v1780 = vpop.f32.mrf.mxu0
      %v1781 = vadd.f32 %v1741, %v1780
      %1782 = vdwg.mxu0
      %v1783 = vmax.f32 %v1772, 0.0
      %v1784 = vmax.f32 %v1775, 0.0
      %v1785 = vmax.f32 %v1778, 0.0
      %v1786 = vmax.f32 %v1781, 0.0
      %s1787 = scalar_lea.vmem %s17, 32
      %v1788 = vld [vmem:[%s1787] sm:$0xff]
      %v1789 = vld [vmem:[%s1787 + $0x8] sm:$0xff]
      %v1790 = vld [vmem:[%s1787 + $0x10] sm:$0xff]
      %v1791 = vld [vmem:[%s1787 + $0x18] sm:$0xff]
      %s1792 = scalar_lea.vmem %s18, 32
      %v1793 = vld [vmem:[%s1792] sm:$0xff]
      %v1794 = vld [vmem:[%s1792 + $0x8] sm:$0xff]
      %v1795 = vld [vmem:[%s1792 + $0x10] sm:$0xff]
      %v1796 = vld [vmem:[%s1792 + $0x18] sm:$0xff]
      %v1798 = vsel %vm872, %v1788, 0
      %v1801 = vsel %vm872, %v1789, 0
      %v1804 = vsel %vm872, %v1790, 0
      %v1807 = vsel %vm872, %v1791, 0
      %1809 = vmatpush.msra.mxu0 0.0
      %1810 = vmatpush.msra.mxu0 0.0
      %1811 = vmatpush.msra.mxu0 0.0
      %1812 = vmatpush.msra.mxu0 0.0
      %1813 = vmatpush.msra.mxu0 0.0
      %1814 = vmatpush.msra.mxu0 0.0
      %1815 = vmatpush.msra.mxu0 0.0
      %1816 = vmatpush.msra.mxu0 0.0
      %1817 = vmatpush.msra.mxu0 0.0
      %1818 = vmatpush.msra.mxu0 0.0
      %1819 = vmatpush.msra.mxu0 0.0
      %1820 = vmatpush.msra.mxu0 0.0
      %1821 = vmatpush.msra.mxu0 %v1786
      %1822 = vmatpush.msra.mxu0 %v1785
      %1823 = vmatpush.msra.mxu0 %v1784
      %1824 = vmatpush.msra.mxu0 %v1783
      %1825 = vmatmul.f32.gmra.mxu0 %v1798
      %v1826 = vpop.f32.mrf.mxu0
      %v1827 = vadd.f32 %v1793, %v1826
      %1828 = vmatmul.f32.gmra.mxu0 %v1801
      %v1829 = vpop.f32.mrf.mxu0
      %v1830 = vadd.f32 %v1794, %v1829
      %1831 = vmatmul.f32.gmra.mxu0 %v1804
      %v1832 = vpop.f32.mrf.mxu0
      %v1833 = vadd.f32 %v1795, %v1832
      %1834 = vmatmul.f32.gmra.mxu0 %v1807
      %v1835 = vpop.f32.mrf.mxu0
      %v1836 = vadd.f32 %v1796, %v1835
      %1837 = vdwg.mxu0
      %v1838 = vmax.f32 %v1827, 0.0
      %v1839 = vmax.f32 %v1830, 0.0
      %v1840 = vmax.f32 %v1833, 0.0
      %v1841 = vmax.f32 %v1836, 0.0
      %s1842 = scalar_lea.vmem %s19, 4
      %v1843 = vld [vmem:[%s1842] sm:$0xf]
      %s1844 = scalar_lea.vmem %s20, 4
      %v1845 = vld [vmem:[%s1844] sm:$0xf]
      %v1847 = vsel %vm872, %v1843, 0
      %1849 = vmatpush.msra.mxu0 0.0
      %1850 = vmatpush.msra.mxu0 0.0
      %1851 = vmatpush.msra.mxu0 0.0
      %1852 = vmatpush.msra.mxu0 0.0
      %1853 = vmatpush.msra.mxu0 0.0
      %1854 = vmatpush.msra.mxu0 0.0
      %1855 = vmatpush.msra.mxu0 0.0
      %1856 = vmatpush.msra.mxu0 0.0
      %1857 = vmatpush.msra.mxu0 0.0
      %1858 = vmatpush.msra.mxu0 0.0
      %1859 = vmatpush.msra.mxu0 0.0
      %1860 = vmatpush.msra.mxu0 0.0
      %1861 = vmatpush.msra.mxu0 %v1841
      %1862 = vmatpush.msra.mxu0 %v1840
      %1863 = vmatpush.msra.mxu0 %v1839
      %1864 = vmatpush.msra.mxu0 %v1838
      %1865 = vmatmul.f32.gmra.mxu0 %v1847
      %v1866 = vpop.f32.mrf.mxu0
      %v1867 = vadd.f32 %v1845, %v1866
      %1868 = vdwg.mxu0
      %1869 = vst.msk [vmem:[#allocation2] sm:$0xf] %vm1613, %v1867
      %v1870 = vld [vmem:[%s733] sm:$0xff]
      %v1871 = vld [vmem:[%s733 + $0x8] sm:$0xff]
      %v1872 = vld [vmem:[#allocation2] sm:$0x1]
      %s1874 = vtos %v1872
      %v1875 = vstv %s1874
      %v1877 = vmul.f32 %v1875, %v1390
      %v1878 = vmul.f32 %v1875, %v1391
      %v1879 = vadd.f32 %v1870, %v1877
      %v1880 = vadd.f32 %v1871, %v1878
      %v1881 = vld [vmem:[#allocation2 + $0x1] sm:$0x1]
      %s1883 = vtos %v1881
      %v1884 = vstv %s1883
      %v1886 = vmul.f32 %v1884, %v1392
      %v1887 = vmul.f32 %v1884, %v1393
      %v1888 = vadd.f32 %v1879, %v1886
      %v1889 = vadd.f32 %v1880, %v1887
      %v1890 = vld [vmem:[#allocation2 + $0x2] sm:$0x1]
      %s1892 = vtos %v1890
      %v1893 = vstv %s1892
      %v1895 = vmul.f32 %v1893, %v1394
      %v1896 = vmul.f32 %v1893, %v1395
      %v1897 = vadd.f32 %v1888, %v1895
      %v1898 = vadd.f32 %v1889, %v1896
      %v1899 = vld [vmem:[#allocation2 + $0x3] sm:$0x1]
      %s1901 = vtos %v1899
      %v1902 = vstv %s1901
      %v1904 = vmul.f32 %v1902, %v1396
      %v1905 = vmul.f32 %v1902, %v1397
      %v1906 = vadd.f32 %v1897, %v1904
      %v1907 = vadd.f32 %v1898, %v1905
      %s1908 = scalar_lea.vmem %s676, 16
      %1909 = vst.msk [vmem:[%s1908] sm:$0xff] %vm683, %v1906
      %1910 = vst.msk [vmem:[%s1908 + $0x8] sm:$0xff] %vm683, %v1907
      %v1911 = vld [vmem:[%s2] sm:$0xff]
      %v1912 = vld [vmem:[%s2 + $0x8] sm:$0xff]
      %v1913 = vld [vmem:[%s2 + $0x10] sm:$0xff]
      %v1914 = vld [vmem:[%s2 + $0x18] sm:$0xff]
      %v1915 = vadd.f32 %v1911, %v1417
      %v1916 = vadd.f32 %v1912, %v1418
      %v1917 = vadd.f32 %v1913, %v1419
      %v1918 = vadd.f32 %v1914, %v1420
      %v1919 = vld [vmem:[%s6] sm:$0xff]
      %v1920 = vld [vmem:[%s6 + $0x8] sm:$0xff]
      %v1921 = vld [vmem:[%s6 + $0x10] sm:$0xff]
      %v1922 = vld [vmem:[%s6 + $0x18] sm:$0xff]
      %v1923 = vld [vmem:[%s7] sm:$0xff]
      %v1924 = vld [vmem:[%s7 + $0x8] sm:$0xff]
      %v1925 = vld [vmem:[%s7 + $0x10] sm:$0xff]
      %v1926 = vld [vmem:[%s7 + $0x18] sm:$0xff]
      %1931 = vrot.lane.b32.xlu0 %v1915, 126
      %v1932 = vpop.permute.xlu0 %1931
      %1933 = vrot.lane.b32.xlu0 %v1916, 126
      %v1934 = vpop.permute.xlu0 %1933
      %1935 = vrot.lane.b32.xlu0 %v1917, 126
      %v1936 = vpop.permute.xlu0 %1935
      %1937 = vrot.lane.b32.xlu0 %v1918, 126
      %v1938 = vpop.permute.xlu0 %1937
      %v1944 = vsel %vm872, %v1919, 0
      %v1947 = vsel %vm872, %v1920, 0
      %v1950 = vsel %vm872, %v1921, 0
      %v1953 = vsel %vm872, %v1922, 0
      %1955 = vmatpush.msra.mxu0 0.0
      %1956 = vmatpush.msra.mxu0 0.0
      %1957 = vmatpush.msra.mxu0 0.0
      %1958 = vmatpush.msra.mxu0 0.0
      %1959 = vmatpush.msra.mxu0 0.0
      %1960 = vmatpush.msra.mxu0 0.0
      %1961 = vmatpush.msra.mxu0 0.0
      %1962 = vmatpush.msra.mxu0 0.0
      %1963 = vmatpush.msra.mxu0 0.0
      %1964 = vmatpush.msra.mxu0 0.0
      %1965 = vmatpush.msra.mxu0 0.0
      %1966 = vmatpush.msra.mxu0 0.0
      %1967 = vmatpush.msra.mxu0 %v1938
      %1968 = vmatpush.msra.mxu0 %v1936
      %1969 = vmatpush.msra.mxu0 %v1934
      %1970 = vmatpush.msra.mxu0 %v1932
      %1971 = vmatmul.f32.gmra.mxu0 %v1944
      %v1972 = vpop.f32.mrf.mxu0
      %v1973 = vadd.f32 %v1923, %v1972
      %1974 = vmatmul.f32.gmra.mxu0 %v1947
      %v1975 = vpop.f32.mrf.mxu0
      %v1976 = vadd.f32 %v1924, %v1975
      %1977 = vmatmul.f32.gmra.mxu0 %v1950
      %v1978 = vpop.f32.mrf.mxu0
      %v1979 = vadd.f32 %v1925, %v1978
      %1980 = vmatmul.f32.gmra.mxu0 %v1953
      %v1981 = vpop.f32.mrf.mxu0
      %v1982 = vadd.f32 %v1926, %v1981
      %1983 = vdwg.mxu0
      %v1984 = vmax.f32 %v1973, 0.0
      %v1985 = vmax.f32 %v1976, 0.0
      %v1986 = vmax.f32 %v1979, 0.0
      %v1987 = vmax.f32 %v1982, 0.0
      %s1988 = scalar_lea.vmem %s15, 64
      %v1989 = vld [vmem:[%s1988] sm:$0xff]
      %v1990 = vld [vmem:[%s1988 + $0x8] sm:$0xff]
      %v1991 = vld [vmem:[%s1988 + $0x10] sm:$0xff]
      %v1992 = vld [vmem:[%s1988 + $0x18] sm:$0xff]
      %s1993 = scalar_lea.vmem %s16, 64
      %v1994 = vld [vmem:[%s1993] sm:$0xff]
      %v1995 = vld [vmem:[%s1993 + $0x8] sm:$0xff]
      %v1996 = vld [vmem:[%s1993 + $0x10] sm:$0xff]
      %v1997 = vld [vmem:[%s1993 + $0x18] sm:$0xff]
      %v1999 = vsel %vm872, %v1989, 0
      %v2002 = vsel %vm872, %v1990, 0
      %v2005 = vsel %vm872, %v1991, 0
      %v2008 = vsel %vm872, %v1992, 0
      %2010 = vmatpush.msra.mxu0 0.0
      %2011 = vmatpush.msra.mxu0 0.0
      %2012 = vmatpush.msra.mxu0 0.0
      %2013 = vmatpush.msra.mxu0 0.0
      %2014 = vmatpush.msra.mxu0 0.0
      %2015 = vmatpush.msra.mxu0 0.0
      %2016 = vmatpush.msra.mxu0 0.0
      %2017 = vmatpush.msra.mxu0 0.0
      %2018 = vmatpush.msra.mxu0 0.0
      %2019 = vmatpush.msra.mxu0 0.0
      %2020 = vmatpush.msra.mxu0 0.0
      %2021 = vmatpush.msra.mxu0 0.0
      %2022 = vmatpush.msra.mxu0 %v1987
      %2023 = vmatpush.msra.mxu0 %v1986
      %2024 = vmatpush.msra.mxu0 %v1985
      %2025 = vmatpush.msra.mxu0 %v1984
      %2026 = vmatmul.f32.gmra.mxu0 %v1999
      %v2027 = vpop.f32.mrf.mxu0
      %v2028 = vadd.f32 %v1994, %v2027
      %2029 = vmatmul.f32.gmra.mxu0 %v2002
      %v2030 = vpop.f32.mrf.mxu0
      %v2031 = vadd.f32 %v1995, %v2030
      %2032 = vmatmul.f32.gmra.mxu0 %v2005
      %v2033 = vpop.f32.mrf.mxu0
      %v2034 = vadd.f32 %v1996, %v2033
      %2035 = vmatmul.f32.gmra.mxu0 %v2008
      %v2036 = vpop.f32.mrf.mxu0
      %v2037 = vadd.f32 %v1997, %v2036
      %2038 = vdwg.mxu0
      %v2039 = vmax.f32 %v2028, 0.0
      %v2040 = vmax.f32 %v2031, 0.0
      %v2041 = vmax.f32 %v2034, 0.0
      %v2042 = vmax.f32 %v2037, 0.0
      %s2043 = scalar_lea.vmem %s17, 64
      %v2044 = vld [vmem:[%s2043] sm:$0xff]
      %v2045 = vld [vmem:[%s2043 + $0x8] sm:$0xff]
      %v2046 = vld [vmem:[%s2043 + $0x10] sm:$0xff]
      %v2047 = vld [vmem:[%s2043 + $0x18] sm:$0xff]
      %s2048 = scalar_lea.vmem %s18, 64
      %v2049 = vld [vmem:[%s2048] sm:$0xff]
      %v2050 = vld [vmem:[%s2048 + $0x8] sm:$0xff]
      %v2051 = vld [vmem:[%s2048 + $0x10] sm:$0xff]
      %v2052 = vld [vmem:[%s2048 + $0x18] sm:$0xff]
      %v2054 = vsel %vm872, %v2044, 0
      %v2057 = vsel %vm872, %v2045, 0
      %v2060 = vsel %vm872, %v2046, 0
      %v2063 = vsel %vm872, %v2047, 0
      %2065 = vmatpush.msra.mxu0 0.0
      %2066 = vmatpush.msra.mxu0 0.0
      %2067 = vmatpush.msra.mxu0 0.0
      %2068 = vmatpush.msra.mxu0 0.0
      %2069 = vmatpush.msra.mxu0 0.0
      %2070 = vmatpush.msra.mxu0 0.0
      %2071 = vmatpush.msra.mxu0 0.0
      %2072 = vmatpush.msra.mxu0 0.0
      %2073 = vmatpush.msra.mxu0 0.0
      %2074 = vmatpush.msra.mxu0 0.0
      %2075 = vmatpush.msra.mxu0 0.0
      %2076 = vmatpush.msra.mxu0 0.0
      %2077 = vmatpush.msra.mxu0 %v2042
      %2078 = vmatpush.msra.mxu0 %v2041
      %2079 = vmatpush.msra.mxu0 %v2040
      %2080 = vmatpush.msra.mxu0 %v2039
      %2081 = vmatmul.f32.gmra.mxu0 %v2054
      %v2082 = vpop.f32.mrf.mxu0
      %v2083 = vadd.f32 %v2049, %v2082
      %2084 = vmatmul.f32.gmra.mxu0 %v2057
      %v2085 = vpop.f32.mrf.mxu0
      %v2086 = vadd.f32 %v2050, %v2085
      %2087 = vmatmul.f32.gmra.mxu0 %v2060
      %v2088 = vpop.f32.mrf.mxu0
      %v2089 = vadd.f32 %v2051, %v2088
      %2090 = vmatmul.f32.gmra.mxu0 %v2063
      %v2091 = vpop.f32.mrf.mxu0
      %v2092 = vadd.f32 %v2052, %v2091
      %2093 = vdwg.mxu0
      %v2094 = vmax.f32 %v2083, 0.0
      %v2095 = vmax.f32 %v2086, 0.0
      %v2096 = vmax.f32 %v2089, 0.0
      %v2097 = vmax.f32 %v2092, 0.0
      %s2098 = scalar_lea.vmem %s19, 8
      %v2099 = vld [vmem:[%s2098] sm:$0xf]
      %s2100 = scalar_lea.vmem %s20, 8
      %v2101 = vld [vmem:[%s2100] sm:$0xf]
      %v2103 = vsel %vm872, %v2099, 0
      %2105 = vmatpush.msra.mxu0 0.0
      %2106 = vmatpush.msra.mxu0 0.0
      %2107 = vmatpush.msra.mxu0 0.0
      %2108 = vmatpush.msra.mxu0 0.0
      %2109 = vmatpush.msra.mxu0 0.0
      %2110 = vmatpush.msra.mxu0 0.0
      %2111 = vmatpush.msra.mxu0 0.0
      %2112 = vmatpush.msra.mxu0 0.0
      %2113 = vmatpush.msra.mxu0 0.0
      %2114 = vmatpush.msra.mxu0 0.0
      %2115 = vmatpush.msra.mxu0 0.0
      %2116 = vmatpush.msra.mxu0 0.0
      %2117 = vmatpush.msra.mxu0 %v2097
      %2118 = vmatpush.msra.mxu0 %v2096
      %2119 = vmatpush.msra.mxu0 %v2095
      %2120 = vmatpush.msra.mxu0 %v2094
      %2121 = vmatmul.f32.gmra.mxu0 %v2103
      %v2122 = vpop.f32.mrf.mxu0
      %v2123 = vadd.f32 %v2101, %v2122
      %2124 = vdwg.mxu0
      %2125 = vst.msk [vmem:[#allocation2] sm:$0xf] %vm1613, %v2123
      %v2126 = vld [vmem:[%s770] sm:$0xff]
      %v2127 = vld [vmem:[%s770 + $0x8] sm:$0xff]
      %v2128 = vld [vmem:[#allocation2] sm:$0x1]
      %s2130 = vtos %v2128
      %v2131 = vstv %s2130
      %v2133 = vmul.f32 %v2131, %v1390
      %v2134 = vmul.f32 %v2131, %v1391
      %v2135 = vadd.f32 %v2126, %v2133
      %v2136 = vadd.f32 %v2127, %v2134
      %v2137 = vld [vmem:[#allocation2 + $0x1] sm:$0x1]
      %s2139 = vtos %v2137
      %v2140 = vstv %s2139
      %v2142 = vmul.f32 %v2140, %v1392
      %v2143 = vmul.f32 %v2140, %v1393
      %v2144 = vadd.f32 %v2135, %v2142
      %v2145 = vadd.f32 %v2136, %v2143
      %v2146 = vld [vmem:[#allocation2 + $0x2] sm:$0x1]
      %s2148 = vtos %v2146
      %v2149 = vstv %s2148
      %v2151 = vmul.f32 %v2149, %v1394
      %v2152 = vmul.f32 %v2149, %v1395
      %v2153 = vadd.f32 %v2144, %v2151
      %v2154 = vadd.f32 %v2145, %v2152
      %v2155 = vld [vmem:[#allocation2 + $0x3] sm:$0x1]
      %s2157 = vtos %v2155
      %v2158 = vstv %s2157
      %v2160 = vmul.f32 %v2158, %v1396
      %v2161 = vmul.f32 %v2158, %v1397
      %v2162 = vadd.f32 %v2153, %v2160
      %v2163 = vadd.f32 %v2154, %v2161
      %s2164 = scalar_lea.vmem %s676, 32
      %2165 = vst.msk [vmem:[%s2164] sm:$0xff] %vm683, %v2162
      %2166 = vst.msk [vmem:[%s2164 + $0x8] sm:$0xff] %vm683, %v2163
      %v2167 = vld [vmem:[%s2] sm:$0xff]
      %v2168 = vld [vmem:[%s2 + $0x8] sm:$0xff]
      %v2169 = vld [vmem:[%s2 + $0x10] sm:$0xff]
      %v2170 = vld [vmem:[%s2 + $0x18] sm:$0xff]
      %v2171 = vadd.f32 %v2167, %v1417
      %v2172 = vadd.f32 %v2168, %v1418
      %v2173 = vadd.f32 %v2169, %v1419
      %v2174 = vadd.f32 %v2170, %v1420
      %v2175 = vld [vmem:[%s6] sm:$0xff]
      %v2176 = vld [vmem:[%s6 + $0x8] sm:$0xff]
      %v2177 = vld [vmem:[%s6 + $0x10] sm:$0xff]
      %v2178 = vld [vmem:[%s6 + $0x18] sm:$0xff]
      %v2179 = vld [vmem:[%s7] sm:$0xff]
      %v2180 = vld [vmem:[%s7 + $0x8] sm:$0xff]
      %v2181 = vld [vmem:[%s7 + $0x10] sm:$0xff]
      %v2182 = vld [vmem:[%s7 + $0x18] sm:$0xff]
      %2187 = vrot.lane.b32.xlu0 %v2171, 125
      %v2188 = vpop.permute.xlu0 %2187
      %2189 = vrot.lane.b32.xlu0 %v2172, 125
      %v2190 = vpop.permute.xlu0 %2189
      %2191 = vrot.lane.b32.xlu0 %v2173, 125
      %v2192 = vpop.permute.xlu0 %2191
      %2193 = vrot.lane.b32.xlu0 %v2174, 125
      %v2194 = vpop.permute.xlu0 %2193
      %v2200 = vsel %vm872, %v2175, 0
      %v2203 = vsel %vm872, %v2176, 0
      %v2206 = vsel %vm872, %v2177, 0
      %v2209 = vsel %vm872, %v2178, 0
      %2211 = vmatpush.msra.mxu0 0.0
      %2212 = vmatpush.msra.mxu0 0.0
      %2213 = vmatpush.msra.mxu0 0.0
      %2214 = vmatpush.msra.mxu0 0.0
      %2215 = vmatpush.msra.mxu0 0.0
      %2216 = vmatpush.msra.mxu0 0.0
      %2217 = vmatpush.msra.mxu0 0.0
      %2218 = vmatpush.msra.mxu0 0.0
      %2219 = vmatpush.msra.mxu0 0.0
      %2220 = vmatpush.msra.mxu0 0.0
      %2221 = vmatpush.msra.mxu0 0.0
      %2222 = vmatpush.msra.mxu0 0.0
      %2223 = vmatpush.msra.mxu0 %v2194
      %2224 = vmatpush.msra.mxu0 %v2192
      %2225 = vmatpush.msra.mxu0 %v2190
      %2226 = vmatpush.msra.mxu0 %v2188
      %2227 = vmatmul.f32.gmra.mxu0 %v2200
      %v2228 = vpop.f32.mrf.mxu0
      %v2229 = vadd.f32 %v2179, %v2228
      %2230 = vmatmul.f32.gmra.mxu0 %v2203
      %v2231 = vpop.f32.mrf.mxu0
      %v2232 = vadd.f32 %v2180, %v2231
      %2233 = vmatmul.f32.gmra.mxu0 %v2206
      %v2234 = vpop.f32.mrf.mxu0
      %v2235 = vadd.f32 %v2181, %v2234
      %2236 = vmatmul.f32.gmra.mxu0 %v2209
      %v2237 = vpop.f32.mrf.mxu0
      %v2238 = vadd.f32 %v2182, %v2237
      %2239 = vdwg.mxu0
      %v2240 = vmax.f32 %v2229, 0.0
      %v2241 = vmax.f32 %v2232, 0.0
      %v2242 = vmax.f32 %v2235, 0.0
      %v2243 = vmax.f32 %v2238, 0.0
      %s2244 = scalar_lea.vmem %s15, 96
      %v2245 = vld [vmem:[%s2244] sm:$0xff]
      %v2246 = vld [vmem:[%s2244 + $0x8] sm:$0xff]
      %v2247 = vld [vmem:[%s2244 + $0x10] sm:$0xff]
      %v2248 = vld [vmem:[%s2244 + $0x18] sm:$0xff]
      %s2249 = scalar_lea.vmem %s16, 96
      %v2250 = vld [vmem:[%s2249] sm:$0xff]
      %v2251 = vld [vmem:[%s2249 + $0x8] sm:$0xff]
      %v2252 = vld [vmem:[%s2249 + $0x10] sm:$0xff]
      %v2253 = vld [vmem:[%s2249 + $0x18] sm:$0xff]
      %v2255 = vsel %vm872, %v2245, 0
      %v2258 = vsel %vm872, %v2246, 0
      %v2261 = vsel %vm872, %v2247, 0
      %v2264 = vsel %vm872, %v2248, 0
      %2266 = vmatpush.msra.mxu0 0.0
      %2267 = vmatpush.msra.mxu0 0.0
      %2268 = vmatpush.msra.mxu0 0.0
      %2269 = vmatpush.msra.mxu0 0.0
      %2270 = vmatpush.msra.mxu0 0.0
      %2271 = vmatpush.msra.mxu0 0.0
      %2272 = vmatpush.msra.mxu0 0.0
      %2273 = vmatpush.msra.mxu0 0.0
      %2274 = vmatpush.msra.mxu0 0.0
      %2275 = vmatpush.msra.mxu0 0.0
      %2276 = vmatpush.msra.mxu0 0.0
      %2277 = vmatpush.msra.mxu0 0.0
      %2278 = vmatpush.msra.mxu0 %v2243
      %2279 = vmatpush.msra.mxu0 %v2242
      %2280 = vmatpush.msra.mxu0 %v2241
      %2281 = vmatpush.msra.mxu0 %v2240
      %2282 = vmatmul.f32.gmra.mxu0 %v2255
      %v2283 = vpop.f32.mrf.mxu0
      %v2284 = vadd.f32 %v2250, %v2283
      %2285 = vmatmul.f32.gmra.mxu0 %v2258
      %v2286 = vpop.f32.mrf.mxu0
      %v2287 = vadd.f32 %v2251, %v2286
      %2288 = vmatmul.f32.gmra.mxu0 %v2261
      %v2289 = vpop.f32.mrf.mxu0
      %v2290 = vadd.f32 %v2252, %v2289
      %2291 = vmatmul.f32.gmra.mxu0 %v2264
      %v2292 = vpop.f32.mrf.mxu0
      %v2293 = vadd.f32 %v2253, %v2292
      %2294 = vdwg.mxu0
      %v2295 = vmax.f32 %v2284, 0.0
      %v2296 = vmax.f32 %v2287, 0.0
      %v2297 = vmax.f32 %v2290, 0.0
      %v2298 = vmax.f32 %v2293, 0.0
      %s2299 = scalar_lea.vmem %s17, 96
      %v2300 = vld [vmem:[%s2299] sm:$0xff]
      %v2301 = vld [vmem:[%s2299 + $0x8] sm:$0xff]
      %v2302 = vld [vmem:[%s2299 + $0x10] sm:$0xff]
      %v2303 = vld [vmem:[%s2299 + $0x18] sm:$0xff]
      %s2304 = scalar_lea.vmem %s18, 96
      %v2305 = vld [vmem:[%s2304] sm:$0xff]
      %v2306 = vld [vmem:[%s2304 + $0x8] sm:$0xff]
      %v2307 = vld [vmem:[%s2304 + $0x10] sm:$0xff]
      %v2308 = vld [vmem:[%s2304 + $0x18] sm:$0xff]
      %v2310 = vsel %vm872, %v2300, 0
      %v2313 = vsel %vm872, %v2301, 0
      %v2316 = vsel %vm872, %v2302, 0
      %v2319 = vsel %vm872, %v2303, 0
      %2321 = vmatpush.msra.mxu0 0.0
      %2322 = vmatpush.msra.mxu0 0.0
      %2323 = vmatpush.msra.mxu0 0.0
      %2324 = vmatpush.msra.mxu0 0.0
      %2325 = vmatpush.msra.mxu0 0.0
      %2326 = vmatpush.msra.mxu0 0.0
      %2327 = vmatpush.msra.mxu0 0.0
      %2328 = vmatpush.msra.mxu0 0.0
      %2329 = vmatpush.msra.mxu0 0.0
      %2330 = vmatpush.msra.mxu0 0.0
      %2331 = vmatpush.msra.mxu0 0.0
      %2332 = vmatpush.msra.mxu0 0.0
      %2333 = vmatpush.msra.mxu0 %v2298
      %2334 = vmatpush.msra.mxu0 %v2297
      %2335 = vmatpush.msra.mxu0 %v2296
      %2336 = vmatpush.msra.mxu0 %v2295
      %2337 = vmatmul.f32.gmra.mxu0 %v2310
      %v2338 = vpop.f32.mrf.mxu0
      %v2339 = vadd.f32 %v2305, %v2338
      %2340 = vmatmul.f32.gmra.mxu0 %v2313
      %v2341 = vpop.f32.mrf.mxu0
      %v2342 = vadd.f32 %v2306, %v2341
      %2343 = vmatmul.f32.gmra.mxu0 %v2316
      %v2344 = vpop.f32.mrf.mxu0
      %v2345 = vadd.f32 %v2307, %v2344
      %2346 = vmatmul.f32.gmra.mxu0 %v2319
      %v2347 = vpop.f32.mrf.mxu0
      %v2348 = vadd.f32 %v2308, %v2347
      %2349 = vdwg.mxu0
      %v2350 = vmax.f32 %v2339, 0.0
      %v2351 = vmax.f32 %v2342, 0.0
      %v2352 = vmax.f32 %v2345, 0.0
      %v2353 = vmax.f32 %v2348, 0.0
      %s2354 = scalar_lea.vmem %s19, 12
      %v2355 = vld [vmem:[%s2354] sm:$0xf]
      %s2356 = scalar_lea.vmem %s20, 12
      %v2357 = vld [vmem:[%s2356] sm:$0xf]
      %v2359 = vsel %vm872, %v2355, 0
      %2361 = vmatpush.msra.mxu0 0.0
      %2362 = vmatpush.msra.mxu0 0.0
      %2363 = vmatpush.msra.mxu0 0.0
      %2364 = vmatpush.msra.mxu0 0.0
      %2365 = vmatpush.msra.mxu0 0.0
      %2366 = vmatpush.msra.mxu0 0.0
      %2367 = vmatpush.msra.mxu0 0.0
      %2368 = vmatpush.msra.mxu0 0.0
      %2369 = vmatpush.msra.mxu0 0.0
      %2370 = vmatpush.msra.mxu0 0.0
      %2371 = vmatpush.msra.mxu0 0.0
      %2372 = vmatpush.msra.mxu0 0.0
      %2373 = vmatpush.msra.mxu0 %v2353
      %2374 = vmatpush.msra.mxu0 %v2352
      %2375 = vmatpush.msra.mxu0 %v2351
      %2376 = vmatpush.msra.mxu0 %v2350
      %2377 = vmatmul.f32.gmra.mxu0 %v2359
      %v2378 = vpop.f32.mrf.mxu0
      %v2379 = vadd.f32 %v2357, %v2378
      %2380 = vdwg.mxu0
      %2381 = vst.msk [vmem:[#allocation2] sm:$0xf] %vm1613, %v2379
      %v2382 = vld [vmem:[%s807] sm:$0xff]
      %v2383 = vld [vmem:[%s807 + $0x8] sm:$0xff]
      %v2384 = vld [vmem:[#allocation2] sm:$0x1]
      %s2386 = vtos %v2384
      %v2387 = vstv %s2386
      %v2389 = vmul.f32 %v2387, %v1390
      %v2390 = vmul.f32 %v2387, %v1391
      %v2391 = vadd.f32 %v2382, %v2389
      %v2392 = vadd.f32 %v2383, %v2390
      %v2393 = vld [vmem:[#allocation2 + $0x1] sm:$0x1]
      %s2395 = vtos %v2393
      %v2396 = vstv %s2395
      %v2398 = vmul.f32 %v2396, %v1392
      %v2399 = vmul.f32 %v2396, %v1393
      %v2400 = vadd.f32 %v2391, %v2398
      %v2401 = vadd.f32 %v2392, %v2399
      %v2402 = vld [vmem:[#allocation2 + $0x2] sm:$0x1]
      %s2404 = vtos %v2402
      %v2405 = vstv %s2404
      %v2407 = vmul.f32 %v2405, %v1394
      %v2408 = vmul.f32 %v2405, %v1395
      %v2409 = vadd.f32 %v2400, %v2407
      %v2410 = vadd.f32 %v2401, %v2408
      %v2411 = vld [vmem:[#allocation2 + $0x3] sm:$0x1]
      %s2413 = vtos %v2411
      %v2414 = vstv %s2413
      %v2416 = vmul.f32 %v2414, %v1396
      %v2417 = vmul.f32 %v2414, %v1397
      %v2418 = vadd.f32 %v2409, %v2416
      %v2419 = vadd.f32 %v2410, %v2417
      %s2420 = scalar_lea.vmem %s676, 48
      %2421 = vst.msk [vmem:[%s2420] sm:$0xff] %vm683, %v2418
      %2422 = vst.msk [vmem:[%s2420 + $0x8] sm:$0xff] %vm683, %v2419
      %p2423 = scmp.lt.s32.totalorder %s32, 1
      %s2424 = scalar_select %p2423, %s32, 1
      %s2425 = smul.addr %s2424, 8
      %s2426 = smul.addr %s2425, 8
      %s2427 = scalar_lea.vmem %s21, %s2426
      // Predicated region
      $region105: #{mask_decoder_iter_forward.2} parent=103 // pred_check
        %p2428 = pneg %p501
      $region106: #{mask_decoder_iter_forward.2} parent=103 // pred_check_branch
        %2430 = sbr.rel (%p2428) target = $region108
      $region107: #{mask_decoder_iter_forward.2} parent=103 // pred_region
        _
      $region108: #{mask_decoder_iter_forward.2} parent=103 // pred_fallthru
        _
    $region104: #{mask_decoder_iter_forward.2} parent=5 // pred_fallthru
      _
    %p2431 = scmp.le.s32.totalorder 2, %s27
    // Predicated region
    $region109: #{mask_decoder_iter_forward.2} parent=5 // pred_check
      %p2432 = pneg %p2431
    $region110: #{mask_decoder_iter_forward.2} parent=5 // pred_check_branch
      %2434 = sbr.rel (%p2432) target = $region112
    $region111: #{mask_decoder_iter_forward.2} parent=5 // pred_region
      %s2435 = ssub.s32 %s27, 2
      // Predicated region
      $region113: #{mask_decoder_iter_forward.2} parent=111 // pred_check
        %p2436 = pneg %p507
      $region114: #{mask_decoder_iter_forward.2} parent=111 // pred_check_branch
        %2438 = sbr.rel (%p2436) target = $region116
      $region115: #{mask_decoder_iter_forward.2} parent=111 // pred_region
        %p2439 = scmp.lt.s32.totalorder %s33, 1
        %s2440 = scalar_select %p2439, %s33, 1
        %s2441 = smul.addr %s2440, 8
        %s2442 = smul.addr %s2441, 8
        %s2443 = scalar_lea.vmem %s21, %s2442
      $region116: #{mask_decoder_iter_forward.2} parent=111 // pred_fallthru
        _
    $region112: #{mask_decoder_iter_forward.2} parent=5 // pred_fallthru
      _
  $region6: #{mask_decoder_iter_forward.2} parent=0 // loop_footer
    %s31 = sadd.s32 1, %s27
  $region7: #{mask_decoder_iter_forward.2} parent=0 // loop_footer_branch
    %26 = sbr.rel target = $region3
  $region8: #{mask_decoder_iter_forward.2} parent=0 // loop_exit
    _

</llo_original>
